<compile_context>
chip_gen: v5e
topology: v5e:2x2
jax: 0.10.0
libtpu: 0.0.40
codegen_flags: <defaults>
</compile_context>

<pallas_src>
import jax
import jax.numpy as jnp
from jax.experimental import pallas as pl
from jax.experimental.pallas import tpu as pltpu


def _round_up(x, m):
    return ((x + m - 1) // m) * m


# ---------------------------------------------------------------------------
# In-kernel 3x3 "SAME" conv on a zero-bordered VMEM scratch
# ---------------------------------------------------------------------------

def _conv3x3_dot(pad_ref, w_ref, H, W):
    """pad_ref: (H+2, W+2, C) bf16 scratch, zero 1-px border, interior = acts.
       w_ref:   (9*C, Cout) bf16, rows ordered (ky, kx, c) row-major.
       Returns  (H*W, Cout) f32."""
    C = pad_ref.shape[-1]
    Cout = w_ref.shape[-1]
    taps = [(ky, kx) for ky in range(3) for kx in range(3)]
    if C >= 128:
        # Production channel counts: 9 accumulating K=C MXU matmuls.  Avoids
        # the lane-concat shuffle work and the 9x activation temporary; K >=
        # 128 already fills the MXU depth.
        acc = jnp.zeros((H * W, Cout), jnp.float32)
        for idx, (ky, kx) in enumerate(taps):
            tap = pad_ref[ky:ky + H, kx:kx + W, :].reshape(H * W, C)
            acc = acc + jnp.dot(tap, w_ref[idx * C:(idx + 1) * C, :],
                                preferred_element_type=jnp.float32)
        return acc
    # Tiny C (the test sizes): a single K=9C matmul keeps the MXU depth sane.
    col = jnp.concatenate([pad_ref[ky:ky + H, kx:kx + W, :] for ky, kx in taps],
                          axis=-1)                              # (H, W, 9C) bf16
    return jnp.dot(col.reshape(H * W, 9 * C), w_ref[...],
                   preferred_element_type=jnp.float32)


# ---------------------------------------------------------------------------
# Fused block kernel
# ---------------------------------------------------------------------------

def _make_block_kernel(has_sc_conv):
    def kernel(x_ref, s1_ref, b1_ref, w1_ref, s2_ref, b2_ref, w2_ref, *rest):
        if has_sc_conv:
            wsc_ref, o_ref, p1_ref, p2_ref = rest
        else:
            o_ref, p1_ref, p2_ref = rest

        _, H, W, Cin = x_ref.shape
        P = w1_ref.shape[1]                   # planes
        Cpad = o_ref.shape[-1]                # 128-multiple output channels
        HW = H * W

        # Zero only the 1-pixel border of the persistent padded scratches; the
        # interior is fully overwritten below.  Done every step (cheap) so the
        # kernel stays correct when the batch axis is split across megacore
        # TensorCores ("parallel" semantics).
        for p_ref in (p1_ref, p2_ref):
            Hp, Wp, Cc = p_ref.shape
            p_ref[0:1, :, :] = jnp.zeros((1, Wp, Cc), p_ref.dtype)
            p_ref[Hp - 1:Hp, :, :] = jnp.zeros((1, Wp, Cc), p_ref.dtype)
            p_ref[:, 0:1, :] = jnp.zeros((Hp, 1, Cc), p_ref.dtype)
            p_ref[:, Wp - 1:Wp, :] = jnp.zeros((Hp, 1, Cc), p_ref.dtype)

        x = x_ref[0]                                              # (H, W, Cin) f32

        # --- BN1 (folded, inference) + ReLU: f32 math, bf16 at scratch store ---
        a1 = jnp.maximum(x * s1_ref[...] + b1_ref[...], 0.0)
        p1_ref[1:H + 1, 1:W + 1, :] = a1.astype(p1_ref.dtype)

        # --- conv1: MXU matmul(s), bf16 in / f32 accumulate ---
        h1 = _conv3x3_dot(p1_ref, w1_ref, H, W)                   # (HW, P) f32

        # --- BN2 + ReLU ; dropout == identity in eval mode ---
        # TODO(synk): training-mode dropout (random mask/scale) not implemented.
        a2 = jnp.maximum(h1 * s2_ref[...] + b2_ref[...], 0.0)
        p2_ref[1:H + 1, 1:W + 1, :] = a2.reshape(H, W, P).astype(p2_ref.dtype)

        # --- conv2 (Cout padded to Cpad => lane-dense output store) ---
        acc = _conv3x3_dot(p2_ref, w2_ref, H, W)                  # (HW, Cpad) f32

        # --- shortcut (on the raw input x, as in the pre-activation block) ---
        if has_sc_conv:
            sc = jnp.dot(x.reshape(HW, Cin).astype(jnp.bfloat16), wsc_ref[...],
                         preferred_element_type=jnp.float32)      # (HW, Cpad)
        else:
            # Identity shortcut: exact f32 residual; zero-pad channels to Cpad
            # so the final store stays a single unmasked lane-dense vst.
            sc = x.reshape(HW, Cin)
            if Cpad > Cin:
                sc = jnp.concatenate(
                    [sc, jnp.zeros((HW, Cpad - Cin), jnp.float32)], axis=-1)

        o_ref[...] = (acc + sc).reshape(1, H, W, Cpad).astype(o_ref.dtype)

    return kernel


# ---------------------------------------------------------------------------
# Wrappers
# ---------------------------------------------------------------------------

def basic_block_forward_nhwc(x_nhwc, params, stride=1):
    """NHWC in -> NHWC out, output channels zero-padded to a multiple of 128.

    Use this between blocks (channel-padded NHWC activations) to avoid the
    per-block NCHW<->NHWC transposes and pad-strip HBM round trips; strip the
    channel padding only at the network boundary."""
    assert stride == 1, "TODO(synk): stride > 1 not implemented"
    N, H, W, Cin = x_nhwc.shape
    w1, w2 = params["w1"], params["w2"]
    wsc = params.get("wsc", None)
    P = w1.shape[-1]
    has_sc_conv = wsc is not None
    Cpad = _round_up(P, 128)

    # Tiny trace-time weight prep: tap-major matrices, bf16, Cout padded.
    w1m = w1.reshape(9 * Cin, P).astype(jnp.bfloat16)
    w2m = jnp.pad(w2.reshape(9 * P, P), ((0, 0), (0, Cpad - P))).astype(jnp.bfloat16)
    wscm = (jnp.pad(wsc, ((0, 0), (0, Cpad - P))).astype(jnp.bfloat16)
            if has_sc_conv else None)

    s1 = params["bn1_scale"].reshape(1, Cin).astype(jnp.float32)
    b1 = params["bn1_bias"].reshape(1, Cin).astype(jnp.float32)
    s2 = params["bn2_scale"].reshape(1, P).astype(jnp.float32)
    b2 = params["bn2_bias"].reshape(1, P).astype(jnp.float32)

    # Grid-invariant operands: single-buffered (their index_map is constant so
    # Pallas never re-DMAs them; no need for two VMEM copies each).
    single = pl.Buffered(1)
    in_specs = [
        pl.BlockSpec((1, H, W, Cin), lambda n: (n, 0, 0, 0)),                 # x
        pl.BlockSpec((1, Cin), lambda n: (0, 0), pipeline_mode=single),       # bn1 scale
        pl.BlockSpec((1, Cin), lambda n: (0, 0), pipeline_mode=single),       # bn1 bias
        pl.BlockSpec((9 * Cin, P), lambda n: (0, 0), pipeline_mode=single),   # w1
        pl.BlockSpec((1, P), lambda n: (0, 0), pipeline_mode=single),         # bn2 scale
        pl.BlockSpec((1, P), lambda n: (0, 0), pipeline_mode=single),         # bn2 bias
        pl.BlockSpec((9 * P, Cpad), lambda n: (0, 0), pipeline_mode=single),  # w2
    ]
    inputs = [x_nhwc, s1, b1, w1m, s2, b2, w2m]
    if has_sc_conv:
        in_specs.append(pl.BlockSpec((Cin, Cpad), lambda n: (0, 0),
                                     pipeline_mode=single))                   # wsc
        inputs.append(wscm)

    return pl.pallas_call(
        _make_block_kernel(has_sc_conv),
        out_shape=jax.ShapeDtypeStruct((N, H, W, Cpad), jnp.float32),
        grid=(N,),
        in_specs=in_specs,
        out_specs=pl.BlockSpec((1, H, W, Cpad), lambda n: (n, 0, 0, 0)),
        scratch_shapes=[
            pltpu.VMEM((H + 2, W + 2, Cin), jnp.bfloat16),  # padded relu(bn1(x))
            pltpu.VMEM((H + 2, W + 2, P), jnp.bfloat16),    # padded relu(bn2(conv1))
        ],
        compiler_params=pltpu.CompilerParams(dimension_semantics=("parallel",)),
    )(*inputs)


def basic_block_forward(x_nchw, params, stride=1):
    """NCHW in / NCHW out — matches the PyTorch module's interface.  The
    transposes + pad-strip here are for API parity only; chain blocks through
    basic_block_forward_nhwc to avoid them."""
    P = params["w1"].shape[-1]
    x = jnp.transpose(x_nchw, (0, 2, 3, 1))                # NCHW -> NHWC
    out_pad = basic_block_forward_nhwc(x, params, stride=stride)
    return jnp.transpose(out_pad[..., :P], (0, 3, 1, 2))   # NHWC -> NCHW


# ---------------------------------------------------------------------------
# Deterministic synthetic parameters (BatchNorm folded for inference)
# ---------------------------------------------------------------------------

def init_basic_block_params(key, in_planes, planes, stride=1, eps=1e-5):
    ks = jax.random.split(key, 11)

    def fold_bn(g, b, m, v):
        scale = g / jnp.sqrt(v + eps)
        return scale, b - m * scale

    bn1_scale, bn1_bias = fold_bn(
        jax.random.uniform(ks[0], (in_planes,), jnp.float32, 0.5, 1.5),
        0.1 * jax.random.normal(ks[1], (in_planes,), jnp.float32),
        0.1 * jax.random.normal(ks[2], (in_planes,), jnp.float32),
        jax.random.uniform(ks[3], (in_planes,), jnp.float32, 0.5, 1.5))
    bn2_scale, bn2_bias = fold_bn(
        jax.random.uniform(ks[4], (planes,), jnp.float32, 0.5, 1.5),
        0.1 * jax.random.normal(ks[5], (planes,), jnp.float32),
        0.1 * jax.random.normal(ks[6], (planes,), jnp.float32),
        jax.random.uniform(ks[7], (planes,), jnp.float32, 0.5, 1.5))

    w1 = 0.1 * jax.random.normal(ks[8], (3, 3, in_planes, planes), jnp.float32)
    w2 = 0.1 * jax.random.normal(ks[9], (3, 3, planes, planes), jnp.float32)
    wsc = None
    if stride != 1 or in_planes != planes:
        wsc = 0.1 * jax.random.normal(ks[10], (in_planes, planes), jnp.float32)

    return dict(bn1_scale=bn1_scale, bn1_bias=bn1_bias, w1=w1,
                bn2_scale=bn2_scale, bn2_bias=bn2_bias, w2=w2, wsc=wsc)


# ---------------------------------------------------------------------------
# Pure-JAX reference (NCHW).  Matmul/conv inputs are ROUNDED to bf16 but the
# dot itself runs in f32 (mirrors the kernel's bf16-in / f32-accumulate MXU
# and avoids the unsupported BF16xBF16=F32 DotThunk on CPU backends).
# ---------------------------------------------------------------------------

def reference_forward(x, p):
    def q(t):
        return t.astype(jnp.bfloat16).astype(jnp.float32)

    def bn_relu(t, s, b):
        return jnp.maximum(t * s[None, :, None, None] + b[None, :, None, None], 0.0)

    def conv(t, w_hwio):
        w = jnp.transpose(w_hwio, (3, 2, 0, 1))            # HWIO -> OIHW
        return jax.lax.conv_general_dilated(
            q(t), q(w), (1, 1), "SAME",
            dimension_numbers=("NCHW", "OIHW", "NCHW"))

    out = bn_relu(x, p["bn1_scale"], p["bn1_bias"])
    out = conv(out, p["w1"])
    out = bn_relu(out, p["bn2_scale"], p["bn2_bias"])
    out = conv(out, p["w2"])
    if p.get("wsc", None) is not None:
        sc = jnp.einsum("nchw,cd->ndhw", q(x), q(p["wsc"]))
    else:
        sc = x
    return out + sc


if __name__ == "__main__":
    key = jax.random.PRNGKey(0)
    kx1, kp1, kx2, kp2 = jax.random.split(key, 4)
    fwd = jax.jit(basic_block_forward)

    # Case 1 (spec example sizes): in_planes != planes -> 1x1 conv shortcut.
    N, in_planes, planes, H, W = 2, 4, 8, 16, 16
    x1 = jax.random.normal(kx1, (N, in_planes, H, W), jnp.float32)
    p1 = init_basic_block_params(kp1, in_planes, planes, stride=1)
    out1 = jax.block_until_ready(fwd(x1, p1))
    assert out1.shape == (N, planes, H, W), out1.shape
    ref1 = reference_forward(x1, p1)
    err1 = float(jnp.max(jnp.abs(out1 - ref1)))
    assert err1 < 5e-2, f"case1 max abs err {err1}"

    # Case 2: in_planes == planes -> identity shortcut (exact f32 residual,
    # lane-padded output channels).
    x2 = jax.random.normal(kx2, (N, planes, H, W), jnp.float32)
    p2 = init_basic_block_params(kp2, planes, planes, stride=1)
    out2 = jax.block_until_ready(fwd(x2, p2))
    assert out2.shape == (N, planes, H, W), out2.shape
    ref2 = reference_forward(x2, p2)
    err2 = float(jnp.max(jnp.abs(out2 - ref2)))
    assert err2 < 5e-2, f"case2 max abs err {err2}"

    print("KERNEL_OK")
</pallas_src>

<mosaic_0001>
module attributes {stable_mosaic.version = 11 : i64} {
  func.func @kernel(%arg0: i32, %arg1: memref<1x16x16x4xf32, #tpu.memory_space<vmem>>, %arg2: memref<1x4xf32, #tpu.memory_space<vmem>>, %arg3: memref<1x4xf32, #tpu.memory_space<vmem>>, %arg4: memref<36x8xbf16, #tpu.memory_space<vmem>>, %arg5: memref<1x8xf32, #tpu.memory_space<vmem>>, %arg6: memref<1x8xf32, #tpu.memory_space<vmem>>, %arg7: memref<72x128xbf16, #tpu.memory_space<vmem>>, %arg8: memref<4x128xbf16, #tpu.memory_space<vmem>>, %arg9: memref<1x16x16x128xf32, #tpu.memory_space<vmem>>, %arg10: memref<18x18x4xbf16, #tpu.memory_space<vmem>>, %arg11: memref<18x18x8xbf16, #tpu.memory_space<vmem>>) attributes {dimension_semantics = [#tpu.dimension_semantics<parallel>], iteration_bounds = array<i64: 2>, scalar_prefetch = 0 : i64, scratch_operands = 2 : i64, tpu.core_type = #tpu.core_type<tc>, window_params = [{transform_indices = @transform_0, window_bounds = array<i64: 1, 16, 16, 4>}, {pipeline_mode = #tpu.pipeline_mode<synchronous>, transform_indices = @transform_1, window_bounds = array<i64: 1, 4>}, {pipeline_mode = #tpu.pipeline_mode<synchronous>, transform_indices = @transform_2, window_bounds = array<i64: 1, 4>}, {pipeline_mode = #tpu.pipeline_mode<synchronous>, transform_indices = @transform_3, window_bounds = array<i64: 36, 8>}, {pipeline_mode = #tpu.pipeline_mode<synchronous>, transform_indices = @transform_4, window_bounds = array<i64: 1, 8>}, {pipeline_mode = #tpu.pipeline_mode<synchronous>, transform_indices = @transform_5, window_bounds = array<i64: 1, 8>}, {pipeline_mode = #tpu.pipeline_mode<synchronous>, transform_indices = @transform_6, window_bounds = array<i64: 72, 128>}, {pipeline_mode = #tpu.pipeline_mode<synchronous>, transform_indices = @transform_7, window_bounds = array<i64: 4, 128>}, {transform_indices = @transform_8, window_bounds = array<i64: 1, 16, 16, 128>}]} {
    %cst = arith.constant 0.000000e+00 : bf16
    %0 = vector.broadcast %cst : bf16 to vector<1x18x4xbf16>
    %c0 = arith.constant 0 : index
    %c0_0 = arith.constant 0 : index
    %c0_1 = arith.constant 0 : index
    %1 = vector.load %arg10[%c0, %c0_0, %c0_1] : memref<18x18x4xbf16, #tpu.memory_space<vmem>>, vector<1x18x4xbf16>
    tpu.vector_store %arg10[%c0, %c0_0, %c0_1], %0 {strides = array<i32>} : memref<18x18x4xbf16, #tpu.memory_space<vmem>>, vector<1x18x4xbf16>,
    %cst_2 = arith.constant 0.000000e+00 : bf16
    %2 = vector.broadcast %cst_2 : bf16 to vector<1x18x4xbf16>
    %c17 = arith.constant 17 : index
    %c0_3 = arith.constant 0 : index
    %c0_4 = arith.constant 0 : index
    %3 = vector.load %arg10[%c17, %c0_3, %c0_4] : memref<18x18x4xbf16, #tpu.memory_space<vmem>>, vector<1x18x4xbf16>
    tpu.vector_store %arg10[%c17, %c0_3, %c0_4], %2 {strides = array<i32>} : memref<18x18x4xbf16, #tpu.memory_space<vmem>>, vector<1x18x4xbf16>,
    %cst_5 = arith.constant 0.000000e+00 : bf16
    %4 = vector.broadcast %cst_5 : bf16 to vector<18x1x4xbf16>
    %c0_6 = arith.constant 0 : index
    %c0_7 = arith.constant 0 : index
    %c0_8 = arith.constant 0 : index
    %5 = vector.load %arg10[%c0_6, %c0_7, %c0_8] : memref<18x18x4xbf16, #tpu.memory_space<vmem>>, vector<18x1x4xbf16>
    tpu.vector_store %arg10[%c0_6, %c0_7, %c0_8], %4 {strides = array<i32>} : memref<18x18x4xbf16, #tpu.memory_space<vmem>>, vector<18x1x4xbf16>,
    %cst_9 = arith.constant 0.000000e+00 : bf16
    %6 = vector.broadcast %cst_9 : bf16 to vector<18x1x4xbf16>
    %c0_10 = arith.constant 0 : index
    %c17_11 = arith.constant 17 : index
    %c0_12 = arith.constant 0 : index
    %7 = vector.load %arg10[%c0_10, %c17_11, %c0_12] : memref<18x18x4xbf16, #tpu.memory_space<vmem>>, vector<18x1x4xbf16>
    tpu.vector_store %arg10[%c0_10, %c17_11, %c0_12], %6 {strides = array<i32>} : memref<18x18x4xbf16, #tpu.memory_space<vmem>>, vector<18x1x4xbf16>,
    %cst_13 = arith.constant 0.000000e+00 : bf16
    %8 = vector.broadcast %cst_13 : bf16 to vector<1x18x8xbf16>
    %c0_14 = arith.constant 0 : index
    %c0_15 = arith.constant 0 : index
    %c0_16 = arith.constant 0 : index
    %9 = vector.load %arg11[%c0_14, %c0_15, %c0_16] : memref<18x18x8xbf16, #tpu.memory_space<vmem>>, vector<1x18x8xbf16>
    tpu.vector_store %arg11[%c0_14, %c0_15, %c0_16], %8 {strides = array<i32>} : memref<18x18x8xbf16, #tpu.memory_space<vmem>>, vector<1x18x8xbf16>,
    %cst_17 = arith.constant 0.000000e+00 : bf16
    %10 = vector.broadcast %cst_17 : bf16 to vector<1x18x8xbf16>
    %c17_18 = arith.constant 17 : index
    %c0_19 = arith.constant 0 : index
    %c0_20 = arith.constant 0 : index
    %11 = vector.load %arg11[%c17_18, %c0_19, %c0_20] : memref<18x18x8xbf16, #tpu.memory_space<vmem>>, vector<1x18x8xbf16>
    tpu.vector_store %arg11[%c17_18, %c0_19, %c0_20], %10 {strides = array<i32>} : memref<18x18x8xbf16, #tpu.memory_space<vmem>>, vector<1x18x8xbf16>,
    %cst_21 = arith.constant 0.000000e+00 : bf16
    %12 = vector.broadcast %cst_21 : bf16 to vector<18x1x8xbf16>
    %c0_22 = arith.constant 0 : index
    %c0_23 = arith.constant 0 : index
    %c0_24 = arith.constant 0 : index
    %13 = vector.load %arg11[%c0_22, %c0_23, %c0_24] : memref<18x18x8xbf16, #tpu.memory_space<vmem>>, vector<18x1x8xbf16>
    tpu.vector_store %arg11[%c0_22, %c0_23, %c0_24], %12 {strides = array<i32>} : memref<18x18x8xbf16, #tpu.memory_space<vmem>>, vector<18x1x8xbf16>,
    %cst_25 = arith.constant 0.000000e+00 : bf16
    %14 = vector.broadcast %cst_25 : bf16 to vector<18x1x8xbf16>
    %c0_26 = arith.constant 0 : index
    %c17_27 = arith.constant 17 : index
    %c0_28 = arith.constant 0 : index
    %15 = vector.load %arg11[%c0_26, %c17_27, %c0_28] : memref<18x18x8xbf16, #tpu.memory_space<vmem>>, vector<18x1x8xbf16>
    tpu.vector_store %arg11[%c0_26, %c17_27, %c0_28], %14 {strides = array<i32>} : memref<18x18x8xbf16, #tpu.memory_space<vmem>>, vector<18x1x8xbf16>,
    %c0_29 = arith.constant 0 : index
    %c0_30 = arith.constant 0 : index
    %c0_31 = arith.constant 0 : index
    %c0_32 = arith.constant 0 : index
    %16 = vector.load %arg1[%c0_29, %c0_30, %c0_31, %c0_32] : memref<1x16x16x4xf32, #tpu.memory_space<vmem>>, vector<1x16x16x4xf32>
    %17 = vector.shape_cast %16 : vector<1x16x16x4xf32> to vector<16x16x4xf32>
    %c0_33 = arith.constant 0 : index
    %c0_34 = arith.constant 0 : index
    %18 = vector.load %arg2[%c0_33, %c0_34] : memref<1x4xf32, #tpu.memory_space<vmem>>, vector<1x4xf32>
    %19 = vector.shape_cast %18 : vector<1x4xf32> to vector<1x1x4xf32>
    %20 = vector.broadcast %19 : vector<1x1x4xf32> to vector<16x16x4xf32>
    %21 = arith.mulf %17, %20 : vector<16x16x4xf32>
    %c0_35 = arith.constant 0 : index
    %c0_36 = arith.constant 0 : index
    %22 = vector.load %arg3[%c0_35, %c0_36] : memref<1x4xf32, #tpu.memory_space<vmem>>, vector<1x4xf32>
    %23 = vector.shape_cast %22 : vector<1x4xf32> to vector<1x1x4xf32>
    %24 = vector.broadcast %23 : vector<1x1x4xf32> to vector<16x16x4xf32>
    %25 = arith.addf %21, %24 : vector<16x16x4xf32>
    %cst_37 = arith.constant 0.000000e+00 : f32
    %26 = vector.broadcast %cst_37 : f32 to vector<16x16x4xf32>
    %27 = arith.maximumf %25, %26 : vector<16x16x4xf32>
    %28 = arith.truncf %27 : vector<16x16x4xf32> to vector<16x16x4xbf16>
    %c1 = arith.constant 1 : index
    %c1_38 = arith.constant 1 : index
    %c0_39 = arith.constant 0 : index
    %29 = vector.load %arg10[%c1, %c1_38, %c0_39] : memref<18x18x4xbf16, #tpu.memory_space<vmem>>, vector<16x16x4xbf16>
    tpu.vector_store %arg10[%c1, %c1_38, %c0_39], %28 {strides = array<i32>} : memref<18x18x4xbf16, #tpu.memory_space<vmem>>, vector<16x16x4xbf16>,
    %c0_40 = arith.constant 0 : index
    %c0_41 = arith.constant 0 : index
    %c0_42 = arith.constant 0 : index
    %30 = vector.load %arg10[%c0_40, %c0_41, %c0_42] : memref<18x18x4xbf16, #tpu.memory_space<vmem>>, vector<16x16x4xbf16>
    %c0_43 = arith.constant 0 : index
    %c1_44 = arith.constant 1 : index
    %c0_45 = arith.constant 0 : index
    %31 = vector.load %arg10[%c0_43, %c1_44, %c0_45] : memref<18x18x4xbf16, #tpu.memory_space<vmem>>, vector<16x16x4xbf16>
    %c0_46 = arith.constant 0 : index
    %c2 = arith.constant 2 : index
    %c0_47 = arith.constant 0 : index
    %32 = vector.load %arg10[%c0_46, %c2, %c0_47] : memref<18x18x4xbf16, #tpu.memory_space<vmem>>, vector<16x16x4xbf16>
    %c1_48 = arith.constant 1 : index
    %c0_49 = arith.constant 0 : index
    %c0_50 = arith.constant 0 : index
    %33 = vector.load %arg10[%c1_48, %c0_49, %c0_50] : memref<18x18x4xbf16, #tpu.memory_space<vmem>>, vector<16x16x4xbf16>
    %c1_51 = arith.constant 1 : index
    %c1_52 = arith.constant 1 : index
    %c0_53 = arith.constant 0 : index
    %34 = vector.load %arg10[%c1_51, %c1_52, %c0_53] : memref<18x18x4xbf16, #tpu.memory_space<vmem>>, vector<16x16x4xbf16>
    %c1_54 = arith.constant 1 : index
    %c2_55 = arith.constant 2 : index
    %c0_56 = arith.constant 0 : index
    %35 = vector.load %arg10[%c1_54, %c2_55, %c0_56] : memref<18x18x4xbf16, #tpu.memory_space<vmem>>, vector<16x16x4xbf16>
    %c2_57 = arith.constant 2 : index
    %c0_58 = arith.constant 0 : index
    %c0_59 = arith.constant 0 : index
    %36 = vector.load %arg10[%c2_57, %c0_58, %c0_59] : memref<18x18x4xbf16, #tpu.memory_space<vmem>>, vector<16x16x4xbf16>
    %c2_60 = arith.constant 2 : index
    %c1_61 = arith.constant 1 : index
    %c0_62 = arith.constant 0 : index
    %37 = vector.load %arg10[%c2_60, %c1_61, %c0_62] : memref<18x18x4xbf16, #tpu.memory_space<vmem>>, vector<16x16x4xbf16>
    %c2_63 = arith.constant 2 : index
    %c2_64 = arith.constant 2 : index
    %c0_65 = arith.constant 0 : index
    %38 = vector.load %arg10[%c2_63, %c2_64, %c0_65] : memref<18x18x4xbf16, #tpu.memory_space<vmem>>, vector<16x16x4xbf16>
    %39 = tpu.concatenate %30, %31, %32, %33, %34, %35, %36, %37, %38 in 2 : vector<16x16x4xbf16>, vector<16x16x4xbf16>, vector<16x16x4xbf16>, vector<16x16x4xbf16>, vector<16x16x4xbf16>, vector<16x16x4xbf16>, vector<16x16x4xbf16>, vector<16x16x4xbf16>, vector<16x16x4xbf16> -> vector<16x16x36xbf16>
    %40 = vector.shape_cast %39 : vector<16x16x36xbf16> to vector<256x36xbf16>
    %c0_66 = arith.constant 0 : index
    %c0_67 = arith.constant 0 : index
    %41 = vector.load %arg4[%c0_66, %c0_67] : memref<36x8xbf16, #tpu.memory_space<vmem>>, vector<36x8xbf16>
    %cst_68 = arith.constant dense<0.000000e+00> : vector<256x8xf32>
    %42 = tpu.matmul %40, %41, %cst_68 {dimension_numbers = #tpu.dot_dimension_numbers<[1], [0], [0], [1], [0, 0, 1, 1], [], []>} : vector<256x36xbf16>, vector<36x8xbf16>, vector<256x8xf32> -> vector<256x8xf32>
    %c0_69 = arith.constant 0 : index
    %c0_70 = arith.constant 0 : index
    %43 = vector.load %arg5[%c0_69, %c0_70] : memref<1x8xf32, #tpu.memory_space<vmem>>, vector<1x8xf32>
    %44 = vector.broadcast %43 : vector<1x8xf32> to vector<256x8xf32>
    %45 = arith.mulf %42, %44 : vector<256x8xf32>
    %c0_71 = arith.constant 0 : index
    %c0_72 = arith.constant 0 : index
    %46 = vector.load %arg6[%c0_71, %c0_72] : memref<1x8xf32, #tpu.memory_space<vmem>>, vector<1x8xf32>
    %47 = vector.broadcast %46 : vector<1x8xf32> to vector<256x8xf32>
    %48 = arith.addf %45, %47 : vector<256x8xf32>
    %cst_73 = arith.constant 0.000000e+00 : f32
    %49 = vector.broadcast %cst_73 : f32 to vector<256x8xf32>
    %50 = arith.maximumf %48, %49 : vector<256x8xf32>
    %51 = vector.shape_cast %50 : vector<256x8xf32> to vector<16x16x8xf32>
    %52 = arith.truncf %51 : vector<16x16x8xf32> to vector<16x16x8xbf16>
    %c1_74 = arith.constant 1 : index
    %c1_75 = arith.constant 1 : index
    %c0_76 = arith.constant 0 : index
    %53 = vector.load %arg11[%c1_74, %c1_75, %c0_76] : memref<18x18x8xbf16, #tpu.memory_space<vmem>>, vector<16x16x8xbf16>
    tpu.vector_store %arg11[%c1_74, %c1_75, %c0_76], %52 {strides = array<i32>} : memref<18x18x8xbf16, #tpu.memory_space<vmem>>, vector<16x16x8xbf16>,
    %c0_77 = arith.constant 0 : index
    %c0_78 = arith.constant 0 : index
    %c0_79 = arith.constant 0 : index
    %54 = vector.load %arg11[%c0_77, %c0_78, %c0_79] : memref<18x18x8xbf16, #tpu.memory_space<vmem>>, vector<16x16x8xbf16>
    %c0_80 = arith.constant 0 : index
    %c1_81 = arith.constant 1 : index
    %c0_82 = arith.constant 0 : index
    %55 = vector.load %arg11[%c0_80, %c1_81, %c0_82] : memref<18x18x8xbf16, #tpu.memory_space<vmem>>, vector<16x16x8xbf16>
    %c0_83 = arith.constant 0 : index
    %c2_84 = arith.constant 2 : index
    %c0_85 = arith.constant 0 : index
    %56 = vector.load %arg11[%c0_83, %c2_84, %c0_85] : memref<18x18x8xbf16, #tpu.memory_space<vmem>>, vector<16x16x8xbf16>
    %c1_86 = arith.constant 1 : index
    %c0_87 = arith.constant 0 : index
    %c0_88 = arith.constant 0 : index
    %57 = vector.load %arg11[%c1_86, %c0_87, %c0_88] : memref<18x18x8xbf16, #tpu.memory_space<vmem>>, vector<16x16x8xbf16>
    %c1_89 = arith.constant 1 : index
    %c1_90 = arith.constant 1 : index
    %c0_91 = arith.constant 0 : index
    %58 = vector.load %arg11[%c1_89, %c1_90, %c0_91] : memref<18x18x8xbf16, #tpu.memory_space<vmem>>, vector<16x16x8xbf16>
    %c1_92 = arith.constant 1 : index
    %c2_93 = arith.constant 2 : index
    %c0_94 = arith.constant 0 : index
    %59 = vector.load %arg11[%c1_92, %c2_93, %c0_94] : memref<18x18x8xbf16, #tpu.memory_space<vmem>>, vector<16x16x8xbf16>
    %c2_95 = arith.constant 2 : index
    %c0_96 = arith.constant 0 : index
    %c0_97 = arith.constant 0 : index
    %60 = vector.load %arg11[%c2_95, %c0_96, %c0_97] : memref<18x18x8xbf16, #tpu.memory_space<vmem>>, vector<16x16x8xbf16>
    %c2_98 = arith.constant 2 : index
    %c1_99 = arith.constant 1 : index
    %c0_100 = arith.constant 0 : index
    %61 = vector.load %arg11[%c2_98, %c1_99, %c0_100] : memref<18x18x8xbf16, #tpu.memory_space<vmem>>, vector<16x16x8xbf16>
    %c2_101 = arith.constant 2 : index
    %c2_102 = arith.constant 2 : index
    %c0_103 = arith.constant 0 : index
    %62 = vector.load %arg11[%c2_101, %c2_102, %c0_103] : memref<18x18x8xbf16, #tpu.memory_space<vmem>>, vector<16x16x8xbf16>
    %63 = tpu.concatenate %54, %55, %56, %57, %58, %59, %60, %61, %62 in 2 : vector<16x16x8xbf16>, vector<16x16x8xbf16>, vector<16x16x8xbf16>, vector<16x16x8xbf16>, vector<16x16x8xbf16>, vector<16x16x8xbf16>, vector<16x16x8xbf16>, vector<16x16x8xbf16>, vector<16x16x8xbf16> -> vector<16x16x72xbf16>
    %64 = vector.shape_cast %63 : vector<16x16x72xbf16> to vector<256x72xbf16>
    %c0_104 = arith.constant 0 : index
    %c0_105 = arith.constant 0 : index
    %65 = vector.load %arg7[%c0_104, %c0_105] : memref<72x128xbf16, #tpu.memory_space<vmem>>, vector<72x128xbf16>
    %cst_106 = arith.constant dense<0.000000e+00> : vector<256x128xf32>
    %66 = tpu.matmul %64, %65, %cst_106 {dimension_numbers = #tpu.dot_dimension_numbers<[1], [0], [0], [1], [0, 0, 1, 1], [], []>} : vector<256x72xbf16>, vector<72x128xbf16>, vector<256x128xf32> -> vector<256x128xf32>
    %67 = vector.shape_cast %17 : vector<16x16x4xf32> to vector<256x4xf32>
    %68 = arith.truncf %67 : vector<256x4xf32> to vector<256x4xbf16>
    %c0_107 = arith.constant 0 : index
    %c0_108 = arith.constant 0 : index
    %69 = vector.load %arg8[%c0_107, %c0_108] : memref<4x128xbf16, #tpu.memory_space<vmem>>, vector<4x128xbf16>
    %cst_109 = arith.constant dense<0.000000e+00> : vector<256x128xf32>
    %70 = tpu.matmul %68, %69, %cst_109 {dimension_numbers = #tpu.dot_dimension_numbers<[1], [0], [0], [1], [0, 0, 1, 1], [], []>} : vector<256x4xbf16>, vector<4x128xbf16>, vector<256x128xf32> -> vector<256x128xf32>
    %71 = arith.addf %66, %70 : vector<256x128xf32>
    %72 = vector.shape_cast %71 : vector<256x128xf32> to vector<1x16x16x128xf32>
    %c0_110 = arith.constant 0 : index
    %c0_111 = arith.constant 0 : index
    %c0_112 = arith.constant 0 : index
    %c0_113 = arith.constant 0 : index
    %73 = vector.load %arg9[%c0_110, %c0_111, %c0_112, %c0_113] : memref<1x16x16x128xf32, #tpu.memory_space<vmem>>, vector<1x16x16x128xf32>
    tpu.vector_store %arg9[%c0_110, %c0_111, %c0_112, %c0_113], %72 {strides = array<i32>} : memref<1x16x16x128xf32, #tpu.memory_space<vmem>>, vector<1x16x16x128xf32>,
    return
  }
  func.func @transform_0(%arg0: i32) -> (i32, i32, i32, i32) {
    %c0_i32 = arith.constant 0 : i32
    %c0_i32_0 = arith.constant 0 : i32
    %c0_i32_1 = arith.constant 0 : i32
    %c0_i32_2 = arith.constant 0 : i32
    return %arg0, %c0_i32, %c0_i32_0, %c0_i32_1 : i32, i32, i32, i32
  }
  func.func @transform_1(%arg0: i32) -> (i32, i32) {
    %c0_i32 = arith.constant 0 : i32
    %c0_i32_0 = arith.constant 0 : i32
    %c0_i32_1 = arith.constant 0 : i32
    return %c0_i32, %c0_i32_0 : i32, i32
  }
  func.func @transform_2(%arg0: i32) -> (i32, i32) {
    %c0_i32 = arith.constant 0 : i32
    %c0_i32_0 = arith.constant 0 : i32
    %c0_i32_1 = arith.constant 0 : i32
    return %c0_i32, %c0_i32_0 : i32, i32
  }
  func.func @transform_3(%arg0: i32) -> (i32, i32) {
    %c0_i32 = arith.constant 0 : i32
    %c0_i32_0 = arith.constant 0 : i32
    %c0_i32_1 = arith.constant 0 : i32
    return %c0_i32, %c0_i32_0 : i32, i32
  }
  func.func @transform_4(%arg0: i32) -> (i32, i32) {
    %c0_i32 = arith.constant 0 : i32
    %c0_i32_0 = arith.constant 0 : i32
    %c0_i32_1 = arith.constant 0 : i32
    return %c0_i32, %c0_i32_0 : i32, i32
  }
  func.func @transform_5(%arg0: i32) -> (i32, i32) {
    %c0_i32 = arith.constant 0 : i32
    %c0_i32_0 = arith.constant 0 : i32
    %c0_i32_1 = arith.constant 0 : i32
    return %c0_i32, %c0_i32_0 : i32, i32
  }
  func.func @transform_6(%arg0: i32) -> (i32, i32) {
    %c0_i32 = arith.constant 0 : i32
    %c0_i32_0 = arith.constant 0 : i32
    %c0_i32_1 = arith.constant 0 : i32
    return %c0_i32, %c0_i32_0 : i32, i32
  }
  func.func @transform_7(%arg0: i32) -> (i32, i32) {
    %c0_i32 = arith.constant 0 : i32
    %c0_i32_0 = arith.constant 0 : i32
    %c0_i32_1 = arith.constant 0 : i32
    return %c0_i32, %c0_i32_0 : i32, i32
  }
  func.func @transform_8(%arg0: i32) -> (i32, i32, i32, i32) {
    %c0_i32 = arith.constant 0 : i32
    %c0_i32_0 = arith.constant 0 : i32
    %c0_i32_1 = arith.constant 0 : i32
    %c0_i32_2 = arith.constant 0 : i32
    return %arg0, %c0_i32, %c0_i32_0, %c0_i32_1 : i32, i32, i32, i32
  }
}

</mosaic_0001>

<llo_original>
// kernel: basic_block_forward.1
$region0: #{basic_block_forward.1}
  #allocation0 [shape = 'u32[]', space=smem, size = 0x4, offset = 0x4, fixed_abs, tag = 'smem constant byte address 0x4 - core index']
  #allocation1 [shape = 'u32[72,128]{1,0:T(1,128)}', space=vmem, size = 0x9000, scoped, tag = 'internal scratch']
  #allocation2 [shape = 'bf16[18,18,4]{2,1,0:T(8,128)(2,1)}', space=vmem, size = 0x1b000, scoped, tag = 'scratch operand']
  #allocation3 [shape = 'bf16[18,18,8]{2,1,0:T(8,128)(2,1)}', space=vmem, size = 0x1b000, scoped, tag = 'scratch operand']
  %s0 = inlined_call_operand.vmem [shape: f32[2,16,16,4], index: 0, kind: input, shape index: {}]
  %s1 = inlined_call_operand.vmem [shape: f32[1,4], index: 1, kind: input, shape index: {}]
  %s2 = inlined_call_operand.vmem [shape: f32[1,4], index: 2, kind: input, shape index: {}]
  %s3 = inlined_call_operand.vmem [shape: bf16[36,8], index: 3, kind: input, shape index: {}]
  %s4 = inlined_call_operand.vmem [shape: f32[1,8], index: 4, kind: input, shape index: {}]
  %s5 = inlined_call_operand.vmem [shape: f32[1,8], index: 5, kind: input, shape index: {}]
  %s6 = inlined_call_operand.vmem [shape: bf16[72,128], index: 6, kind: input, shape index: {}]
  %s7 = inlined_call_operand.vmem [shape: bf16[4,128], index: 7, kind: input, shape index: {}]
  %s8 = inlined_call_operand.vmem [shape: f32[2,16,16,128], index: 8, kind: output, shape index: {}]
  %s9 = sld [smem:[#allocation0]]
  $region65: #{basic_block_forward.1} parent=0
    _
  %s11 = ssub.s32 1, %s9
  %s12 = scalar_select 0, %s11, %s9
  loop: start=0, step=1, limit=4
  $region2: #{basic_block_forward.1} parent=0 // loop_pre_header
    _
  $region3: #{basic_block_forward.1} parent=0 // loop_header
    %s14 = sphi 0, %s18
    %p15 = scmp.ge.s32.totalorder %s14, 4
    %s24 = sphi 0, %s26
    %s27 = sphi 0, %s24
    %s28 = sphi 0, %s27
    %s44 = sphi 0, %s28
    %s48 = sphi 0, %s48
    %s50 = sphi 0, %s48
    %s51 = sphi 0, %s50
    %s65 = sphi 0, %s51
    %s69 = sphi 0, %s69
    %s71 = sphi 0, %s69
    %s72 = sphi 0, %s71
    %s86 = sphi 0, %s72
    %s90 = sphi 0, %s90
    %s92 = sphi 0, %s90
    %s93 = sphi 0, %s92
    %s107 = sphi 0, %s93
    %s111 = sphi 0, %s111
    %s113 = sphi 0, %s111
    %s114 = sphi 0, %s113
    %s128 = sphi 0, %s114
    %s132 = sphi 0, %s132
    %s134 = sphi 0, %s132
    %s135 = sphi 0, %s134
    %s149 = sphi 0, %s135
    %s153 = sphi 0, %s153
    %s155 = sphi 0, %s153
    %s156 = sphi 0, %s155
    %s170 = sphi 0, %s156
    %s174 = sphi 0, %s174
    %s176 = sphi 0, %s174
    %s177 = sphi 0, %s176
    %s191 = sphi 0, %s177
    %s197 = sphi 0, %s199
    %s200 = sphi 0, %s197
    %s201 = sphi 0, %s200
    %s217 = sphi 0, %s201
  $region4: #{basic_block_forward.1} parent=0 // loop_header_branch
    %17 = sbr.rel (%p15) target = $region8
  $region5: #{basic_block_forward.1} parent=0 // loop_body
    %s19 = ssub.s32 %s14, 1
    %s20 = ssub.s32 %s14, 2
    %s21 = sadd.s32 %s14, 1
    %s22 = ssub.s32 %s14, %s21
    %p23 = scmp.eq.s32.totalorder %s22, 0
    %s25 = sadd.s32 %s24, 1
    %s26 = scalar_select %p23, %s24, %s25
    %p29 = pneg %p23
    %p30 = scmp.eq.s32.totalorder %s14, 1
    %p31 = por %p29, %p30
    %p32 = scmp.ne.s32.totalorder %s24, %s27
    %p33 = scmp.eq.s32.totalorder %s14, 0
    %p34 = por %p32, %p33
    %p35 = scmp.ne.s32.totalorder %s24, %s27
    %p36 = scmp.eq.s32.totalorder %s19, 1
    %p37 = por %p35, %p36
    %p38 = scmp.ne.s32.totalorder %s27, %s28
    %p39 = scmp.eq.s32.totalorder %s19, 0
    %p40 = por %p38, %p39
    %p41 = scmp.ne.s32.totalorder %s27, %s28
    %p42 = scmp.eq.s32.totalorder %s20, 1
    %p43 = por %p41, %p42
    %p45 = scmp.ne.s32.totalorder %s28, %s44
    %p46 = scmp.eq.s32.totalorder %s20, 0
    %p47 = por %p45, %p46
    %s49 = sadd.s32 %s48, 1
    %p52 = scmp.eq.s32.totalorder %s14, 1
    %p53 = scmp.ne.s32.totalorder %s48, %s50
    %p54 = scmp.eq.s32.totalorder %s14, 0
    %p55 = por %p53, %p54
    %p56 = scmp.ne.s32.totalorder %s48, %s50
    %p57 = scmp.eq.s32.totalorder %s19, 1
    %p58 = por %p56, %p57
    %p59 = scmp.ne.s32.totalorder %s50, %s51
    %p60 = scmp.eq.s32.totalorder %s19, 0
    %p61 = por %p59, %p60
    %p62 = scmp.ne.s32.totalorder %s50, %s51
    %p63 = scmp.eq.s32.totalorder %s20, 1
    %p64 = por %p62, %p63
    %p66 = scmp.ne.s32.totalorder %s51, %s65
    %p67 = scmp.eq.s32.totalorder %s20, 0
    %p68 = por %p66, %p67
    %s70 = sadd.s32 %s69, 1
    %p73 = scmp.eq.s32.totalorder %s14, 1
    %p74 = scmp.ne.s32.totalorder %s69, %s71
    %p75 = scmp.eq.s32.totalorder %s14, 0
    %p76 = por %p74, %p75
    %p77 = scmp.ne.s32.totalorder %s69, %s71
    %p78 = scmp.eq.s32.totalorder %s19, 1
    %p79 = por %p77, %p78
    %p80 = scmp.ne.s32.totalorder %s71, %s72
    %p81 = scmp.eq.s32.totalorder %s19, 0
    %p82 = por %p80, %p81
    %p83 = scmp.ne.s32.totalorder %s71, %s72
    %p84 = scmp.eq.s32.totalorder %s20, 1
    %p85 = por %p83, %p84
    %p87 = scmp.ne.s32.totalorder %s72, %s86
    %p88 = scmp.eq.s32.totalorder %s20, 0
    %p89 = por %p87, %p88
    %s91 = sadd.s32 %s90, 1
    %p94 = scmp.eq.s32.totalorder %s14, 1
    %p95 = scmp.ne.s32.totalorder %s90, %s92
    %p96 = scmp.eq.s32.totalorder %s14, 0
    %p97 = por %p95, %p96
    %p98 = scmp.ne.s32.totalorder %s90, %s92
    %p99 = scmp.eq.s32.totalorder %s19, 1
    %p100 = por %p98, %p99
    %p101 = scmp.ne.s32.totalorder %s92, %s93
    %p102 = scmp.eq.s32.totalorder %s19, 0
    %p103 = por %p101, %p102
    %p104 = scmp.ne.s32.totalorder %s92, %s93
    %p105 = scmp.eq.s32.totalorder %s20, 1
    %p106 = por %p104, %p105
    %p108 = scmp.ne.s32.totalorder %s93, %s107
    %p109 = scmp.eq.s32.totalorder %s20, 0
    %p110 = por %p108, %p109
    %s112 = sadd.s32 %s111, 1
    %p115 = scmp.eq.s32.totalorder %s14, 1
    %p116 = scmp.ne.s32.totalorder %s111, %s113
    %p117 = scmp.eq.s32.totalorder %s14, 0
    %p118 = por %p116, %p117
    %p119 = scmp.ne.s32.totalorder %s111, %s113
    %p120 = scmp.eq.s32.totalorder %s19, 1
    %p121 = por %p119, %p120
    %p122 = scmp.ne.s32.totalorder %s113, %s114
    %p123 = scmp.eq.s32.totalorder %s19, 0
    %p124 = por %p122, %p123
    %p125 = scmp.ne.s32.totalorder %s113, %s114
    %p126 = scmp.eq.s32.totalorder %s20, 1
    %p127 = por %p125, %p126
    %p129 = scmp.ne.s32.totalorder %s114, %s128
    %p130 = scmp.eq.s32.totalorder %s20, 0
    %p131 = por %p129, %p130
    %s133 = sadd.s32 %s132, 1
    %p136 = scmp.eq.s32.totalorder %s14, 1
    %p137 = scmp.ne.s32.totalorder %s132, %s134
    %p138 = scmp.eq.s32.totalorder %s14, 0
    %p139 = por %p137, %p138
    %p140 = scmp.ne.s32.totalorder %s132, %s134
    %p141 = scmp.eq.s32.totalorder %s19, 1
    %p142 = por %p140, %p141
    %p143 = scmp.ne.s32.totalorder %s134, %s135
    %p144 = scmp.eq.s32.totalorder %s19, 0
    %p145 = por %p143, %p144
    %p146 = scmp.ne.s32.totalorder %s134, %s135
    %p147 = scmp.eq.s32.totalorder %s20, 1
    %p148 = por %p146, %p147
    %p150 = scmp.ne.s32.totalorder %s135, %s149
    %p151 = scmp.eq.s32.totalorder %s20, 0
    %p152 = por %p150, %p151
    %s154 = sadd.s32 %s153, 1
    %p157 = scmp.eq.s32.totalorder %s14, 1
    %p158 = scmp.ne.s32.totalorder %s153, %s155
    %p159 = scmp.eq.s32.totalorder %s14, 0
    %p160 = por %p158, %p159
    %p161 = scmp.ne.s32.totalorder %s153, %s155
    %p162 = scmp.eq.s32.totalorder %s19, 1
    %p163 = por %p161, %p162
    %p164 = scmp.ne.s32.totalorder %s155, %s156
    %p165 = scmp.eq.s32.totalorder %s19, 0
    %p166 = por %p164, %p165
    %p167 = scmp.ne.s32.totalorder %s155, %s156
    %p168 = scmp.eq.s32.totalorder %s20, 1
    %p169 = por %p167, %p168
    %p171 = scmp.ne.s32.totalorder %s156, %s170
    %p172 = scmp.eq.s32.totalorder %s20, 0
    %p173 = por %p171, %p172
    %s175 = sadd.s32 %s174, 1
    %p178 = scmp.eq.s32.totalorder %s14, 1
    %p179 = scmp.ne.s32.totalorder %s174, %s176
    %p180 = scmp.eq.s32.totalorder %s14, 0
    %p181 = por %p179, %p180
    %p182 = scmp.ne.s32.totalorder %s174, %s176
    %p183 = scmp.eq.s32.totalorder %s19, 1
    %p184 = por %p182, %p183
    %p185 = scmp.ne.s32.totalorder %s176, %s177
    %p186 = scmp.eq.s32.totalorder %s19, 0
    %p187 = por %p185, %p186
    %p188 = scmp.ne.s32.totalorder %s176, %s177
    %p189 = scmp.eq.s32.totalorder %s20, 1
    %p190 = por %p188, %p189
    %p192 = scmp.ne.s32.totalorder %s177, %s191
    %p193 = scmp.eq.s32.totalorder %s20, 0
    %p194 = por %p192, %p193
    %s195 = ssub.s32 %s14, %s21
    %p196 = scmp.eq.s32.totalorder %s195, 0
    %s198 = sadd.s32 %s197, 1
    %s199 = scalar_select %p196, %s197, %s198
    %p202 = pneg %p196
    %p203 = scmp.eq.s32.totalorder %s14, 1
    %p204 = por %p202, %p203
    %p205 = scmp.ne.s32.totalorder %s197, %s200
    %p206 = scmp.eq.s32.totalorder %s14, 0
    %p207 = por %p205, %p206
    %p208 = scmp.ne.s32.totalorder %s197, %s200
    %p209 = scmp.eq.s32.totalorder %s19, 1
    %p210 = por %p208, %p209
    %p211 = scmp.ne.s32.totalorder %s200, %s201
    %p212 = scmp.eq.s32.totalorder %s19, 0
    %p213 = por %p211, %p212
    %p214 = scmp.ne.s32.totalorder %s200, %s201
    %p215 = scmp.eq.s32.totalorder %s20, 1
    %p216 = por %p214, %p215
    %p218 = scmp.ne.s32.totalorder %s201, %s217
    %p219 = scmp.eq.s32.totalorder %s20, 0
    %p220 = por %p218, %p219
    %p221 = scmp.le.s32.totalorder 1, %s14
    %p222 = scmp.lt.s32.totalorder %s14, 3
    %p223 = pnand %p221, %p222
    %p224 = pneg %p223
    // Predicated region
    $region9: #{basic_block_forward.1} parent=5 // pred_check
      _
    $region10: #{basic_block_forward.1} parent=5 // pred_check_branch
      %226 = sbr.rel (%p223) target = $region12
    $region11: #{basic_block_forward.1} parent=5 // pred_region
      %s227 = ssub.s32 %s14, 1
      // Predicated region
      $region13: #{basic_block_forward.1} parent=11 // pred_check
        %p228 = pneg %p61
      $region14: #{basic_block_forward.1} parent=11 // pred_check_branch
        %230 = sbr.rel (%p228) target = $region16
      $region15: #{basic_block_forward.1} parent=11 // pred_region
        _
      $region16: #{basic_block_forward.1} parent=11 // pred_fallthru
        _
      // Predicated region
      $region17: #{basic_block_forward.1} parent=11 // pred_check
        %p231 = pneg %p82
      $region18: #{basic_block_forward.1} parent=11 // pred_check_branch
        %233 = sbr.rel (%p231) target = $region20
      $region19: #{basic_block_forward.1} parent=11 // pred_region
        _
      $region20: #{basic_block_forward.1} parent=11 // pred_fallthru
        _
      // Predicated region
      $region21: #{basic_block_forward.1} parent=11 // pred_check
        %p234 = pneg %p103
      $region22: #{basic_block_forward.1} parent=11 // pred_check_branch
        %236 = sbr.rel (%p234) target = $region24
      $region23: #{basic_block_forward.1} parent=11 // pred_region
        _
      $region24: #{basic_block_forward.1} parent=11 // pred_fallthru
        _
      // Predicated region
      $region25: #{basic_block_forward.1} parent=11 // pred_check
        %p237 = pneg %p124
      $region26: #{basic_block_forward.1} parent=11 // pred_check_branch
        %239 = sbr.rel (%p237) target = $region28
      $region27: #{basic_block_forward.1} parent=11 // pred_region
        _
      $region28: #{basic_block_forward.1} parent=11 // pred_fallthru
        _
      // Predicated region
      $region29: #{basic_block_forward.1} parent=11 // pred_check
        %p240 = pneg %p145
      $region30: #{basic_block_forward.1} parent=11 // pred_check_branch
        %242 = sbr.rel (%p240) target = $region32
      $region31: #{basic_block_forward.1} parent=11 // pred_region
        _
      $region32: #{basic_block_forward.1} parent=11 // pred_fallthru
        _
      // Predicated region
      $region33: #{basic_block_forward.1} parent=11 // pred_check
        %p243 = pneg %p166
      $region34: #{basic_block_forward.1} parent=11 // pred_check_branch
        %245 = sbr.rel (%p243) target = $region36
      $region35: #{basic_block_forward.1} parent=11 // pred_region
        _
      $region36: #{basic_block_forward.1} parent=11 // pred_fallthru
        _
      // Predicated region
      $region37: #{basic_block_forward.1} parent=11 // pred_check
        %p246 = pneg %p187
      $region38: #{basic_block_forward.1} parent=11 // pred_check_branch
        %248 = sbr.rel (%p246) target = $region40
      $region39: #{basic_block_forward.1} parent=11 // pred_region
        _
      $region40: #{basic_block_forward.1} parent=11 // pred_fallthru
        _
    $region12: #{basic_block_forward.1} parent=5 // pred_fallthru
      _
    %p249 = scmp.lt.s32.totalorder %s14, 2
    // Predicated region
    $region41: #{basic_block_forward.1} parent=5 // pred_check
      %p250 = pneg %p249
    $region42: #{basic_block_forward.1} parent=5 // pred_check_branch
      %252 = sbr.rel (%p250) target = $region44
    $region43: #{basic_block_forward.1} parent=5 // pred_region
      // Predicated region
      $region45: #{basic_block_forward.1} parent=43 // pred_check
        %p253 = pneg %p34
      $region46: #{basic_block_forward.1} parent=43 // pred_check_branch
        %255 = sbr.rel (%p253) target = $region48
      $region47: #{basic_block_forward.1} parent=43 // pred_region
        %p256 = scmp.lt.s32.totalorder %s14, 1
        %s257 = scalar_select %p256, %s14, 1
        %s258 = smul.addr %s257, 32
        %s259 = smul.addr %s258, 8
        %s260 = scalar_lea.vmem %s0, %s259
      $region48: #{basic_block_forward.1} parent=43 // pred_fallthru
        _
    $region44: #{basic_block_forward.1} parent=5 // pred_fallthru
      _
    %p261 = scmp.le.s32.totalorder 1, %s14
    %p262 = scmp.lt.s32.totalorder %s14, 3
    %p263 = pnand %p261, %p262
    %p264 = pneg %p263
    // Predicated region
    $region49: #{basic_block_forward.1} parent=5 // pred_check
      _
    $region50: #{basic_block_forward.1} parent=5 // pred_check_branch
      %266 = sbr.rel (%p263) target = $region52
    $region51: #{basic_block_forward.1} parent=5 // pred_region
      %s267 = ssub.s32 %s14, 1
      %p268 = scmp.lt.s32.totalorder %s19, 1
      %s269 = scalar_select %p268, %s19, 1
      %s270 = smul.addr %s269, 32
      %s271 = smul.addr %s270, 8
      %s272 = scalar_lea.vmem %s0, %s271
      %p273 = pneg %p40
      %p274 = pneg %p37
      %p275 = pneg %p61
      %p276 = pneg %p58
      %p277 = pneg %p82
      %p278 = pneg %p79
      %p279 = pneg %p103
      %p280 = pneg %p100
      %p281 = pneg %p124
      %p282 = pneg %p121
      %p283 = pneg %p145
      %p284 = pneg %p142
      %p285 = pneg %p166
      %p286 = pneg %p163
      %p287 = pneg %p187
      %p288 = pneg %p184
      %p289 = pneg %p213
      %p290 = pneg %p210
      %p291 = scmp.lt.s32.totalorder %s19, 1
      %s292 = scalar_select %p291, %s19, 1
      %s293 = smul.addr %s292, 32
      %s294 = smul.addr %s293, 8
      %s295 = scalar_lea.vmem %s8, %s294
      %p296 = scmp.lt.s32.totalorder %s19, 1
      %s297 = scalar_select %p296, %s19, 1
      %s298 = smul.addr %s297, 32
      %s299 = smul.addr %s298, 8
      %s300 = scalar_lea.vmem %s0, %s299
      %p301 = scmp.lt.s32.totalorder %s19, 1
      %s302 = scalar_select %p301, %s19, 1
      %s303 = smul.addr %s302, 32
      %s304 = smul.addr %s303, 8
      %s305 = scalar_lea.vmem %s8, %s304
      %vm307 = vcmask 27648
      %308 = vst.msk [vmem:[#allocation2] sm:$0xf] %vm307, 0
      %309 = vst.msk [vmem:[#allocation2 + $0x4] sm:$0xf] %vm307, 0
      %vm310 = vcmask 24576
      %311 = vst.msk [vmem:[#allocation2 + $0x8] sm:$0x1] %vm310, 0
      %s312 = scalar_lea.vmem [#allocation2], 204
      %313 = vst.msk [vmem:[%s312] sm:$0xf] %vm307, 0
      %314 = vst.msk [vmem:[%s312 + $0x4] sm:$0xf] %vm307, 0
      %315 = vst.msk [vmem:[%s312 + $0x8] sm:$0x1] %vm310, 0
      %vm316 = vcmask 24576
      %vm317 = vsmask.f32 256
      %vm318 = vmand %vm316, %vm317
      %v319 = vld [vmem:[#allocation2] sm:$0x1]
      %v320 = vsel %vm318, 0, %v319
      %321 = vst [vmem:[#allocation2] sm:$0x1] %v320
      %v322 = vld [vmem:[#allocation2 + $0xc] sm:$0x1]
      %v323 = vsel %vm318, 0, %v322
      %324 = vst [vmem:[#allocation2 + $0xc] sm:$0x1] %v323
      %v325 = vld [vmem:[#allocation2 + $0x18] sm:$0x1]
      %v326 = vsel %vm318, 0, %v325
      %327 = vst [vmem:[#allocation2 + $0x18] sm:$0x1] %v326
      %v328 = vld [vmem:[#allocation2 + $0x24] sm:$0x1]
      %v329 = vsel %vm318, 0, %v328
      %330 = vst [vmem:[#allocation2 + $0x24] sm:$0x1] %v329
      %v331 = vld [vmem:[#allocation2 + $0x30] sm:$0x1]
      %v332 = vsel %vm318, 0, %v331
      %333 = vst [vmem:[#allocation2 + $0x30] sm:$0x1] %v332
      %v334 = vld [vmem:[#allocation2 + $0x3c] sm:$0x1]
      %v335 = vsel %vm318, 0, %v334
      %336 = vst [vmem:[#allocation2 + $0x3c] sm:$0x1] %v335
      %v337 = vld [vmem:[#allocation2 + $0x48] sm:$0x1]
      %v338 = vsel %vm318, 0, %v337
      %339 = vst [vmem:[#allocation2 + $0x48] sm:$0x1] %v338
      %v340 = vld [vmem:[#allocation2 + $0x54] sm:$0x1]
      %v341 = vsel %vm318, 0, %v340
      %342 = vst [vmem:[#allocation2 + $0x54] sm:$0x1] %v341
      %v343 = vld [vmem:[#allocation2 + $0x60] sm:$0x1]
      %v344 = vsel %vm318, 0, %v343
      %345 = vst [vmem:[#allocation2 + $0x60] sm:$0x1] %v344
      %v346 = vld [vmem:[#allocation2 + $0x6c] sm:$0x1]
      %v347 = vsel %vm318, 0, %v346
      %348 = vst [vmem:[#allocation2 + $0x6c] sm:$0x1] %v347
      %v349 = vld [vmem:[#allocation2 + $0x78] sm:$0x1]
      %v350 = vsel %vm318, 0, %v349
      %351 = vst [vmem:[#allocation2 + $0x78] sm:$0x1] %v350
      %v352 = vld [vmem:[#allocation2 + $0x84] sm:$0x1]
      %v353 = vsel %vm318, 0, %v352
      %354 = vst [vmem:[#allocation2 + $0x84] sm:$0x1] %v353
      %v355 = vld [vmem:[#allocation2 + $0x90] sm:$0x1]
      %v356 = vsel %vm318, 0, %v355
      %357 = vst [vmem:[#allocation2 + $0x90] sm:$0x1] %v356
      %v358 = vld [vmem:[#allocation2 + $0x9c] sm:$0x1]
      %v359 = vsel %vm318, 0, %v358
      %360 = vst [vmem:[#allocation2 + $0x9c] sm:$0x1] %v359
      %v361 = vld [vmem:[#allocation2 + $0xa8] sm:$0x1]
      %v362 = vsel %vm318, 0, %v361
      %363 = vst [vmem:[#allocation2 + $0xa8] sm:$0x1] %v362
      %v364 = vld [vmem:[#allocation2 + $0xb4] sm:$0x1]
      %v365 = vsel %vm318, 0, %v364
      %366 = vst [vmem:[#allocation2 + $0xb4] sm:$0x1] %v365
      %v367 = vld [vmem:[#allocation2 + $0xc0] sm:$0x1]
      %v368 = vsel %vm318, 0, %v367
      %369 = vst [vmem:[#allocation2 + $0xc0] sm:$0x1] %v368
      %v370 = vld [vmem:[#allocation2 + $0xcc] sm:$0x1]
      %v371 = vsel %vm318, 0, %v370
      %372 = vst [vmem:[#allocation2 + $0xcc] sm:$0x1] %v371
      %vm373 = vsmask.f32 7938
      %vm374 = vmand %vm316, %vm373
      %v375 = vld [vmem:[#allocation2 + $0x8] sm:$0x1]
      %v376 = vsel %vm374, 0, %v375
      %377 = vst [vmem:[#allocation2 + $0x8] sm:$0x1] %v376
      %v378 = vld [vmem:[#allocation2 + $0x14] sm:$0x1]
      %v379 = vsel %vm374, 0, %v378
      %380 = vst [vmem:[#allocation2 + $0x14] sm:$0x1] %v379
      %v381 = vld [vmem:[#allocation2 + $0x20] sm:$0x1]
      %v382 = vsel %vm374, 0, %v381
      %383 = vst [vmem:[#allocation2 + $0x20] sm:$0x1] %v382
      %v384 = vld [vmem:[#allocation2 + $0x2c] sm:$0x1]
      %v385 = vsel %vm374, 0, %v384
      %386 = vst [vmem:[#allocation2 + $0x2c] sm:$0x1] %v385
      %v387 = vld [vmem:[#allocation2 + $0x38] sm:$0x1]
      %v388 = vsel %vm374, 0, %v387
      %389 = vst [vmem:[#allocation2 + $0x38] sm:$0x1] %v388
      %v390 = vld [vmem:[#allocation2 + $0x44] sm:$0x1]
      %v391 = vsel %vm374, 0, %v390
      %392 = vst [vmem:[#allocation2 + $0x44] sm:$0x1] %v391
      %v393 = vld [vmem:[#allocation2 + $0x50] sm:$0x1]
      %v394 = vsel %vm374, 0, %v393
      %395 = vst [vmem:[#allocation2 + $0x50] sm:$0x1] %v394
      %v396 = vld [vmem:[#allocation2 + $0x5c] sm:$0x1]
      %v397 = vsel %vm374, 0, %v396
      %398 = vst [vmem:[#allocation2 + $0x5c] sm:$0x1] %v397
      %v399 = vld [vmem:[#allocation2 + $0x68] sm:$0x1]
      %v400 = vsel %vm374, 0, %v399
      %401 = vst [vmem:[#allocation2 + $0x68] sm:$0x1] %v400
      %v402 = vld [vmem:[#allocation2 + $0x74] sm:$0x1]
      %v403 = vsel %vm374, 0, %v402
      %404 = vst [vmem:[#allocation2 + $0x74] sm:$0x1] %v403
      %v405 = vld [vmem:[#allocation2 + $0x80] sm:$0x1]
      %v406 = vsel %vm374, 0, %v405
      %407 = vst [vmem:[#allocation2 + $0x80] sm:$0x1] %v406
      %v408 = vld [vmem:[#allocation2 + $0x8c] sm:$0x1]
      %v409 = vsel %vm374, 0, %v408
      %410 = vst [vmem:[#allocation2 + $0x8c] sm:$0x1] %v409
      %v411 = vld [vmem:[#allocation2 + $0x98] sm:$0x1]
      %v412 = vsel %vm374, 0, %v411
      %413 = vst [vmem:[#allocation2 + $0x98] sm:$0x1] %v412
      %v414 = vld [vmem:[#allocation2 + $0xa4] sm:$0x1]
      %v415 = vsel %vm374, 0, %v414
      %416 = vst [vmem:[#allocation2 + $0xa4] sm:$0x1] %v415
      %v417 = vld [vmem:[#allocation2 + $0xb0] sm:$0x1]
      %v418 = vsel %vm374, 0, %v417
      %419 = vst [vmem:[#allocation2 + $0xb0] sm:$0x1] %v418
      %v420 = vld [vmem:[#allocation2 + $0xbc] sm:$0x1]
      %v421 = vsel %vm374, 0, %v420
      %422 = vst [vmem:[#allocation2 + $0xbc] sm:$0x1] %v421
      %v423 = vld [vmem:[#allocation2 + $0xc8] sm:$0x1]
      %v424 = vsel %vm374, 0, %v423
      %425 = vst [vmem:[#allocation2 + $0xc8] sm:$0x1] %v424
      %v426 = vld [vmem:[#allocation2 + $0xd4] sm:$0x1]
      %v427 = vsel %vm374, 0, %v426
      %428 = vst [vmem:[#allocation2 + $0xd4] sm:$0x1] %v427
      %vm429 = vcmask 60416
      %430 = vst.msk [vmem:[#allocation3] sm:$0xf] %vm429, 0
      %431 = vst.msk [vmem:[#allocation3 + $0x4] sm:$0xf] %vm429, 0
      %vm432 = vcmask 57344
      %433 = vst.msk [vmem:[#allocation3 + $0x8] sm:$0x1] %vm432, 0
      %s434 = scalar_lea.vmem [#allocation3], 204
      %435 = vst.msk [vmem:[%s434] sm:$0xf] %vm429, 0
      %436 = vst.msk [vmem:[%s434 + $0x4] sm:$0xf] %vm429, 0
      %437 = vst.msk [vmem:[%s434 + $0x8] sm:$0x1] %vm432, 0
      %vm438 = vcmask 57344
      %vm439 = vmand %vm438, %vm317
      %v440 = vld [vmem:[#allocation3] sm:$0x1]
      %v441 = vsel %vm439, 0, %v440
      %442 = vst [vmem:[#allocation3] sm:$0x1] %v441
      %v443 = vld [vmem:[#allocation3 + $0xc] sm:$0x1]
      %v444 = vsel %vm439, 0, %v443
      %445 = vst [vmem:[#allocation3 + $0xc] sm:$0x1] %v444
      %v446 = vld [vmem:[#allocation3 + $0x18] sm:$0x1]
      %v447 = vsel %vm439, 0, %v446
      %448 = vst [vmem:[#allocation3 + $0x18] sm:$0x1] %v447
      %v449 = vld [vmem:[#allocation3 + $0x24] sm:$0x1]
      %v450 = vsel %vm439, 0, %v449
      %451 = vst [vmem:[#allocation3 + $0x24] sm:$0x1] %v450
      %v452 = vld [vmem:[#allocation3 + $0x30] sm:$0x1]
      %v453 = vsel %vm439, 0, %v452
      %454 = vst [vmem:[#allocation3 + $0x30] sm:$0x1] %v453
      %v455 = vld [vmem:[#allocation3 + $0x3c] sm:$0x1]
      %v456 = vsel %vm439, 0, %v455
      %457 = vst [vmem:[#allocation3 + $0x3c] sm:$0x1] %v456
      %v458 = vld [vmem:[#allocation3 + $0x48] sm:$0x1]
      %v459 = vsel %vm439, 0, %v458
      %460 = vst [vmem:[#allocation3 + $0x48] sm:$0x1] %v459
      %v461 = vld [vmem:[#allocation3 + $0x54] sm:$0x1]
      %v462 = vsel %vm439, 0, %v461
      %463 = vst [vmem:[#allocation3 + $0x54] sm:$0x1] %v462
      %v464 = vld [vmem:[#allocation3 + $0x60] sm:$0x1]
      %v465 = vsel %vm439, 0, %v464
      %466 = vst [vmem:[#allocation3 + $0x60] sm:$0x1] %v465
      %v467 = vld [vmem:[#allocation3 + $0x6c] sm:$0x1]
      %v468 = vsel %vm439, 0, %v467
      %469 = vst [vmem:[#allocation3 + $0x6c] sm:$0x1] %v468
      %v470 = vld [vmem:[#allocation3 + $0x78] sm:$0x1]
      %v471 = vsel %vm439, 0, %v470
      %472 = vst [vmem:[#allocation3 + $0x78] sm:$0x1] %v471
      %v473 = vld [vmem:[#allocation3 + $0x84] sm:$0x1]
      %v474 = vsel %vm439, 0, %v473
      %475 = vst [vmem:[#allocation3 + $0x84] sm:$0x1] %v474
      %v476 = vld [vmem:[#allocation3 + $0x90] sm:$0x1]
      %v477 = vsel %vm439, 0, %v476
      %478 = vst [vmem:[#allocation3 + $0x90] sm:$0x1] %v477
      %v479 = vld [vmem:[#allocation3 + $0x9c] sm:$0x1]
      %v480 = vsel %vm439, 0, %v479
      %481 = vst [vmem:[#allocation3 + $0x9c] sm:$0x1] %v480
      %v482 = vld [vmem:[#allocation3 + $0xa8] sm:$0x1]
      %v483 = vsel %vm439, 0, %v482
      %484 = vst [vmem:[#allocation3 + $0xa8] sm:$0x1] %v483
      %v485 = vld [vmem:[#allocation3 + $0xb4] sm:$0x1]
      %v486 = vsel %vm439, 0, %v485
      %487 = vst [vmem:[#allocation3 + $0xb4] sm:$0x1] %v486
      %v488 = vld [vmem:[#allocation3 + $0xc0] sm:$0x1]
      %v489 = vsel %vm439, 0, %v488
      %490 = vst [vmem:[#allocation3 + $0xc0] sm:$0x1] %v489
      %v491 = vld [vmem:[#allocation3 + $0xcc] sm:$0x1]
      %v492 = vsel %vm439, 0, %v491
      %493 = vst [vmem:[#allocation3 + $0xcc] sm:$0x1] %v492
      %vm494 = vmand %vm438, %vm373
      %v495 = vld [vmem:[#allocation3 + $0x8] sm:$0x1]
      %v496 = vsel %vm494, 0, %v495
      %497 = vst [vmem:[#allocation3 + $0x8] sm:$0x1] %v496
      %v498 = vld [vmem:[#allocation3 + $0x14] sm:$0x1]
      %v499 = vsel %vm494, 0, %v498
      %500 = vst [vmem:[#allocation3 + $0x14] sm:$0x1] %v499
      %v501 = vld [vmem:[#allocation3 + $0x20] sm:$0x1]
      %v502 = vsel %vm494, 0, %v501
      %503 = vst [vmem:[#allocation3 + $0x20] sm:$0x1] %v502
      %v504 = vld [vmem:[#allocation3 + $0x2c] sm:$0x1]
      %v505 = vsel %vm494, 0, %v504
      %506 = vst [vmem:[#allocation3 + $0x2c] sm:$0x1] %v505
      %v507 = vld [vmem:[#allocation3 + $0x38] sm:$0x1]
      %v508 = vsel %vm494, 0, %v507
      %509 = vst [vmem:[#allocation3 + $0x38] sm:$0x1] %v508
      %v510 = vld [vmem:[#allocation3 + $0x44] sm:$0x1]
      %v511 = vsel %vm494, 0, %v510
      %512 = vst [vmem:[#allocation3 + $0x44] sm:$0x1] %v511
      %v513 = vld [vmem:[#allocation3 + $0x50] sm:$0x1]
      %v514 = vsel %vm494, 0, %v513
      %515 = vst [vmem:[#allocation3 + $0x50] sm:$0x1] %v514
      %v516 = vld [vmem:[#allocation3 + $0x5c] sm:$0x1]
      %v517 = vsel %vm494, 0, %v516
      %518 = vst [vmem:[#allocation3 + $0x5c] sm:$0x1] %v517
      %v519 = vld [vmem:[#allocation3 + $0x68] sm:$0x1]
      %v520 = vsel %vm494, 0, %v519
      %521 = vst [vmem:[#allocation3 + $0x68] sm:$0x1] %v520
      %v522 = vld [vmem:[#allocation3 + $0x74] sm:$0x1]
      %v523 = vsel %vm494, 0, %v522
      %524 = vst [vmem:[#allocation3 + $0x74] sm:$0x1] %v523
      %v525 = vld [vmem:[#allocation3 + $0x80] sm:$0x1]
      %v526 = vsel %vm494, 0, %v525
      %527 = vst [vmem:[#allocation3 + $0x80] sm:$0x1] %v526
      %v528 = vld [vmem:[#allocation3 + $0x8c] sm:$0x1]
      %v529 = vsel %vm494, 0, %v528
      %530 = vst [vmem:[#allocation3 + $0x8c] sm:$0x1] %v529
      %v531 = vld [vmem:[#allocation3 + $0x98] sm:$0x1]
      %v532 = vsel %vm494, 0, %v531
      %533 = vst [vmem:[#allocation3 + $0x98] sm:$0x1] %v532
      %v534 = vld [vmem:[#allocation3 + $0xa4] sm:$0x1]
      %v535 = vsel %vm494, 0, %v534
      %536 = vst [vmem:[#allocation3 + $0xa4] sm:$0x1] %v535
      %v537 = vld [vmem:[#allocation3 + $0xb0] sm:$0x1]
      %v538 = vsel %vm494, 0, %v537
      %539 = vst [vmem:[#allocation3 + $0xb0] sm:$0x1] %v538
      %v540 = vld [vmem:[#allocation3 + $0xbc] sm:$0x1]
      %v541 = vsel %vm494, 0, %v540
      %542 = vst [vmem:[#allocation3 + $0xbc] sm:$0x1] %v541
      %v543 = vld [vmem:[#allocation3 + $0xc8] sm:$0x1]
      %v544 = vsel %vm494, 0, %v543
      %545 = vst [vmem:[#allocation3 + $0xc8] sm:$0x1] %v544
      %v546 = vld [vmem:[#allocation3 + $0xd4] sm:$0x1]
      %v547 = vsel %vm494, 0, %v546
      %548 = vst [vmem:[#allocation3 + $0xd4] sm:$0x1] %v547
      %v549 = vld [vmem:[%s300] sm:$0xff]
      %v550 = vld [vmem:[%s300 + $0x8] sm:$0xff]
      %v551 = vld [vmem:[%s300 + $0x10] sm:$0xff]
      %v552 = vld [vmem:[%s300 + $0x18] sm:$0xff]
      %v553 = vld [vmem:[%s300 + $0x20] sm:$0xff]
      %v554 = vld [vmem:[%s300 + $0x28] sm:$0xff]
      %v555 = vld [vmem:[%s300 + $0x30] sm:$0xff]
      %v556 = vld [vmem:[%s300 + $0x38] sm:$0xff]
      %v557 = vld [vmem:[%s300 + $0x40] sm:$0xff]
      %v558 = vld [vmem:[%s300 + $0x48] sm:$0xff]
      %v559 = vld [vmem:[%s300 + $0x50] sm:$0xff]
      %v560 = vld [vmem:[%s300 + $0x58] sm:$0xff]
      %v561 = vld [vmem:[%s300 + $0x60] sm:$0xff]
      %v562 = vld [vmem:[%s300 + $0x68] sm:$0xff]
      %v563 = vld [vmem:[%s300 + $0x70] sm:$0xff]
      %v564 = vld [vmem:[%s300 + $0x78] sm:$0xff]
      %v565 = vld [vmem:[%s300 + $0x80] sm:$0xff]
      %v566 = vld [vmem:[%s300 + $0x88] sm:$0xff]
      %v567 = vld [vmem:[%s300 + $0x90] sm:$0xff]
      %v568 = vld [vmem:[%s300 + $0x98] sm:$0xff]
      %v569 = vld [vmem:[%s300 + $0xa0] sm:$0xff]
      %v570 = vld [vmem:[%s300 + $0xa8] sm:$0xff]
      %v571 = vld [vmem:[%s300 + $0xb0] sm:$0xff]
      %v572 = vld [vmem:[%s300 + $0xb8] sm:$0xff]
      %v573 = vld [vmem:[%s300 + $0xc0] sm:$0xff]
      %v574 = vld [vmem:[%s300 + $0xc8] sm:$0xff]
      %v575 = vld [vmem:[%s300 + $0xd0] sm:$0xff]
      %v576 = vld [vmem:[%s300 + $0xd8] sm:$0xff]
      %v577 = vld [vmem:[%s300 + $0xe0] sm:$0xff]
      %v578 = vld [vmem:[%s300 + $0xe8] sm:$0xff]
      %v579 = vld [vmem:[%s300 + $0xf0] sm:$0xff]
      %v580 = vld [vmem:[%s300 + $0xf8] sm:$0xff]
      %v581 = vld [vmem:[%s1] sm:$0x1]
      %v583 = vperm.slane %v581, 0
      %v585 = vmul.f32 %v549, %v583
      %v586 = vmul.f32 %v550, %v583
      %v587 = vmul.f32 %v551, %v583
      %v588 = vmul.f32 %v552, %v583
      %v589 = vmul.f32 %v553, %v583
      %v590 = vmul.f32 %v554, %v583
      %v591 = vmul.f32 %v555, %v583
      %v592 = vmul.f32 %v556, %v583
      %v593 = vmul.f32 %v557, %v583
      %v594 = vmul.f32 %v558, %v583
      %v595 = vmul.f32 %v559, %v583
      %v596 = vmul.f32 %v560, %v583
      %v597 = vmul.f32 %v561, %v583
      %v598 = vmul.f32 %v562, %v583
      %v599 = vmul.f32 %v563, %v583
      %v600 = vmul.f32 %v564, %v583
      %v601 = vmul.f32 %v565, %v583
      %v602 = vmul.f32 %v566, %v583
      %v603 = vmul.f32 %v567, %v583
      %v604 = vmul.f32 %v568, %v583
      %v605 = vmul.f32 %v569, %v583
      %v606 = vmul.f32 %v570, %v583
      %v607 = vmul.f32 %v571, %v583
      %v608 = vmul.f32 %v572, %v583
      %v609 = vmul.f32 %v573, %v583
      %v610 = vmul.f32 %v574, %v583
      %v611 = vmul.f32 %v575, %v583
      %v612 = vmul.f32 %v576, %v583
      %v613 = vmul.f32 %v577, %v583
      %v614 = vmul.f32 %v578, %v583
      %v615 = vmul.f32 %v579, %v583
      %v616 = vmul.f32 %v580, %v583
      %v617 = vld [vmem:[%s2] sm:$0x1]
      %v619 = vperm.slane %v617, 0
      %v621 = vadd.f32 %v585, %v619
      %v622 = vadd.f32 %v586, %v619
      %v623 = vadd.f32 %v587, %v619
      %v624 = vadd.f32 %v588, %v619
      %v625 = vadd.f32 %v589, %v619
      %v626 = vadd.f32 %v590, %v619
      %v627 = vadd.f32 %v591, %v619
      %v628 = vadd.f32 %v592, %v619
      %v629 = vadd.f32 %v593, %v619
      %v630 = vadd.f32 %v594, %v619
      %v631 = vadd.f32 %v595, %v619
      %v632 = vadd.f32 %v596, %v619
      %v633 = vadd.f32 %v597, %v619
      %v634 = vadd.f32 %v598, %v619
      %v635 = vadd.f32 %v599, %v619
      %v636 = vadd.f32 %v600, %v619
      %v637 = vadd.f32 %v601, %v619
      %v638 = vadd.f32 %v602, %v619
      %v639 = vadd.f32 %v603, %v619
      %v640 = vadd.f32 %v604, %v619
      %v641 = vadd.f32 %v605, %v619
      %v642 = vadd.f32 %v606, %v619
      %v643 = vadd.f32 %v607, %v619
      %v644 = vadd.f32 %v608, %v619
      %v645 = vadd.f32 %v609, %v619
      %v646 = vadd.f32 %v610, %v619
      %v647 = vadd.f32 %v611, %v619
      %v648 = vadd.f32 %v612, %v619
      %v649 = vadd.f32 %v613, %v619
      %v650 = vadd.f32 %v614, %v619
      %v651 = vadd.f32 %v615, %v619
      %v652 = vadd.f32 %v616, %v619
      %v653 = vmax.f32 %v621, 0.0
      %v654 = vmax.f32 %v622, 0.0
      %v655 = vmax.f32 %v623, 0.0
      %v656 = vmax.f32 %v624, 0.0
      %v657 = vmax.f32 %v625, 0.0
      %v658 = vmax.f32 %v626, 0.0
      %v659 = vmax.f32 %v627, 0.0
      %v660 = vmax.f32 %v628, 0.0
      %v661 = vmax.f32 %v629, 0.0
      %v662 = vmax.f32 %v630, 0.0
      %v663 = vmax.f32 %v631, 0.0
      %v664 = vmax.f32 %v632, 0.0
      %v665 = vmax.f32 %v633, 0.0
      %v666 = vmax.f32 %v634, 0.0
      %v667 = vmax.f32 %v635, 0.0
      %v668 = vmax.f32 %v636, 0.0
      %v669 = vmax.f32 %v637, 0.0
      %v670 = vmax.f32 %v638, 0.0
      %v671 = vmax.f32 %v639, 0.0
      %v672 = vmax.f32 %v640, 0.0
      %v673 = vmax.f32 %v641, 0.0
      %v674 = vmax.f32 %v642, 0.0
      %v675 = vmax.f32 %v643, 0.0
      %v676 = vmax.f32 %v644, 0.0
      %v677 = vmax.f32 %v645, 0.0
      %v678 = vmax.f32 %v646, 0.0
      %v679 = vmax.f32 %v647, 0.0
      %v680 = vmax.f32 %v648, 0.0
      %v681 = vmax.f32 %v649, 0.0
      %v682 = vmax.f32 %v650, 0.0
      %v683 = vmax.f32 %v651, 0.0
      %v684 = vmax.f32 %v652, 0.0
      %v685 = vpack.c.bf16 %v653, %v653
      %v686 = vpack.c.bf16 %v654, %v654
      %v687 = vpack.c.bf16 %v655, %v655
      %v688 = vpack.c.bf16 %v656, %v656
      %v689 = vpack.c.bf16 %v657, %v657
      %v690 = vpack.c.bf16 %v658, %v658
      %v691 = vpack.c.bf16 %v659, %v659
      %v692 = vpack.c.bf16 %v660, %v660
      %v693 = vpack.c.bf16 %v661, %v661
      %v694 = vpack.c.bf16 %v662, %v662
      %v695 = vpack.c.bf16 %v663, %v663
      %v696 = vpack.c.bf16 %v664, %v664
      %v697 = vpack.c.bf16 %v665, %v665
      %v698 = vpack.c.bf16 %v666, %v666
      %v699 = vpack.c.bf16 %v667, %v667
      %v700 = vpack.c.bf16 %v668, %v668
      %v701 = vpack.c.bf16 %v669, %v669
      %v702 = vpack.c.bf16 %v670, %v670
      %v703 = vpack.c.bf16 %v671, %v671
      %v704 = vpack.c.bf16 %v672, %v672
      %v705 = vpack.c.bf16 %v673, %v673
      %v706 = vpack.c.bf16 %v674, %v674
      %v707 = vpack.c.bf16 %v675, %v675
      %v708 = vpack.c.bf16 %v676, %v676
      %v709 = vpack.c.bf16 %v677, %v677
      %v710 = vpack.c.bf16 %v678, %v678
      %v711 = vpack.c.bf16 %v679, %v679
      %v712 = vpack.c.bf16 %v680, %v680
      %v713 = vpack.c.bf16 %v681, %v681
      %v714 = vpack.c.bf16 %v682, %v682
      %v715 = vpack.c.bf16 %v683, %v683
      %v716 = vpack.c.bf16 %v684, %v684
      %vm717 = vsmask.f32 4368
      %vm718 = vmor %vm317, %vm717
      %v720 = vshrl.u32 %v685, 16
      %v722 = vrot.slane %v720, 7
      %v723 = vshll.u32 %v685, 16
      %v725 = vor.u32 %v722, %v723
      %v726 = vrot.slane %v722, 4
      %v728 = vshrl.u32 %v686, 16
      %v730 = vrot.slane %v728, 7
      %v731 = vshll.u32 %v686, 16
      %v733 = vor.u32 %v730, %v731
      %v734 = vsel %vm718, %v726, %v733
      %v735 = vrot.slane %v730, 4
      %v737 = vshrl.u32 %v687, 16
      %v739 = vrot.slane %v737, 7
      %v740 = vshll.u32 %v687, 16
      %v742 = vor.u32 %v739, %v740
      %v743 = vrot.slane %v739, 4
      %v745 = vshrl.u32 %v688, 16
      %v747 = vrot.slane %v745, 7
      %v748 = vshll.u32 %v688, 16
      %v750 = vor.u32 %v747, %v748
      %v751 = vsel %vm718, %v743, %v750
      %v752 = vrot.slane %v747, 4
      %v754 = vshrl.u32 %v689, 16
      %v756 = vrot.slane %v754, 7
      %v757 = vshll.u32 %v689, 16
      %v759 = vor.u32 %v756, %v757
      %v760 = vrot.slane %v756, 4
      %v762 = vshrl.u32 %v690, 16
      %v764 = vrot.slane %v762, 7
      %v765 = vshll.u32 %v690, 16
      %v767 = vor.u32 %v764, %v765
      %v768 = vsel %vm718, %v760, %v767
      %v769 = vrot.slane %v764, 4
      %v771 = vshrl.u32 %v691, 16
      %v773 = vrot.slane %v771, 7
      %v774 = vshll.u32 %v691, 16
      %v776 = vor.u32 %v773, %v774
      %v777 = vrot.slane %v773, 4
      %v779 = vshrl.u32 %v692, 16
      %v781 = vrot.slane %v779, 7
      %v782 = vshll.u32 %v692, 16
      %v784 = vor.u32 %v781, %v782
      %v785 = vsel %vm718, %v777, %v784
      %v786 = vrot.slane %v781, 4
      %v788 = vshrl.u32 %v693, 16
      %v790 = vrot.slane %v788, 7
      %v791 = vshll.u32 %v693, 16
      %v793 = vor.u32 %v790, %v791
      %v794 = vrot.slane %v790, 4
      %v796 = vshrl.u32 %v694, 16
      %v798 = vrot.slane %v796, 7
      %v799 = vshll.u32 %v694, 16
      %v801 = vor.u32 %v798, %v799
      %v802 = vsel %vm718, %v794, %v801
      %v803 = vrot.slane %v798, 4
      %v805 = vshrl.u32 %v695, 16
      %v807 = vrot.slane %v805, 7
      %v808 = vshll.u32 %v695, 16
      %v810 = vor.u32 %v807, %v808
      %v811 = vrot.slane %v807, 4
      %v813 = vshrl.u32 %v696, 16
      %v815 = vrot.slane %v813, 7
      %v816 = vshll.u32 %v696, 16
      %v818 = vor.u32 %v815, %v816
      %v819 = vsel %vm718, %v811, %v818
      %v820 = vrot.slane %v815, 4
      %v822 = vshrl.u32 %v697, 16
      %v824 = vrot.slane %v822, 7
      %v825 = vshll.u32 %v697, 16
      %v827 = vor.u32 %v824, %v825
      %v828 = vrot.slane %v824, 4
      %v830 = vshrl.u32 %v698, 16
      %v832 = vrot.slane %v830, 7
      %v833 = vshll.u32 %v698, 16
      %v835 = vor.u32 %v832, %v833
      %v836 = vsel %vm718, %v828, %v835
      %v837 = vrot.slane %v832, 4
      %v839 = vshrl.u32 %v699, 16
      %v841 = vrot.slane %v839, 7
      %v842 = vshll.u32 %v699, 16
      %v844 = vor.u32 %v841, %v842
      %v845 = vrot.slane %v841, 4
      %v847 = vshrl.u32 %v700, 16
      %v849 = vrot.slane %v847, 7
      %v850 = vshll.u32 %v700, 16
      %v852 = vor.u32 %v849, %v850
      %v853 = vsel %vm718, %v845, %v852
      %v854 = vrot.slane %v849, 4
      %v856 = vshrl.u32 %v701, 16
      %v858 = vrot.slane %v856, 7
      %v859 = vshll.u32 %v701, 16
      %v861 = vor.u32 %v858, %v859
      %v862 = vrot.slane %v858, 4
      %v864 = vshrl.u32 %v702, 16
      %v866 = vrot.slane %v864, 7
      %v867 = vshll.u32 %v702, 16
      %v869 = vor.u32 %v866, %v867
      %v870 = vsel %vm718, %v862, %v869
      %v871 = vrot.slane %v866, 4
      %v873 = vshrl.u32 %v703, 16
      %v875 = vrot.slane %v873, 7
      %v876 = vshll.u32 %v703, 16
      %v878 = vor.u32 %v875, %v876
      %v879 = vrot.slane %v875, 4
      %v881 = vshrl.u32 %v704, 16
      %v883 = vrot.slane %v881, 7
      %v884 = vshll.u32 %v704, 16
      %v886 = vor.u32 %v883, %v884
      %v887 = vsel %vm718, %v879, %v886
      %v888 = vrot.slane %v883, 4
      %v890 = vshrl.u32 %v705, 16
      %v892 = vrot.slane %v890, 7
      %v893 = vshll.u32 %v705, 16
      %v895 = vor.u32 %v892, %v893
      %v896 = vrot.slane %v892, 4
      %v898 = vshrl.u32 %v706, 16
      %v900 = vrot.slane %v898, 7
      %v901 = vshll.u32 %v706, 16
      %v903 = vor.u32 %v900, %v901
      %v904 = vsel %vm718, %v896, %v903
      %v905 = vrot.slane %v900, 4
      %v907 = vshrl.u32 %v707, 16
      %v909 = vrot.slane %v907, 7
      %v910 = vshll.u32 %v707, 16
      %v912 = vor.u32 %v909, %v910
      %v913 = vrot.slane %v909, 4
      %v915 = vshrl.u32 %v708, 16
      %v917 = vrot.slane %v915, 7
      %v918 = vshll.u32 %v708, 16
      %v920 = vor.u32 %v917, %v918
      %v921 = vsel %vm718, %v913, %v920
      %v922 = vrot.slane %v917, 4
      %v924 = vshrl.u32 %v709, 16
      %v926 = vrot.slane %v924, 7
      %v927 = vshll.u32 %v709, 16
      %v929 = vor.u32 %v926, %v927
      %v930 = vrot.slane %v926, 4
      %v932 = vshrl.u32 %v710, 16
      %v934 = vrot.slane %v932, 7
      %v935 = vshll.u32 %v710, 16
      %v937 = vor.u32 %v934, %v935
      %v938 = vsel %vm718, %v930, %v937
      %v939 = vrot.slane %v934, 4
      %v941 = vshrl.u32 %v711, 16
      %v943 = vrot.slane %v941, 7
      %v944 = vshll.u32 %v711, 16
      %v946 = vor.u32 %v943, %v944
      %v947 = vrot.slane %v943, 4
      %v949 = vshrl.u32 %v712, 16
      %v951 = vrot.slane %v949, 7
      %v952 = vshll.u32 %v712, 16
      %v954 = vor.u32 %v951, %v952
      %v955 = vsel %vm718, %v947, %v954
      %v956 = vrot.slane %v951, 4
      %v958 = vshrl.u32 %v713, 16
      %v960 = vrot.slane %v958, 7
      %v961 = vshll.u32 %v713, 16
      %v963 = vor.u32 %v960, %v961
      %v964 = vrot.slane %v960, 4
      %v966 = vshrl.u32 %v714, 16
      %v968 = vrot.slane %v966, 7
      %v969 = vshll.u32 %v714, 16
      %v971 = vor.u32 %v968, %v969
      %v972 = vsel %vm718, %v964, %v971
      %v973 = vrot.slane %v968, 4
      %v975 = vshrl.u32 %v715, 16
      %v977 = vrot.slane %v975, 7
      %v978 = vshll.u32 %v715, 16
      %v980 = vor.u32 %v977, %v978
      %v981 = vrot.slane %v977, 4
      %v983 = vshrl.u32 %v716, 16
      %v985 = vrot.slane %v983, 7
      %v986 = vshll.u32 %v716, 16
      %v988 = vor.u32 %v985, %v986
      %v989 = vsel %vm718, %v981, %v988
      %v990 = vrot.slane %v985, 4
      %s1039 = scalar_lea.vmem [#allocation2], 12
      %vm1040 = vcmask 27648
      %vm1041 = vmand %vm1040, %vm373
      %v1042 = vld [vmem:[%s1039] sm:$0xf]
      %v1043 = vsel %vm1041, %v725, %v1042
      %1044 = vst [vmem:[%s1039] sm:$0xf] %v1043
      %1045 = vst.msk [vmem:[%s1039 + $0x4] sm:$0xf] %vm307, %v734
      %v1046 = vld [vmem:[%s1039 + $0x8] sm:$0x1]
      %v1047 = vsel %vm318, %v735, %v1046
      %1048 = vst [vmem:[%s1039 + $0x8] sm:$0x1] %v1047
      %v1049 = vld [vmem:[%s1039 + $0xc] sm:$0xf]
      %v1050 = vsel %vm1041, %v742, %v1049
      %1051 = vst [vmem:[%s1039 + $0xc] sm:$0xf] %v1050
      %1052 = vst.msk [vmem:[%s1039 + $0x10] sm:$0xf] %vm307, %v751
      %v1053 = vld [vmem:[%s1039 + $0x14] sm:$0x1]
      %v1054 = vsel %vm318, %v752, %v1053
      %1055 = vst [vmem:[%s1039 + $0x14] sm:$0x1] %v1054
      %v1056 = vld [vmem:[%s1039 + $0x18] sm:$0xf]
      %v1057 = vsel %vm1041, %v759, %v1056
      %1058 = vst [vmem:[%s1039 + $0x18] sm:$0xf] %v1057
      %1059 = vst.msk [vmem:[%s1039 + $0x1c] sm:$0xf] %vm307, %v768
      %v1060 = vld [vmem:[%s1039 + $0x20] sm:$0x1]
      %v1061 = vsel %vm318, %v769, %v1060
      %1062 = vst [vmem:[%s1039 + $0x20] sm:$0x1] %v1061
      %v1063 = vld [vmem:[%s1039 + $0x24] sm:$0xf]
      %v1064 = vsel %vm1041, %v776, %v1063
      %1065 = vst [vmem:[%s1039 + $0x24] sm:$0xf] %v1064
      %1066 = vst.msk [vmem:[%s1039 + $0x28] sm:$0xf] %vm307, %v785
      %v1067 = vld [vmem:[%s1039 + $0x2c] sm:$0x1]
      %v1068 = vsel %vm318, %v786, %v1067
      %1069 = vst [vmem:[%s1039 + $0x2c] sm:$0x1] %v1068
      %v1070 = vld [vmem:[%s1039 + $0x30] sm:$0xf]
      %v1071 = vsel %vm1041, %v793, %v1070
      %1072 = vst [vmem:[%s1039 + $0x30] sm:$0xf] %v1071
      %1073 = vst.msk [vmem:[%s1039 + $0x34] sm:$0xf] %vm307, %v802
      %v1074 = vld [vmem:[%s1039 + $0x38] sm:$0x1]
      %v1075 = vsel %vm318, %v803, %v1074
      %1076 = vst [vmem:[%s1039 + $0x38] sm:$0x1] %v1075
      %v1077 = vld [vmem:[%s1039 + $0x3c] sm:$0xf]
      %v1078 = vsel %vm1041, %v810, %v1077
      %1079 = vst [vmem:[%s1039 + $0x3c] sm:$0xf] %v1078
      %1080 = vst.msk [vmem:[%s1039 + $0x40] sm:$0xf] %vm307, %v819
      %v1081 = vld [vmem:[%s1039 + $0x44] sm:$0x1]
      %v1082 = vsel %vm318, %v820, %v1081
      %1083 = vst [vmem:[%s1039 + $0x44] sm:$0x1] %v1082
      %v1084 = vld [vmem:[%s1039 + $0x48] sm:$0xf]
      %v1085 = vsel %vm1041, %v827, %v1084
      %1086 = vst [vmem:[%s1039 + $0x48] sm:$0xf] %v1085
      %1087 = vst.msk [vmem:[%s1039 + $0x4c] sm:$0xf] %vm307, %v836
      %v1088 = vld [vmem:[%s1039 + $0x50] sm:$0x1]
      %v1089 = vsel %vm318, %v837, %v1088
      %1090 = vst [vmem:[%s1039 + $0x50] sm:$0x1] %v1089
      %v1091 = vld [vmem:[%s1039 + $0x54] sm:$0xf]
      %v1092 = vsel %vm1041, %v844, %v1091
      %1093 = vst [vmem:[%s1039 + $0x54] sm:$0xf] %v1092
      %1094 = vst.msk [vmem:[%s1039 + $0x58] sm:$0xf] %vm307, %v853
      %v1095 = vld [vmem:[%s1039 + $0x5c] sm:$0x1]
      %v1096 = vsel %vm318, %v854, %v1095
      %1097 = vst [vmem:[%s1039 + $0x5c] sm:$0x1] %v1096
      %v1098 = vld [vmem:[%s1039 + $0x60] sm:$0xf]
      %v1099 = vsel %vm1041, %v861, %v1098
      %1100 = vst [vmem:[%s1039 + $0x60] sm:$0xf] %v1099
      %1101 = vst.msk [vmem:[%s1039 + $0x64] sm:$0xf] %vm307, %v870
      %v1102 = vld [vmem:[%s1039 + $0x68] sm:$0x1]
      %v1103 = vsel %vm318, %v871, %v1102
      %1104 = vst [vmem:[%s1039 + $0x68] sm:$0x1] %v1103
      %v1105 = vld [vmem:[%s1039 + $0x6c] sm:$0xf]
      %v1106 = vsel %vm1041, %v878, %v1105
      %1107 = vst [vmem:[%s1039 + $0x6c] sm:$0xf] %v1106
      %1108 = vst.msk [vmem:[%s1039 + $0x70] sm:$0xf] %vm307, %v887
      %v1109 = vld [vmem:[%s1039 + $0x74] sm:$0x1]
      %v1110 = vsel %vm318, %v888, %v1109
      %1111 = vst [vmem:[%s1039 + $0x74] sm:$0x1] %v1110
      %v1112 = vld [vmem:[%s1039 + $0x78] sm:$0xf]
      %v1113 = vsel %vm1041, %v895, %v1112
      %1114 = vst [vmem:[%s1039 + $0x78] sm:$0xf] %v1113
      %1115 = vst.msk [vmem:[%s1039 + $0x7c] sm:$0xf] %vm307, %v904
      %v1116 = vld [vmem:[%s1039 + $0x80] sm:$0x1]
      %v1117 = vsel %vm318, %v905, %v1116
      %1118 = vst [vmem:[%s1039 + $0x80] sm:$0x1] %v1117
      %v1119 = vld [vmem:[%s1039 + $0x84] sm:$0xf]
      %v1120 = vsel %vm1041, %v912, %v1119
      %1121 = vst [vmem:[%s1039 + $0x84] sm:$0xf] %v1120
      %1122 = vst.msk [vmem:[%s1039 + $0x88] sm:$0xf] %vm307, %v921
      %v1123 = vld [vmem:[%s1039 + $0x8c] sm:$0x1]
      %v1124 = vsel %vm318, %v922, %v1123
      %1125 = vst [vmem:[%s1039 + $0x8c] sm:$0x1] %v1124
      %v1126 = vld [vmem:[%s1039 + $0x90] sm:$0xf]
      %v1127 = vsel %vm1041, %v929, %v1126
      %1128 = vst [vmem:[%s1039 + $0x90] sm:$0xf] %v1127
      %1129 = vst.msk [vmem:[%s1039 + $0x94] sm:$0xf] %vm307, %v938
      %v1130 = vld [vmem:[%s1039 + $0x98] sm:$0x1]
      %v1131 = vsel %vm318, %v939, %v1130
      %1132 = vst [vmem:[%s1039 + $0x98] sm:$0x1] %v1131
      %v1133 = vld [vmem:[%s1039 + $0x9c] sm:$0xf]
      %v1134 = vsel %vm1041, %v946, %v1133
      %1135 = vst [vmem:[%s1039 + $0x9c] sm:$0xf] %v1134
      %1136 = vst.msk [vmem:[%s1039 + $0xa0] sm:$0xf] %vm307, %v955
      %v1137 = vld [vmem:[%s1039 + $0xa4] sm:$0x1]
      %v1138 = vsel %vm318, %v956, %v1137
      %1139 = vst [vmem:[%s1039 + $0xa4] sm:$0x1] %v1138
      %v1140 = vld [vmem:[%s1039 + $0xa8] sm:$0xf]
      %v1141 = vsel %vm1041, %v963, %v1140
      %1142 = vst [vmem:[%s1039 + $0xa8] sm:$0xf] %v1141
      %1143 = vst.msk [vmem:[%s1039 + $0xac] sm:$0xf] %vm307, %v972
      %v1144 = vld [vmem:[%s1039 + $0xb0] sm:$0x1]
      %v1145 = vsel %vm318, %v973, %v1144
      %1146 = vst [vmem:[%s1039 + $0xb0] sm:$0x1] %v1145
      %v1147 = vld [vmem:[%s1039 + $0xb4] sm:$0xf]
      %v1148 = vsel %vm1041, %v980, %v1147
      %1149 = vst [vmem:[%s1039 + $0xb4] sm:$0xf] %v1148
      %1150 = vst.msk [vmem:[%s1039 + $0xb8] sm:$0xf] %vm307, %v989
      %v1151 = vld [vmem:[%s1039 + $0xbc] sm:$0x1]
      %v1152 = vsel %vm318, %v990, %v1151
      %1153 = vst [vmem:[%s1039 + $0xbc] sm:$0x1] %v1152
      %v1154 = vld [vmem:[#allocation2] sm:$0xf]
      %v1155 = vld [vmem:[#allocation2 + $0x4] sm:$0xf]
      %v1156 = vld [vmem:[#allocation2 + $0xc] sm:$0xf]
      %v1157 = vld [vmem:[#allocation2 + $0x10] sm:$0xf]
      %v1158 = vld [vmem:[#allocation2 + $0x18] sm:$0xf]
      %v1159 = vld [vmem:[#allocation2 + $0x1c] sm:$0xf]
      %v1160 = vld [vmem:[#allocation2 + $0x24] sm:$0xf]
      %v1161 = vld [vmem:[#allocation2 + $0x28] sm:$0xf]
      %v1162 = vld [vmem:[#allocation2 + $0x30] sm:$0xf]
      %v1163 = vld [vmem:[#allocation2 + $0x34] sm:$0xf]
      %v1164 = vld [vmem:[#allocation2 + $0x3c] sm:$0xf]
      %v1165 = vld [vmem:[#allocation2 + $0x40] sm:$0xf]
      %v1166 = vld [vmem:[#allocation2 + $0x48] sm:$0xf]
      %v1167 = vld [vmem:[#allocation2 + $0x4c] sm:$0xf]
      %v1168 = vld [vmem:[#allocation2 + $0x54] sm:$0xf]
      %v1169 = vld [vmem:[#allocation2 + $0x58] sm:$0xf]
      %v1170 = vld [vmem:[#allocation2 + $0x60] sm:$0xf]
      %v1171 = vld [vmem:[#allocation2 + $0x64] sm:$0xf]
      %v1172 = vld [vmem:[#allocation2 + $0x6c] sm:$0xf]
      %v1173 = vld [vmem:[#allocation2 + $0x70] sm:$0xf]
      %v1174 = vld [vmem:[#allocation2 + $0x78] sm:$0xf]
      %v1175 = vld [vmem:[#allocation2 + $0x7c] sm:$0xf]
      %v1176 = vld [vmem:[#allocation2 + $0x84] sm:$0xf]
      %v1177 = vld [vmem:[#allocation2 + $0x88] sm:$0xf]
      %v1178 = vld [vmem:[#allocation2 + $0x90] sm:$0xf]
      %v1179 = vld [vmem:[#allocation2 + $0x94] sm:$0xf]
      %v1180 = vld [vmem:[#allocation2 + $0x9c] sm:$0xf]
      %v1181 = vld [vmem:[#allocation2 + $0xa0] sm:$0xf]
      %v1182 = vld [vmem:[#allocation2 + $0xa8] sm:$0xf]
      %v1183 = vld [vmem:[#allocation2 + $0xac] sm:$0xf]
      %v1184 = vld [vmem:[#allocation2 + $0xb4] sm:$0xf]
      %v1185 = vld [vmem:[#allocation2 + $0xb8] sm:$0xf]
      %v1186 = vld [vmem:[#allocation2 + $0x8] sm:$0x1]
      %v1187 = vld [vmem:[#allocation2 + $0x14] sm:$0x1]
      %v1188 = vld [vmem:[#allocation2 + $0x20] sm:$0x1]
      %v1189 = vld [vmem:[#allocation2 + $0x2c] sm:$0x1]
      %v1190 = vld [vmem:[#allocation2 + $0x38] sm:$0x1]
      %v1191 = vld [vmem:[#allocation2 + $0x44] sm:$0x1]
      %v1192 = vld [vmem:[#allocation2 + $0x50] sm:$0x1]
      %v1193 = vld [vmem:[#allocation2 + $0x5c] sm:$0x1]
      %v1194 = vld [vmem:[#allocation2 + $0x68] sm:$0x1]
      %v1195 = vld [vmem:[#allocation2 + $0x74] sm:$0x1]
      %v1196 = vld [vmem:[#allocation2 + $0x80] sm:$0x1]
      %v1197 = vld [vmem:[#allocation2 + $0x8c] sm:$0x1]
      %v1198 = vld [vmem:[#allocation2 + $0x98] sm:$0x1]
      %v1199 = vld [vmem:[#allocation2 + $0xa4] sm:$0x1]
      %v1200 = vld [vmem:[#allocation2 + $0xb0] sm:$0x1]
      %v1201 = vld [vmem:[#allocation2 + $0xbc] sm:$0x1]
      %v1202 = vld [vmem:[#allocation2] sm:$0xe]
      %v1203 = vld [vmem:[#allocation2 + $0xc] sm:$0xe]
      %v1204 = vld [vmem:[#allocation2 + $0x18] sm:$0xe]
      %v1205 = vld [vmem:[#allocation2 + $0x24] sm:$0xe]
      %v1206 = vld [vmem:[#allocation2 + $0x30] sm:$0xe]
      %v1207 = vld [vmem:[#allocation2 + $0x3c] sm:$0xe]
      %v1208 = vld [vmem:[#allocation2 + $0x48] sm:$0xe]
      %v1209 = vld [vmem:[#allocation2 + $0x54] sm:$0xe]
      %v1210 = vld [vmem:[#allocation2 + $0x60] sm:$0xe]
      %v1211 = vld [vmem:[#allocation2 + $0x6c] sm:$0xe]
      %v1212 = vld [vmem:[#allocation2 + $0x78] sm:$0xe]
      %v1213 = vld [vmem:[#allocation2 + $0x84] sm:$0xe]
      %v1214 = vld [vmem:[#allocation2 + $0x90] sm:$0xe]
      %v1215 = vld [vmem:[#allocation2 + $0x9c] sm:$0xe]
      %v1216 = vld [vmem:[#allocation2 + $0xa8] sm:$0xe]
      %v1217 = vld [vmem:[#allocation2 + $0xb4] sm:$0xe]
      %v1218 = vld [vmem:[%s1039] sm:$0xf]
      %v1219 = vld [vmem:[%s1039 + $0x4] sm:$0xf]
      %v1220 = vld [vmem:[%s1039 + $0xc] sm:$0xf]
      %v1221 = vld [vmem:[%s1039 + $0x10] sm:$0xf]
      %v1222 = vld [vmem:[%s1039 + $0x18] sm:$0xf]
      %v1223 = vld [vmem:[%s1039 + $0x1c] sm:$0xf]
      %v1224 = vld [vmem:[%s1039 + $0x24] sm:$0xf]
      %v1225 = vld [vmem:[%s1039 + $0x28] sm:$0xf]
      %v1226 = vld [vmem:[%s1039 + $0x30] sm:$0xf]
      %v1227 = vld [vmem:[%s1039 + $0x34] sm:$0xf]
      %v1228 = vld [vmem:[%s1039 + $0x3c] sm:$0xf]
      %v1229 = vld [vmem:[%s1039 + $0x40] sm:$0xf]
      %v1230 = vld [vmem:[%s1039 + $0x48] sm:$0xf]
      %v1231 = vld [vmem:[%s1039 + $0x4c] sm:$0xf]
      %v1232 = vld [vmem:[%s1039 + $0x54] sm:$0xf]
      %v1233 = vld [vmem:[%s1039 + $0x58] sm:$0xf]
      %v1234 = vld [vmem:[%s1039 + $0x60] sm:$0xf]
      %v1235 = vld [vmem:[%s1039 + $0x64] sm:$0xf]
      %v1236 = vld [vmem:[%s1039 + $0x6c] sm:$0xf]
      %v1237 = vld [vmem:[%s1039 + $0x70] sm:$0xf]
      %v1238 = vld [vmem:[%s1039 + $0x78] sm:$0xf]
      %v1239 = vld [vmem:[%s1039 + $0x7c] sm:$0xf]
      %v1240 = vld [vmem:[%s1039 + $0x84] sm:$0xf]
      %v1241 = vld [vmem:[%s1039 + $0x88] sm:$0xf]
      %v1242 = vld [vmem:[%s1039 + $0x90] sm:$0xf]
      %v1243 = vld [vmem:[%s1039 + $0x94] sm:$0xf]
      %v1244 = vld [vmem:[%s1039 + $0x9c] sm:$0xf]
      %v1245 = vld [vmem:[%s1039 + $0xa0] sm:$0xf]
      %v1246 = vld [vmem:[%s1039 + $0xa8] sm:$0xf]
      %v1247 = vld [vmem:[%s1039 + $0xac] sm:$0xf]
      %v1248 = vld [vmem:[%s1039 + $0xb4] sm:$0xf]
      %v1249 = vld [vmem:[%s1039 + $0xb8] sm:$0xf]
      %v1250 = vld [vmem:[%s1039 + $0x8] sm:$0x1]
      %v1251 = vld [vmem:[%s1039 + $0x14] sm:$0x1]
      %v1252 = vld [vmem:[%s1039 + $0x20] sm:$0x1]
      %v1253 = vld [vmem:[%s1039 + $0x2c] sm:$0x1]
      %v1254 = vld [vmem:[%s1039 + $0x38] sm:$0x1]
      %v1255 = vld [vmem:[%s1039 + $0x44] sm:$0x1]
      %v1256 = vld [vmem:[%s1039 + $0x50] sm:$0x1]
      %v1257 = vld [vmem:[%s1039 + $0x5c] sm:$0x1]
      %v1258 = vld [vmem:[%s1039 + $0x68] sm:$0x1]
      %v1259 = vld [vmem:[%s1039 + $0x74] sm:$0x1]
      %v1260 = vld [vmem:[%s1039 + $0x80] sm:$0x1]
      %v1261 = vld [vmem:[%s1039 + $0x8c] sm:$0x1]
      %v1262 = vld [vmem:[%s1039 + $0x98] sm:$0x1]
      %v1263 = vld [vmem:[%s1039 + $0xa4] sm:$0x1]
      %v1264 = vld [vmem:[%s1039 + $0xb0] sm:$0x1]
      %v1265 = vld [vmem:[%s1039 + $0xbc] sm:$0x1]
      %v1266 = vld [vmem:[%s1039] sm:$0xe]
      %v1267 = vld [vmem:[%s1039 + $0xc] sm:$0xe]
      %v1268 = vld [vmem:[%s1039 + $0x18] sm:$0xe]
      %v1269 = vld [vmem:[%s1039 + $0x24] sm:$0xe]
      %v1270 = vld [vmem:[%s1039 + $0x30] sm:$0xe]
      %v1271 = vld [vmem:[%s1039 + $0x3c] sm:$0xe]
      %v1272 = vld [vmem:[%s1039 + $0x48] sm:$0xe]
      %v1273 = vld [vmem:[%s1039 + $0x54] sm:$0xe]
      %v1274 = vld [vmem:[%s1039 + $0x60] sm:$0xe]
      %v1275 = vld [vmem:[%s1039 + $0x6c] sm:$0xe]
      %v1276 = vld [vmem:[%s1039 + $0x78] sm:$0xe]
      %v1277 = vld [vmem:[%s1039 + $0x84] sm:$0xe]
      %v1278 = vld [vmem:[%s1039 + $0x90] sm:$0xe]
      %v1279 = vld [vmem:[%s1039 + $0x9c] sm:$0xe]
      %v1280 = vld [vmem:[%s1039 + $0xa8] sm:$0xe]
      %v1281 = vld [vmem:[%s1039 + $0xb4] sm:$0xe]
      %s1282 = scalar_lea.vmem [#allocation2], 24
      %v1283 = vld [vmem:[%s1282] sm:$0xf]
      %v1284 = vld [vmem:[%s1282 + $0x4] sm:$0xf]
      %v1285 = vld [vmem:[%s1282 + $0xc] sm:$0xf]
      %v1286 = vld [vmem:[%s1282 + $0x10] sm:$0xf]
      %v1287 = vld [vmem:[%s1282 + $0x18] sm:$0xf]
      %v1288 = vld [vmem:[%s1282 + $0x1c] sm:$0xf]
      %v1289 = vld [vmem:[%s1282 + $0x24] sm:$0xf]
      %v1290 = vld [vmem:[%s1282 + $0x28] sm:$0xf]
      %v1291 = vld [vmem:[%s1282 + $0x30] sm:$0xf]
      %v1292 = vld [vmem:[%s1282 + $0x34] sm:$0xf]
      %v1293 = vld [vmem:[%s1282 + $0x3c] sm:$0xf]
      %v1294 = vld [vmem:[%s1282 + $0x40] sm:$0xf]
      %v1295 = vld [vmem:[%s1282 + $0x48] sm:$0xf]
      %v1296 = vld [vmem:[%s1282 + $0x4c] sm:$0xf]
      %v1297 = vld [vmem:[%s1282 + $0x54] sm:$0xf]
      %v1298 = vld [vmem:[%s1282 + $0x58] sm:$0xf]
      %v1299 = vld [vmem:[%s1282 + $0x60] sm:$0xf]
      %v1300 = vld [vmem:[%s1282 + $0x64] sm:$0xf]
      %v1301 = vld [vmem:[%s1282 + $0x6c] sm:$0xf]
      %v1302 = vld [vmem:[%s1282 + $0x70] sm:$0xf]
      %v1303 = vld [vmem:[%s1282 + $0x78] sm:$0xf]
      %v1304 = vld [vmem:[%s1282 + $0x7c] sm:$0xf]
      %v1305 = vld [vmem:[%s1282 + $0x84] sm:$0xf]
      %v1306 = vld [vmem:[%s1282 + $0x88] sm:$0xf]
      %v1307 = vld [vmem:[%s1282 + $0x90] sm:$0xf]
      %v1308 = vld [vmem:[%s1282 + $0x94] sm:$0xf]
      %v1309 = vld [vmem:[%s1282 + $0x9c] sm:$0xf]
      %v1310 = vld [vmem:[%s1282 + $0xa0] sm:$0xf]
      %v1311 = vld [vmem:[%s1282 + $0xa8] sm:$0xf]
      %v1312 = vld [vmem:[%s1282 + $0xac] sm:$0xf]
      %v1313 = vld [vmem:[%s1282 + $0xb4] sm:$0xf]
      %v1314 = vld [vmem:[%s1282 + $0xb8] sm:$0xf]
      %v1315 = vld [vmem:[%s1282 + $0x8] sm:$0x1]
      %v1316 = vld [vmem:[%s1282 + $0x14] sm:$0x1]
      %v1317 = vld [vmem:[%s1282 + $0x20] sm:$0x1]
      %v1318 = vld [vmem:[%s1282 + $0x2c] sm:$0x1]
      %v1319 = vld [vmem:[%s1282 + $0x38] sm:$0x1]
      %v1320 = vld [vmem:[%s1282 + $0x44] sm:$0x1]
      %v1321 = vld [vmem:[%s1282 + $0x50] sm:$0x1]
      %v1322 = vld [vmem:[%s1282 + $0x5c] sm:$0x1]
      %v1323 = vld [vmem:[%s1282 + $0x68] sm:$0x1]
      %v1324 = vld [vmem:[%s1282 + $0x74] sm:$0x1]
      %v1325 = vld [vmem:[%s1282 + $0x80] sm:$0x1]
      %v1326 = vld [vmem:[%s1282 + $0x8c] sm:$0x1]
      %v1327 = vld [vmem:[%s1282 + $0x98] sm:$0x1]
      %v1328 = vld [vmem:[%s1282 + $0xa4] sm:$0x1]
      %v1329 = vld [vmem:[%s1282 + $0xb0] sm:$0x1]
      %v1330 = vld [vmem:[%s1282 + $0xbc] sm:$0x1]
      %v1331 = vld [vmem:[%s1282] sm:$0xe]
      %v1332 = vld [vmem:[%s1282 + $0xc] sm:$0xe]
      %v1333 = vld [vmem:[%s1282 + $0x18] sm:$0xe]
      %v1334 = vld [vmem:[%s1282 + $0x24] sm:$0xe]
      %v1335 = vld [vmem:[%s1282 + $0x30] sm:$0xe]
      %v1336 = vld [vmem:[%s1282 + $0x3c] sm:$0xe]
      %v1337 = vld [vmem:[%s1282 + $0x48] sm:$0xe]
      %v1338 = vld [vmem:[%s1282 + $0x54] sm:$0xe]
      %v1339 = vld [vmem:[%s1282 + $0x60] sm:$0xe]
      %v1340 = vld [vmem:[%s1282 + $0x6c] sm:$0xe]
      %v1341 = vld [vmem:[%s1282 + $0x78] sm:$0xe]
      %v1342 = vld [vmem:[%s1282 + $0x84] sm:$0xe]
      %v1343 = vld [vmem:[%s1282 + $0x90] sm:$0xe]
      %v1344 = vld [vmem:[%s1282 + $0x9c] sm:$0xe]
      %v1345 = vld [vmem:[%s1282 + $0xa8] sm:$0xe]
      %v1346 = vld [vmem:[%s1282 + $0xb4] sm:$0xe]
      %v1379 = vunpack.c.l.b16 %v1154
      %v1380 = vunpack.c.l.b16 %v1155
      %v1381 = vunpack.c.l.b16 %v1156
      %v1382 = vunpack.c.l.b16 %v1157
      %v1383 = vunpack.c.l.b16 %v1158
      %v1384 = vunpack.c.l.b16 %v1159
      %v1385 = vunpack.c.l.b16 %v1160
      %v1386 = vunpack.c.l.b16 %v1161
      %v1387 = vunpack.c.l.b16 %v1162
      %v1388 = vunpack.c.l.b16 %v1163
      %v1389 = vunpack.c.l.b16 %v1164
      %v1390 = vunpack.c.l.b16 %v1165
      %v1391 = vunpack.c.l.b16 %v1166
      %v1392 = vunpack.c.l.b16 %v1167
      %v1393 = vunpack.c.l.b16 %v1168
      %v1394 = vunpack.c.l.b16 %v1169
      %v1395 = vunpack.c.l.b16 %v1170
      %v1396 = vunpack.c.l.b16 %v1171
      %v1397 = vunpack.c.l.b16 %v1172
      %v1398 = vunpack.c.l.b16 %v1173
      %v1399 = vunpack.c.l.b16 %v1174
      %v1400 = vunpack.c.l.b16 %v1175
      %v1401 = vunpack.c.l.b16 %v1176
      %v1402 = vunpack.c.l.b16 %v1177
      %v1403 = vunpack.c.l.b16 %v1178
      %v1404 = vunpack.c.l.b16 %v1179
      %v1405 = vunpack.c.l.b16 %v1180
      %v1406 = vunpack.c.l.b16 %v1181
      %v1407 = vunpack.c.l.b16 %v1182
      %v1408 = vunpack.c.l.b16 %v1183
      %v1409 = vunpack.c.l.b16 %v1184
      %v1410 = vunpack.c.l.b16 %v1185
      %v1411 = vpack.c.b16 %v1380, %v1379
      %v1412 = vpack.c.b16 %v1382, %v1381
      %v1413 = vpack.c.b16 %v1384, %v1383
      %v1414 = vpack.c.b16 %v1386, %v1385
      %v1415 = vpack.c.b16 %v1388, %v1387
      %v1416 = vpack.c.b16 %v1390, %v1389
      %v1417 = vpack.c.b16 %v1392, %v1391
      %v1418 = vpack.c.b16 %v1394, %v1393
      %v1419 = vpack.c.b16 %v1396, %v1395
      %v1420 = vpack.c.b16 %v1398, %v1397
      %v1421 = vpack.c.b16 %v1400, %v1399
      %v1422 = vpack.c.b16 %v1402, %v1401
      %v1423 = vpack.c.b16 %v1404, %v1403
      %v1424 = vpack.c.b16 %v1406, %v1405
      %v1425 = vpack.c.b16 %v1408, %v1407
      %v1426 = vpack.c.b16 %v1410, %v1409
      %v1443 = vunpack.c.l.b16 %v1186
      %v1444 = vunpack.c.l.b16 %v1187
      %v1445 = vunpack.c.l.b16 %v1188
      %v1446 = vunpack.c.l.b16 %v1189
      %v1447 = vunpack.c.l.b16 %v1190
      %v1448 = vunpack.c.l.b16 %v1191
      %v1449 = vunpack.c.l.b16 %v1192
      %v1450 = vunpack.c.l.b16 %v1193
      %v1451 = vunpack.c.l.b16 %v1194
      %v1452 = vunpack.c.l.b16 %v1195
      %v1453 = vunpack.c.l.b16 %v1196
      %v1454 = vunpack.c.l.b16 %v1197
      %v1455 = vunpack.c.l.b16 %v1198
      %v1456 = vunpack.c.l.b16 %v1199
      %v1457 = vunpack.c.l.b16 %v1200
      %v1458 = vunpack.c.l.b16 %v1201
      %v1459 = vpack.c.b16 %v1443, %v1443
      %v1460 = vpack.c.b16 %v1444, %v1444
      %v1461 = vpack.c.b16 %v1445, %v1445
      %v1462 = vpack.c.b16 %v1446, %v1446
      %v1463 = vpack.c.b16 %v1447, %v1447
      %v1464 = vpack.c.b16 %v1448, %v1448
      %v1465 = vpack.c.b16 %v1449, %v1449
      %v1466 = vpack.c.b16 %v1450, %v1450
      %v1467 = vpack.c.b16 %v1451, %v1451
      %v1468 = vpack.c.b16 %v1452, %v1452
      %v1469 = vpack.c.b16 %v1453, %v1453
      %v1470 = vpack.c.b16 %v1454, %v1454
      %v1471 = vpack.c.b16 %v1455, %v1455
      %v1472 = vpack.c.b16 %v1456, %v1456
      %v1473 = vpack.c.b16 %v1457, %v1457
      %v1474 = vpack.c.b16 %v1458, %v1458
      %vm1475 = vsmask.f32 7424
      %v1477 = vshrl.u32 %v1411, 16
      %v1479 = vshll.u32 %v1411, 16
      %v1481 = vrot.slane %v1479, 1
      %v1482 = vor.u32 %v1477, %v1481
      %v1484 = vshll.u32 %v1459, 16
      %v1486 = vrot.slane %v1484, 1
      %v1487 = vsel %vm1475, %v1482, %v1486
      %v1489 = vshrl.u32 %v1412, 16
      %v1491 = vshll.u32 %v1412, 16
      %v1493 = vrot.slane %v1491, 1
      %v1494 = vor.u32 %v1489, %v1493
      %v1496 = vshll.u32 %v1460, 16
      %v1498 = vrot.slane %v1496, 1
      %v1499 = vsel %vm1475, %v1494, %v1498
      %v1501 = vshrl.u32 %v1413, 16
      %v1503 = vshll.u32 %v1413, 16
      %v1505 = vrot.slane %v1503, 1
      %v1506 = vor.u32 %v1501, %v1505
      %v1508 = vshll.u32 %v1461, 16
      %v1510 = vrot.slane %v1508, 1
      %v1511 = vsel %vm1475, %v1506, %v1510
      %v1513 = vshrl.u32 %v1414, 16
      %v1515 = vshll.u32 %v1414, 16
      %v1517 = vrot.slane %v1515, 1
      %v1518 = vor.u32 %v1513, %v1517
      %v1520 = vshll.u32 %v1462, 16
      %v1522 = vrot.slane %v1520, 1
      %v1523 = vsel %vm1475, %v1518, %v1522
      %v1525 = vshrl.u32 %v1415, 16
      %v1527 = vshll.u32 %v1415, 16
      %v1529 = vrot.slane %v1527, 1
      %v1530 = vor.u32 %v1525, %v1529
      %v1532 = vshll.u32 %v1463, 16
      %v1534 = vrot.slane %v1532, 1
      %v1535 = vsel %vm1475, %v1530, %v1534
      %v1537 = vshrl.u32 %v1416, 16
      %v1539 = vshll.u32 %v1416, 16
      %v1541 = vrot.slane %v1539, 1
      %v1542 = vor.u32 %v1537, %v1541
      %v1544 = vshll.u32 %v1464, 16
      %v1546 = vrot.slane %v1544, 1
      %v1547 = vsel %vm1475, %v1542, %v1546
      %v1549 = vshrl.u32 %v1417, 16
      %v1551 = vshll.u32 %v1417, 16
      %v1553 = vrot.slane %v1551, 1
      %v1554 = vor.u32 %v1549, %v1553
      %v1556 = vshll.u32 %v1465, 16
      %v1558 = vrot.slane %v1556, 1
      %v1559 = vsel %vm1475, %v1554, %v1558
      %v1561 = vshrl.u32 %v1418, 16
      %v1563 = vshll.u32 %v1418, 16
      %v1565 = vrot.slane %v1563, 1
      %v1566 = vor.u32 %v1561, %v1565
      %v1568 = vshll.u32 %v1466, 16
      %v1570 = vrot.slane %v1568, 1
      %v1571 = vsel %vm1475, %v1566, %v1570
      %v1573 = vshrl.u32 %v1419, 16
      %v1575 = vshll.u32 %v1419, 16
      %v1577 = vrot.slane %v1575, 1
      %v1578 = vor.u32 %v1573, %v1577
      %v1580 = vshll.u32 %v1467, 16
      %v1582 = vrot.slane %v1580, 1
      %v1583 = vsel %vm1475, %v1578, %v1582
      %v1585 = vshrl.u32 %v1420, 16
      %v1587 = vshll.u32 %v1420, 16
      %v1589 = vrot.slane %v1587, 1
      %v1590 = vor.u32 %v1585, %v1589
      %v1592 = vshll.u32 %v1468, 16
      %v1594 = vrot.slane %v1592, 1
      %v1595 = vsel %vm1475, %v1590, %v1594
      %v1597 = vshrl.u32 %v1421, 16
      %v1599 = vshll.u32 %v1421, 16
      %v1601 = vrot.slane %v1599, 1
      %v1602 = vor.u32 %v1597, %v1601
      %v1604 = vshll.u32 %v1469, 16
      %v1606 = vrot.slane %v1604, 1
      %v1607 = vsel %vm1475, %v1602, %v1606
      %v1609 = vshrl.u32 %v1422, 16
      %v1611 = vshll.u32 %v1422, 16
      %v1613 = vrot.slane %v1611, 1
      %v1614 = vor.u32 %v1609, %v1613
      %v1616 = vshll.u32 %v1470, 16
      %v1618 = vrot.slane %v1616, 1
      %v1619 = vsel %vm1475, %v1614, %v1618
      %v1621 = vshrl.u32 %v1423, 16
      %v1623 = vshll.u32 %v1423, 16
      %v1625 = vrot.slane %v1623, 1
      %v1626 = vor.u32 %v1621, %v1625
      %v1628 = vshll.u32 %v1471, 16
      %v1630 = vrot.slane %v1628, 1
      %v1631 = vsel %vm1475, %v1626, %v1630
      %v1633 = vshrl.u32 %v1424, 16
      %v1635 = vshll.u32 %v1424, 16
      %v1637 = vrot.slane %v1635, 1
      %v1638 = vor.u32 %v1633, %v1637
      %v1640 = vshll.u32 %v1472, 16
      %v1642 = vrot.slane %v1640, 1
      %v1643 = vsel %vm1475, %v1638, %v1642
      %v1645 = vshrl.u32 %v1425, 16
      %v1647 = vshll.u32 %v1425, 16
      %v1649 = vrot.slane %v1647, 1
      %v1650 = vor.u32 %v1645, %v1649
      %v1652 = vshll.u32 %v1473, 16
      %v1654 = vrot.slane %v1652, 1
      %v1655 = vsel %vm1475, %v1650, %v1654
      %v1657 = vshrl.u32 %v1426, 16
      %v1659 = vshll.u32 %v1426, 16
      %v1661 = vrot.slane %v1659, 1
      %v1662 = vor.u32 %v1657, %v1661
      %v1664 = vshll.u32 %v1474, 16
      %v1666 = vrot.slane %v1664, 1
      %v1667 = vsel %vm1475, %v1662, %v1666
      %1668 = vrot.lane.b32.xlu0 %v1487, 4
      %v1669 = vpop.permute.xlu0 %1668
      %1670 = vrot.lane.b32.xlu0 %v1499, 4
      %v1671 = vpop.permute.xlu0 %1670
      %1672 = vrot.lane.b32.xlu0 %v1511, 4
      %v1673 = vpop.permute.xlu0 %1672
      %1674 = vrot.lane.b32.xlu0 %v1523, 4
      %v1675 = vpop.permute.xlu0 %1674
      %1676 = vrot.lane.b32.xlu0 %v1535, 4
      %v1677 = vpop.permute.xlu0 %1676
      %1678 = vrot.lane.b32.xlu0 %v1547, 4
      %v1679 = vpop.permute.xlu0 %1678
      %1680 = vrot.lane.b32.xlu0 %v1559, 4
      %v1681 = vpop.permute.xlu0 %1680
      %1682 = vrot.lane.b32.xlu0 %v1571, 4
      %v1683 = vpop.permute.xlu0 %1682
      %1684 = vrot.lane.b32.xlu0 %v1583, 4
      %v1685 = vpop.permute.xlu0 %1684
      %1686 = vrot.lane.b32.xlu0 %v1595, 4
      %v1687 = vpop.permute.xlu0 %1686
      %1688 = vrot.lane.b32.xlu0 %v1607, 4
      %v1689 = vpop.permute.xlu0 %1688
      %1690 = vrot.lane.b32.xlu0 %v1619, 4
      %v1691 = vpop.permute.xlu0 %1690
      %1692 = vrot.lane.b32.xlu0 %v1631, 4
      %v1693 = vpop.permute.xlu0 %1692
      %1694 = vrot.lane.b32.xlu0 %v1643, 4
      %v1695 = vpop.permute.xlu0 %1694
      %1696 = vrot.lane.b32.xlu0 %v1655, 4
      %v1697 = vpop.permute.xlu0 %1696
      %1698 = vrot.lane.b32.xlu0 %v1667, 4
      %v1699 = vpop.permute.xlu0 %1698
      %v1716 = vunpack.c.l.b16 %v1202
      %v1717 = vunpack.c.l.b16 %v1203
      %v1718 = vunpack.c.l.b16 %v1204
      %v1719 = vunpack.c.l.b16 %v1205
      %v1720 = vunpack.c.l.b16 %v1206
      %v1721 = vunpack.c.l.b16 %v1207
      %v1722 = vunpack.c.l.b16 %v1208
      %v1723 = vunpack.c.l.b16 %v1209
      %v1724 = vunpack.c.l.b16 %v1210
      %v1725 = vunpack.c.l.b16 %v1211
      %v1726 = vunpack.c.l.b16 %v1212
      %v1727 = vunpack.c.l.b16 %v1213
      %v1728 = vunpack.c.l.b16 %v1214
      %v1729 = vunpack.c.l.b16 %v1215
      %v1730 = vunpack.c.l.b16 %v1216
      %v1731 = vunpack.c.l.b16 %v1217
      %v1732 = vpack.c.b16 %v1380, %v1716
      %v1733 = vpack.c.b16 %v1382, %v1717
      %v1734 = vpack.c.b16 %v1384, %v1718
      %v1735 = vpack.c.b16 %v1386, %v1719
      %v1736 = vpack.c.b16 %v1388, %v1720
      %v1737 = vpack.c.b16 %v1390, %v1721
      %v1738 = vpack.c.b16 %v1392, %v1722
      %v1739 = vpack.c.b16 %v1394, %v1723
      %v1740 = vpack.c.b16 %v1396, %v1724
      %v1741 = vpack.c.b16 %v1398, %v1725
      %v1742 = vpack.c.b16 %v1400, %v1726
      %v1743 = vpack.c.b16 %v1402, %v1727
      %v1744 = vpack.c.b16 %v1404, %v1728
      %v1745 = vpack.c.b16 %v1406, %v1729
      %v1746 = vpack.c.b16 %v1408, %v1730
      %v1747 = vpack.c.b16 %v1410, %v1731
      %vm1748 = vcmask 1046528
      %v1749 = vrot.slane %v1732, 1
      %v1750 = vrot.slane %v1459, 1
      %v1751 = vsel %vm1748, %v1749, %v1750
      %v1752 = vrot.slane %v1733, 1
      %v1753 = vrot.slane %v1460, 1
      %v1754 = vsel %vm1748, %v1752, %v1753
      %v1755 = vrot.slane %v1734, 1
      %v1756 = vrot.slane %v1461, 1
      %v1757 = vsel %vm1748, %v1755, %v1756
      %v1758 = vrot.slane %v1735, 1
      %v1759 = vrot.slane %v1462, 1
      %v1760 = vsel %vm1748, %v1758, %v1759
      %v1761 = vrot.slane %v1736, 1
      %v1762 = vrot.slane %v1463, 1
      %v1763 = vsel %vm1748, %v1761, %v1762
      %v1764 = vrot.slane %v1737, 1
      %v1765 = vrot.slane %v1464, 1
      %v1766 = vsel %vm1748, %v1764, %v1765
      %v1767 = vrot.slane %v1738, 1
      %v1768 = vrot.slane %v1465, 1
      %v1769 = vsel %vm1748, %v1767, %v1768
      %v1770 = vrot.slane %v1739, 1
      %v1771 = vrot.slane %v1466, 1
      %v1772 = vsel %vm1748, %v1770, %v1771
      %v1773 = vrot.slane %v1740, 1
      %v1774 = vrot.slane %v1467, 1
      %v1775 = vsel %vm1748, %v1773, %v1774
      %v1776 = vrot.slane %v1741, 1
      %v1777 = vrot.slane %v1468, 1
      %v1778 = vsel %vm1748, %v1776, %v1777
      %v1779 = vrot.slane %v1742, 1
      %v1780 = vrot.slane %v1469, 1
      %v1781 = vsel %vm1748, %v1779, %v1780
      %v1782 = vrot.slane %v1743, 1
      %v1783 = vrot.slane %v1470, 1
      %v1784 = vsel %vm1748, %v1782, %v1783
      %v1785 = vrot.slane %v1744, 1
      %v1786 = vrot.slane %v1471, 1
      %v1787 = vsel %vm1748, %v1785, %v1786
      %v1788 = vrot.slane %v1745, 1
      %v1789 = vrot.slane %v1472, 1
      %v1790 = vsel %vm1748, %v1788, %v1789
      %v1791 = vrot.slane %v1746, 1
      %v1792 = vrot.slane %v1473, 1
      %v1793 = vsel %vm1748, %v1791, %v1792
      %v1794 = vrot.slane %v1747, 1
      %v1795 = vrot.slane %v1474, 1
      %v1796 = vsel %vm1748, %v1794, %v1795
      %1797 = vrot.lane.b32.xlu0 %v1751, 8
      %v1798 = vpop.permute.xlu0 %1797
      %1799 = vrot.lane.b32.xlu0 %v1754, 8
      %v1800 = vpop.permute.xlu0 %1799
      %1801 = vrot.lane.b32.xlu0 %v1757, 8
      %v1802 = vpop.permute.xlu0 %1801
      %1803 = vrot.lane.b32.xlu0 %v1760, 8
      %v1804 = vpop.permute.xlu0 %1803
      %1805 = vrot.lane.b32.xlu0 %v1763, 8
      %v1806 = vpop.permute.xlu0 %1805
      %1807 = vrot.lane.b32.xlu0 %v1766, 8
      %v1808 = vpop.permute.xlu0 %1807
      %1809 = vrot.lane.b32.xlu0 %v1769, 8
      %v1810 = vpop.permute.xlu0 %1809
      %1811 = vrot.lane.b32.xlu0 %v1772, 8
      %v1812 = vpop.permute.xlu0 %1811
      %1813 = vrot.lane.b32.xlu0 %v1775, 8
      %v1814 = vpop.permute.xlu0 %1813
      %1815 = vrot.lane.b32.xlu0 %v1778, 8
      %v1816 = vpop.permute.xlu0 %1815
      %1817 = vrot.lane.b32.xlu0 %v1781, 8
      %v1818 = vpop.permute.xlu0 %1817
      %1819 = vrot.lane.b32.xlu0 %v1784, 8
      %v1820 = vpop.permute.xlu0 %1819
      %1821 = vrot.lane.b32.xlu0 %v1787, 8
      %v1822 = vpop.permute.xlu0 %1821
      %1823 = vrot.lane.b32.xlu0 %v1790, 8
      %v1824 = vpop.permute.xlu0 %1823
      %1825 = vrot.lane.b32.xlu0 %v1793, 8
      %v1826 = vpop.permute.xlu0 %1825
      %1827 = vrot.lane.b32.xlu0 %v1796, 8
      %v1828 = vpop.permute.xlu0 %1827
      %v1861 = vunpack.c.l.b16 %v1218
      %v1862 = vunpack.c.l.b16 %v1219
      %v1863 = vunpack.c.l.b16 %v1220
      %v1864 = vunpack.c.l.b16 %v1221
      %v1865 = vunpack.c.l.b16 %v1222
      %v1866 = vunpack.c.l.b16 %v1223
      %v1867 = vunpack.c.l.b16 %v1224
      %v1868 = vunpack.c.l.b16 %v1225
      %v1869 = vunpack.c.l.b16 %v1226
      %v1870 = vunpack.c.l.b16 %v1227
      %v1871 = vunpack.c.l.b16 %v1228
      %v1872 = vunpack.c.l.b16 %v1229
      %v1873 = vunpack.c.l.b16 %v1230
      %v1874 = vunpack.c.l.b16 %v1231
      %v1875 = vunpack.c.l.b16 %v1232
      %v1876 = vunpack.c.l.b16 %v1233
      %v1877 = vunpack.c.l.b16 %v1234
      %v1878 = vunpack.c.l.b16 %v1235
      %v1879 = vunpack.c.l.b16 %v1236
      %v1880 = vunpack.c.l.b16 %v1237
      %v1881 = vunpack.c.l.b16 %v1238
      %v1882 = vunpack.c.l.b16 %v1239
      %v1883 = vunpack.c.l.b16 %v1240
      %v1884 = vunpack.c.l.b16 %v1241
      %v1885 = vunpack.c.l.b16 %v1242
      %v1886 = vunpack.c.l.b16 %v1243
      %v1887 = vunpack.c.l.b16 %v1244
      %v1888 = vunpack.c.l.b16 %v1245
      %v1889 = vunpack.c.l.b16 %v1246
      %v1890 = vunpack.c.l.b16 %v1247
      %v1891 = vunpack.c.l.b16 %v1248
      %v1892 = vunpack.c.l.b16 %v1249
      %v1893 = vpack.c.b16 %v1862, %v1861
      %v1894 = vpack.c.b16 %v1864, %v1863
      %v1895 = vpack.c.b16 %v1866, %v1865
      %v1896 = vpack.c.b16 %v1868, %v1867
      %v1897 = vpack.c.b16 %v1870, %v1869
      %v1898 = vpack.c.b16 %v1872, %v1871
      %v1899 = vpack.c.b16 %v1874, %v1873
      %v1900 = vpack.c.b16 %v1876, %v1875
      %v1901 = vpack.c.b16 %v1878, %v1877
      %v1902 = vpack.c.b16 %v1880, %v1879
      %v1903 = vpack.c.b16 %v1882, %v1881
      %v1904 = vpack.c.b16 %v1884, %v1883
      %v1905 = vpack.c.b16 %v1886, %v1885
      %v1906 = vpack.c.b16 %v1888, %v1887
      %v1907 = vpack.c.b16 %v1890, %v1889
      %v1908 = vpack.c.b16 %v1892, %v1891
      %1909 = vrot.lane.b32.xlu0 %v1893, 12
      %v1910 = vpop.permute.xlu0 %1909
      %1911 = vrot.lane.b32.xlu0 %v1894, 12
      %v1912 = vpop.permute.xlu0 %1911
      %1913 = vrot.lane.b32.xlu0 %v1895, 12
      %v1914 = vpop.permute.xlu0 %1913
      %1915 = vrot.lane.b32.xlu0 %v1896, 12
      %v1916 = vpop.permute.xlu0 %1915
      %1917 = vrot.lane.b32.xlu0 %v1897, 12
      %v1918 = vpop.permute.xlu0 %1917
      %1919 = vrot.lane.b32.xlu0 %v1898, 12
      %v1920 = vpop.permute.xlu0 %1919
      %1921 = vrot.lane.b32.xlu0 %v1899, 12
      %v1922 = vpop.permute.xlu0 %1921
      %1923 = vrot.lane.b32.xlu0 %v1900, 12
      %v1924 = vpop.permute.xlu0 %1923
      %1925 = vrot.lane.b32.xlu0 %v1901, 12
      %v1926 = vpop.permute.xlu0 %1925
      %1927 = vrot.lane.b32.xlu0 %v1902, 12
      %v1928 = vpop.permute.xlu0 %1927
      %1929 = vrot.lane.b32.xlu0 %v1903, 12
      %v1930 = vpop.permute.xlu0 %1929
      %1931 = vrot.lane.b32.xlu0 %v1904, 12
      %v1932 = vpop.permute.xlu0 %1931
      %1933 = vrot.lane.b32.xlu0 %v1905, 12
      %v1934 = vpop.permute.xlu0 %1933
      %1935 = vrot.lane.b32.xlu0 %v1906, 12
      %v1936 = vpop.permute.xlu0 %1935
      %1937 = vrot.lane.b32.xlu0 %v1907, 12
      %v1938 = vpop.permute.xlu0 %1937
      %1939 = vrot.lane.b32.xlu0 %v1908, 12
      %v1940 = vpop.permute.xlu0 %1939
      %v1957 = vunpack.c.l.b16 %v1250
      %v1958 = vunpack.c.l.b16 %v1251
      %v1959 = vunpack.c.l.b16 %v1252
      %v1960 = vunpack.c.l.b16 %v1253
      %v1961 = vunpack.c.l.b16 %v1254
      %v1962 = vunpack.c.l.b16 %v1255
      %v1963 = vunpack.c.l.b16 %v1256
      %v1964 = vunpack.c.l.b16 %v1257
      %v1965 = vunpack.c.l.b16 %v1258
      %v1966 = vunpack.c.l.b16 %v1259
      %v1967 = vunpack.c.l.b16 %v1260
      %v1968 = vunpack.c.l.b16 %v1261
      %v1969 = vunpack.c.l.b16 %v1262
      %v1970 = vunpack.c.l.b16 %v1263
      %v1971 = vunpack.c.l.b16 %v1264
      %v1972 = vunpack.c.l.b16 %v1265
      %v1973 = vpack.c.b16 %v1957, %v1957
      %v1974 = vpack.c.b16 %v1958, %v1958
      %v1975 = vpack.c.b16 %v1959, %v1959
      %v1976 = vpack.c.b16 %v1960, %v1960
      %v1977 = vpack.c.b16 %v1961, %v1961
      %v1978 = vpack.c.b16 %v1962, %v1962
      %v1979 = vpack.c.b16 %v1963, %v1963
      %v1980 = vpack.c.b16 %v1964, %v1964
      %v1981 = vpack.c.b16 %v1965, %v1965
      %v1982 = vpack.c.b16 %v1966, %v1966
      %v1983 = vpack.c.b16 %v1967, %v1967
      %v1984 = vpack.c.b16 %v1968, %v1968
      %v1985 = vpack.c.b16 %v1969, %v1969
      %v1986 = vpack.c.b16 %v1970, %v1970
      %v1987 = vpack.c.b16 %v1971, %v1971
      %v1988 = vpack.c.b16 %v1972, %v1972
      %v1990 = vshrl.u32 %v1893, 16
      %v1992 = vshll.u32 %v1893, 16
      %v1994 = vrot.slane %v1992, 1
      %v1995 = vor.u32 %v1990, %v1994
      %v1997 = vshll.u32 %v1973, 16
      %v1999 = vrot.slane %v1997, 1
      %v2000 = vsel %vm1475, %v1995, %v1999
      %v2002 = vshrl.u32 %v1894, 16
      %v2004 = vshll.u32 %v1894, 16
      %v2006 = vrot.slane %v2004, 1
      %v2007 = vor.u32 %v2002, %v2006
      %v2009 = vshll.u32 %v1974, 16
      %v2011 = vrot.slane %v2009, 1
      %v2012 = vsel %vm1475, %v2007, %v2011
      %v2014 = vshrl.u32 %v1895, 16
      %v2016 = vshll.u32 %v1895, 16
      %v2018 = vrot.slane %v2016, 1
      %v2019 = vor.u32 %v2014, %v2018
      %v2021 = vshll.u32 %v1975, 16
      %v2023 = vrot.slane %v2021, 1
      %v2024 = vsel %vm1475, %v2019, %v2023
      %v2026 = vshrl.u32 %v1896, 16
      %v2028 = vshll.u32 %v1896, 16
      %v2030 = vrot.slane %v2028, 1
      %v2031 = vor.u32 %v2026, %v2030
      %v2033 = vshll.u32 %v1976, 16
      %v2035 = vrot.slane %v2033, 1
      %v2036 = vsel %vm1475, %v2031, %v2035
      %v2038 = vshrl.u32 %v1897, 16
      %v2040 = vshll.u32 %v1897, 16
      %v2042 = vrot.slane %v2040, 1
      %v2043 = vor.u32 %v2038, %v2042
      %v2045 = vshll.u32 %v1977, 16
      %v2047 = vrot.slane %v2045, 1
      %v2048 = vsel %vm1475, %v2043, %v2047
      %v2050 = vshrl.u32 %v1898, 16
      %v2052 = vshll.u32 %v1898, 16
      %v2054 = vrot.slane %v2052, 1
      %v2055 = vor.u32 %v2050, %v2054
      %v2057 = vshll.u32 %v1978, 16
      %v2059 = vrot.slane %v2057, 1
      %v2060 = vsel %vm1475, %v2055, %v2059
      %v2062 = vshrl.u32 %v1899, 16
      %v2064 = vshll.u32 %v1899, 16
      %v2066 = vrot.slane %v2064, 1
      %v2067 = vor.u32 %v2062, %v2066
      %v2069 = vshll.u32 %v1979, 16
      %v2071 = vrot.slane %v2069, 1
      %v2072 = vsel %vm1475, %v2067, %v2071
      %v2074 = vshrl.u32 %v1900, 16
      %v2076 = vshll.u32 %v1900, 16
      %v2078 = vrot.slane %v2076, 1
      %v2079 = vor.u32 %v2074, %v2078
      %v2081 = vshll.u32 %v1980, 16
      %v2083 = vrot.slane %v2081, 1
      %v2084 = vsel %vm1475, %v2079, %v2083
      %v2086 = vshrl.u32 %v1901, 16
      %v2088 = vshll.u32 %v1901, 16
      %v2090 = vrot.slane %v2088, 1
      %v2091 = vor.u32 %v2086, %v2090
      %v2093 = vshll.u32 %v1981, 16
      %v2095 = vrot.slane %v2093, 1
      %v2096 = vsel %vm1475, %v2091, %v2095
      %v2098 = vshrl.u32 %v1902, 16
      %v2100 = vshll.u32 %v1902, 16
      %v2102 = vrot.slane %v2100, 1
      %v2103 = vor.u32 %v2098, %v2102
      %v2105 = vshll.u32 %v1982, 16
      %v2107 = vrot.slane %v2105, 1
      %v2108 = vsel %vm1475, %v2103, %v2107
      %v2110 = vshrl.u32 %v1903, 16
      %v2112 = vshll.u32 %v1903, 16
      %v2114 = vrot.slane %v2112, 1
      %v2115 = vor.u32 %v2110, %v2114
      %v2117 = vshll.u32 %v1983, 16
      %v2119 = vrot.slane %v2117, 1
      %v2120 = vsel %vm1475, %v2115, %v2119
      %v2122 = vshrl.u32 %v1904, 16
      %v2124 = vshll.u32 %v1904, 16
      %v2126 = vrot.slane %v2124, 1
      %v2127 = vor.u32 %v2122, %v2126
      %v2129 = vshll.u32 %v1984, 16
      %v2131 = vrot.slane %v2129, 1
      %v2132 = vsel %vm1475, %v2127, %v2131
      %v2134 = vshrl.u32 %v1905, 16
      %v2136 = vshll.u32 %v1905, 16
      %v2138 = vrot.slane %v2136, 1
      %v2139 = vor.u32 %v2134, %v2138
      %v2141 = vshll.u32 %v1985, 16
      %v2143 = vrot.slane %v2141, 1
      %v2144 = vsel %vm1475, %v2139, %v2143
      %v2146 = vshrl.u32 %v1906, 16
      %v2148 = vshll.u32 %v1906, 16
      %v2150 = vrot.slane %v2148, 1
      %v2151 = vor.u32 %v2146, %v2150
      %v2153 = vshll.u32 %v1986, 16
      %v2155 = vrot.slane %v2153, 1
      %v2156 = vsel %vm1475, %v2151, %v2155
      %v2158 = vshrl.u32 %v1907, 16
      %v2160 = vshll.u32 %v1907, 16
      %v2162 = vrot.slane %v2160, 1
      %v2163 = vor.u32 %v2158, %v2162
      %v2165 = vshll.u32 %v1987, 16
      %v2167 = vrot.slane %v2165, 1
      %v2168 = vsel %vm1475, %v2163, %v2167
      %v2170 = vshrl.u32 %v1908, 16
      %v2172 = vshll.u32 %v1908, 16
      %v2174 = vrot.slane %v2172, 1
      %v2175 = vor.u32 %v2170, %v2174
      %v2177 = vshll.u32 %v1988, 16
      %v2179 = vrot.slane %v2177, 1
      %v2180 = vsel %vm1475, %v2175, %v2179
      %2181 = vrot.lane.b32.xlu0 %v2000, 16
      %v2182 = vpop.permute.xlu0 %2181
      %2183 = vrot.lane.b32.xlu0 %v2012, 16
      %v2184 = vpop.permute.xlu0 %2183
      %2185 = vrot.lane.b32.xlu0 %v2024, 16
      %v2186 = vpop.permute.xlu0 %2185
      %2187 = vrot.lane.b32.xlu0 %v2036, 16
      %v2188 = vpop.permute.xlu0 %2187
      %2189 = vrot.lane.b32.xlu0 %v2048, 16
      %v2190 = vpop.permute.xlu0 %2189
      %2191 = vrot.lane.b32.xlu0 %v2060, 16
      %v2192 = vpop.permute.xlu0 %2191
      %2193 = vrot.lane.b32.xlu0 %v2072, 16
      %v2194 = vpop.permute.xlu0 %2193
      %2195 = vrot.lane.b32.xlu0 %v2084, 16
      %v2196 = vpop.permute.xlu0 %2195
      %2197 = vrot.lane.b32.xlu0 %v2096, 16
      %v2198 = vpop.permute.xlu0 %2197
      %2199 = vrot.lane.b32.xlu0 %v2108, 16
      %v2200 = vpop.permute.xlu0 %2199
      %2201 = vrot.lane.b32.xlu0 %v2120, 16
      %v2202 = vpop.permute.xlu0 %2201
      %2203 = vrot.lane.b32.xlu0 %v2132, 16
      %v2204 = vpop.permute.xlu0 %2203
      %2205 = vrot.lane.b32.xlu0 %v2144, 16
      %v2206 = vpop.permute.xlu0 %2205
      %2207 = vrot.lane.b32.xlu0 %v2156, 16
      %v2208 = vpop.permute.xlu0 %2207
      %2209 = vrot.lane.b32.xlu0 %v2168, 16
      %v2210 = vpop.permute.xlu0 %2209
      %2211 = vrot.lane.b32.xlu0 %v2180, 16
      %v2212 = vpop.permute.xlu0 %2211
      %v2229 = vunpack.c.l.b16 %v1266
      %v2230 = vunpack.c.l.b16 %v1267
      %v2231 = vunpack.c.l.b16 %v1268
      %v2232 = vunpack.c.l.b16 %v1269
      %v2233 = vunpack.c.l.b16 %v1270
      %v2234 = vunpack.c.l.b16 %v1271
      %v2235 = vunpack.c.l.b16 %v1272
      %v2236 = vunpack.c.l.b16 %v1273
      %v2237 = vunpack.c.l.b16 %v1274
      %v2238 = vunpack.c.l.b16 %v1275
      %v2239 = vunpack.c.l.b16 %v1276
      %v2240 = vunpack.c.l.b16 %v1277
      %v2241 = vunpack.c.l.b16 %v1278
      %v2242 = vunpack.c.l.b16 %v1279
      %v2243 = vunpack.c.l.b16 %v1280
      %v2244 = vunpack.c.l.b16 %v1281
      %v2245 = vpack.c.b16 %v1862, %v2229
      %v2246 = vpack.c.b16 %v1864, %v2230
      %v2247 = vpack.c.b16 %v1866, %v2231
      %v2248 = vpack.c.b16 %v1868, %v2232
      %v2249 = vpack.c.b16 %v1870, %v2233
      %v2250 = vpack.c.b16 %v1872, %v2234
      %v2251 = vpack.c.b16 %v1874, %v2235
      %v2252 = vpack.c.b16 %v1876, %v2236
      %v2253 = vpack.c.b16 %v1878, %v2237
      %v2254 = vpack.c.b16 %v1880, %v2238
      %v2255 = vpack.c.b16 %v1882, %v2239
      %v2256 = vpack.c.b16 %v1884, %v2240
      %v2257 = vpack.c.b16 %v1886, %v2241
      %v2258 = vpack.c.b16 %v1888, %v2242
      %v2259 = vpack.c.b16 %v1890, %v2243
      %v2260 = vpack.c.b16 %v1892, %v2244
      %v2261 = vrot.slane %v2245, 1
      %v2262 = vrot.slane %v1973, 1
      %v2263 = vsel %vm1748, %v2261, %v2262
      %v2264 = vrot.slane %v2246, 1
      %v2265 = vrot.slane %v1974, 1
      %v2266 = vsel %vm1748, %v2264, %v2265
      %v2267 = vrot.slane %v2247, 1
      %v2268 = vrot.slane %v1975, 1
      %v2269 = vsel %vm1748, %v2267, %v2268
      %v2270 = vrot.slane %v2248, 1
      %v2271 = vrot.slane %v1976, 1
      %v2272 = vsel %vm1748, %v2270, %v2271
      %v2273 = vrot.slane %v2249, 1
      %v2274 = vrot.slane %v1977, 1
      %v2275 = vsel %vm1748, %v2273, %v2274
      %v2276 = vrot.slane %v2250, 1
      %v2277 = vrot.slane %v1978, 1
      %v2278 = vsel %vm1748, %v2276, %v2277
      %v2279 = vrot.slane %v2251, 1
      %v2280 = vrot.slane %v1979, 1
      %v2281 = vsel %vm1748, %v2279, %v2280
      %v2282 = vrot.slane %v2252, 1
      %v2283 = vrot.slane %v1980, 1
      %v2284 = vsel %vm1748, %v2282, %v2283
      %v2285 = vrot.slane %v2253, 1
      %v2286 = vrot.slane %v1981, 1
      %v2287 = vsel %vm1748, %v2285, %v2286
      %v2288 = vrot.slane %v2254, 1
      %v2289 = vrot.slane %v1982, 1
      %v2290 = vsel %vm1748, %v2288, %v2289
      %v2291 = vrot.slane %v2255, 1
      %v2292 = vrot.slane %v1983, 1
      %v2293 = vsel %vm1748, %v2291, %v2292
      %v2294 = vrot.slane %v2256, 1
      %v2295 = vrot.slane %v1984, 1
      %v2296 = vsel %vm1748, %v2294, %v2295
      %v2297 = vrot.slane %v2257, 1
      %v2298 = vrot.slane %v1985, 1
      %v2299 = vsel %vm1748, %v2297, %v2298
      %v2300 = vrot.slane %v2258, 1
      %v2301 = vrot.slane %v1986, 1
      %v2302 = vsel %vm1748, %v2300, %v2301
      %v2303 = vrot.slane %v2259, 1
      %v2304 = vrot.slane %v1987, 1
      %v2305 = vsel %vm1748, %v2303, %v2304
      %v2306 = vrot.slane %v2260, 1
      %v2307 = vrot.slane %v1988, 1
      %v2308 = vsel %vm1748, %v2306, %v2307
      %2309 = vrot.lane.b32.xlu0 %v2263, 20
      %v2310 = vpop.permute.xlu0 %2309
      %2311 = vrot.lane.b32.xlu0 %v2266, 20
      %v2312 = vpop.permute.xlu0 %2311
      %2313 = vrot.lane.b32.xlu0 %v2269, 20
      %v2314 = vpop.permute.xlu0 %2313
      %2315 = vrot.lane.b32.xlu0 %v2272, 20
      %v2316 = vpop.permute.xlu0 %2315
      %2317 = vrot.lane.b32.xlu0 %v2275, 20
      %v2318 = vpop.permute.xlu0 %2317
      %2319 = vrot.lane.b32.xlu0 %v2278, 20
      %v2320 = vpop.permute.xlu0 %2319
      %2321 = vrot.lane.b32.xlu0 %v2281, 20
      %v2322 = vpop.permute.xlu0 %2321
      %2323 = vrot.lane.b32.xlu0 %v2284, 20
      %v2324 = vpop.permute.xlu0 %2323
      %2325 = vrot.lane.b32.xlu0 %v2287, 20
      %v2326 = vpop.permute.xlu0 %2325
      %2327 = vrot.lane.b32.xlu0 %v2290, 20
      %v2328 = vpop.permute.xlu0 %2327
      %2329 = vrot.lane.b32.xlu0 %v2293, 20
      %v2330 = vpop.permute.xlu0 %2329
      %2331 = vrot.lane.b32.xlu0 %v2296, 20
      %v2332 = vpop.permute.xlu0 %2331
      %2333 = vrot.lane.b32.xlu0 %v2299, 20
      %v2334 = vpop.permute.xlu0 %2333
      %2335 = vrot.lane.b32.xlu0 %v2302, 20
      %v2336 = vpop.permute.xlu0 %2335
      %2337 = vrot.lane.b32.xlu0 %v2305, 20
      %v2338 = vpop.permute.xlu0 %2337
      %2339 = vrot.lane.b32.xlu0 %v2308, 20
      %v2340 = vpop.permute.xlu0 %2339
      %v2373 = vunpack.c.l.b16 %v1283
      %v2374 = vunpack.c.l.b16 %v1284
      %v2375 = vunpack.c.l.b16 %v1285
      %v2376 = vunpack.c.l.b16 %v1286
      %v2377 = vunpack.c.l.b16 %v1287
      %v2378 = vunpack.c.l.b16 %v1288
      %v2379 = vunpack.c.l.b16 %v1289
      %v2380 = vunpack.c.l.b16 %v1290
      %v2381 = vunpack.c.l.b16 %v1291
      %v2382 = vunpack.c.l.b16 %v1292
      %v2383 = vunpack.c.l.b16 %v1293
      %v2384 = vunpack.c.l.b16 %v1294
      %v2385 = vunpack.c.l.b16 %v1295
      %v2386 = vunpack.c.l.b16 %v1296
      %v2387 = vunpack.c.l.b16 %v1297
      %v2388 = vunpack.c.l.b16 %v1298
      %v2389 = vunpack.c.l.b16 %v1299
      %v2390 = vunpack.c.l.b16 %v1300
      %v2391 = vunpack.c.l.b16 %v1301
      %v2392 = vunpack.c.l.b16 %v1302
      %v2393 = vunpack.c.l.b16 %v1303
      %v2394 = vunpack.c.l.b16 %v1304
      %v2395 = vunpack.c.l.b16 %v1305
      %v2396 = vunpack.c.l.b16 %v1306
      %v2397 = vunpack.c.l.b16 %v1307
      %v2398 = vunpack.c.l.b16 %v1308
      %v2399 = vunpack.c.l.b16 %v1309
      %v2400 = vunpack.c.l.b16 %v1310
      %v2401 = vunpack.c.l.b16 %v1311
      %v2402 = vunpack.c.l.b16 %v1312
      %v2403 = vunpack.c.l.b16 %v1313
      %v2404 = vunpack.c.l.b16 %v1314
      %v2405 = vpack.c.b16 %v2374, %v2373
      %v2406 = vpack.c.b16 %v2376, %v2375
      %v2407 = vpack.c.b16 %v2378, %v2377
      %v2408 = vpack.c.b16 %v2380, %v2379
      %v2409 = vpack.c.b16 %v2382, %v2381
      %v2410 = vpack.c.b16 %v2384, %v2383
      %v2411 = vpack.c.b16 %v2386, %v2385
      %v2412 = vpack.c.b16 %v2388, %v2387
      %v2413 = vpack.c.b16 %v2390, %v2389
      %v2414 = vpack.c.b16 %v2392, %v2391
      %v2415 = vpack.c.b16 %v2394, %v2393
      %v2416 = vpack.c.b16 %v2396, %v2395
      %v2417 = vpack.c.b16 %v2398, %v2397
      %v2418 = vpack.c.b16 %v2400, %v2399
      %v2419 = vpack.c.b16 %v2402, %v2401
      %v2420 = vpack.c.b16 %v2404, %v2403
      %2421 = vrot.lane.b32.xlu0 %v2405, 24
      %v2422 = vpop.permute.xlu0 %2421
      %2423 = vrot.lane.b32.xlu0 %v2406, 24
      %v2424 = vpop.permute.xlu0 %2423
      %2425 = vrot.lane.b32.xlu0 %v2407, 24
      %v2426 = vpop.permute.xlu0 %2425
      %2427 = vrot.lane.b32.xlu0 %v2408, 24
      %v2428 = vpop.permute.xlu0 %2427
      %2429 = vrot.lane.b32.xlu0 %v2409, 24
      %v2430 = vpop.permute.xlu0 %2429
      %2431 = vrot.lane.b32.xlu0 %v2410, 24
      %v2432 = vpop.permute.xlu0 %2431
      %2433 = vrot.lane.b32.xlu0 %v2411, 24
      %v2434 = vpop.permute.xlu0 %2433
      %2435 = vrot.lane.b32.xlu0 %v2412, 24
      %v2436 = vpop.permute.xlu0 %2435
      %2437 = vrot.lane.b32.xlu0 %v2413, 24
      %v2438 = vpop.permute.xlu0 %2437
      %2439 = vrot.lane.b32.xlu0 %v2414, 24
      %v2440 = vpop.permute.xlu0 %2439
      %2441 = vrot.lane.b32.xlu0 %v2415, 24
      %v2442 = vpop.permute.xlu0 %2441
      %2443 = vrot.lane.b32.xlu0 %v2416, 24
      %v2444 = vpop.permute.xlu0 %2443
      %2445 = vrot.lane.b32.xlu0 %v2417, 24
      %v2446 = vpop.permute.xlu0 %2445
      %2447 = vrot.lane.b32.xlu0 %v2418, 24
      %v2448 = vpop.permute.xlu0 %2447
      %2449 = vrot.lane.b32.xlu0 %v2419, 24
      %v2450 = vpop.permute.xlu0 %2449
      %2451 = vrot.lane.b32.xlu0 %v2420, 24
      %v2452 = vpop.permute.xlu0 %2451
      %v2469 = vunpack.c.l.b16 %v1315
      %v2470 = vunpack.c.l.b16 %v1316
      %v2471 = vunpack.c.l.b16 %v1317
      %v2472 = vunpack.c.l.b16 %v1318
      %v2473 = vunpack.c.l.b16 %v1319
      %v2474 = vunpack.c.l.b16 %v1320
      %v2475 = vunpack.c.l.b16 %v1321
      %v2476 = vunpack.c.l.b16 %v1322
      %v2477 = vunpack.c.l.b16 %v1323
      %v2478 = vunpack.c.l.b16 %v1324
      %v2479 = vunpack.c.l.b16 %v1325
      %v2480 = vunpack.c.l.b16 %v1326
      %v2481 = vunpack.c.l.b16 %v1327
      %v2482 = vunpack.c.l.b16 %v1328
      %v2483 = vunpack.c.l.b16 %v1329
      %v2484 = vunpack.c.l.b16 %v1330
      %v2485 = vpack.c.b16 %v2469, %v2469
      %v2486 = vpack.c.b16 %v2470, %v2470
      %v2487 = vpack.c.b16 %v2471, %v2471
      %v2488 = vpack.c.b16 %v2472, %v2472
      %v2489 = vpack.c.b16 %v2473, %v2473
      %v2490 = vpack.c.b16 %v2474, %v2474
      %v2491 = vpack.c.b16 %v2475, %v2475
      %v2492 = vpack.c.b16 %v2476, %v2476
      %v2493 = vpack.c.b16 %v2477, %v2477
      %v2494 = vpack.c.b16 %v2478, %v2478
      %v2495 = vpack.c.b16 %v2479, %v2479
      %v2496 = vpack.c.b16 %v2480, %v2480
      %v2497 = vpack.c.b16 %v2481, %v2481
      %v2498 = vpack.c.b16 %v2482, %v2482
      %v2499 = vpack.c.b16 %v2483, %v2483
      %v2500 = vpack.c.b16 %v2484, %v2484
      %v2502 = vshrl.u32 %v2405, 16
      %v2504 = vshll.u32 %v2405, 16
      %v2506 = vrot.slane %v2504, 1
      %v2507 = vor.u32 %v2502, %v2506
      %v2509 = vshll.u32 %v2485, 16
      %v2511 = vrot.slane %v2509, 1
      %v2512 = vsel %vm1475, %v2507, %v2511
      %v2514 = vshrl.u32 %v2406, 16
      %v2516 = vshll.u32 %v2406, 16
      %v2518 = vrot.slane %v2516, 1
      %v2519 = vor.u32 %v2514, %v2518
      %v2521 = vshll.u32 %v2486, 16
      %v2523 = vrot.slane %v2521, 1
      %v2524 = vsel %vm1475, %v2519, %v2523
      %v2526 = vshrl.u32 %v2407, 16
      %v2528 = vshll.u32 %v2407, 16
      %v2530 = vrot.slane %v2528, 1
      %v2531 = vor.u32 %v2526, %v2530
      %v2533 = vshll.u32 %v2487, 16
      %v2535 = vrot.slane %v2533, 1
      %v2536 = vsel %vm1475, %v2531, %v2535
      %v2538 = vshrl.u32 %v2408, 16
      %v2540 = vshll.u32 %v2408, 16
      %v2542 = vrot.slane %v2540, 1
      %v2543 = vor.u32 %v2538, %v2542
      %v2545 = vshll.u32 %v2488, 16
      %v2547 = vrot.slane %v2545, 1
      %v2548 = vsel %vm1475, %v2543, %v2547
      %v2550 = vshrl.u32 %v2409, 16
      %v2552 = vshll.u32 %v2409, 16
      %v2554 = vrot.slane %v2552, 1
      %v2555 = vor.u32 %v2550, %v2554
      %v2557 = vshll.u32 %v2489, 16
      %v2559 = vrot.slane %v2557, 1
      %v2560 = vsel %vm1475, %v2555, %v2559
      %v2562 = vshrl.u32 %v2410, 16
      %v2564 = vshll.u32 %v2410, 16
      %v2566 = vrot.slane %v2564, 1
      %v2567 = vor.u32 %v2562, %v2566
      %v2569 = vshll.u32 %v2490, 16
      %v2571 = vrot.slane %v2569, 1
      %v2572 = vsel %vm1475, %v2567, %v2571
      %v2574 = vshrl.u32 %v2411, 16
      %v2576 = vshll.u32 %v2411, 16
      %v2578 = vrot.slane %v2576, 1
      %v2579 = vor.u32 %v2574, %v2578
      %v2581 = vshll.u32 %v2491, 16
      %v2583 = vrot.slane %v2581, 1
      %v2584 = vsel %vm1475, %v2579, %v2583
      %v2586 = vshrl.u32 %v2412, 16
      %v2588 = vshll.u32 %v2412, 16
      %v2590 = vrot.slane %v2588, 1
      %v2591 = vor.u32 %v2586, %v2590
      %v2593 = vshll.u32 %v2492, 16
      %v2595 = vrot.slane %v2593, 1
      %v2596 = vsel %vm1475, %v2591, %v2595
      %v2598 = vshrl.u32 %v2413, 16
      %v2600 = vshll.u32 %v2413, 16
      %v2602 = vrot.slane %v2600, 1
      %v2603 = vor.u32 %v2598, %v2602
      %v2605 = vshll.u32 %v2493, 16
      %v2607 = vrot.slane %v2605, 1
      %v2608 = vsel %vm1475, %v2603, %v2607
      %v2610 = vshrl.u32 %v2414, 16
      %v2612 = vshll.u32 %v2414, 16
      %v2614 = vrot.slane %v2612, 1
      %v2615 = vor.u32 %v2610, %v2614
      %v2617 = vshll.u32 %v2494, 16
      %v2619 = vrot.slane %v2617, 1
      %v2620 = vsel %vm1475, %v2615, %v2619
      %v2622 = vshrl.u32 %v2415, 16
      %v2624 = vshll.u32 %v2415, 16
      %v2626 = vrot.slane %v2624, 1
      %v2627 = vor.u32 %v2622, %v2626
      %v2629 = vshll.u32 %v2495, 16
      %v2631 = vrot.slane %v2629, 1
      %v2632 = vsel %vm1475, %v2627, %v2631
      %v2634 = vshrl.u32 %v2416, 16
      %v2636 = vshll.u32 %v2416, 16
      %v2638 = vrot.slane %v2636, 1
      %v2639 = vor.u32 %v2634, %v2638
      %v2641 = vshll.u32 %v2496, 16
      %v2643 = vrot.slane %v2641, 1
      %v2644 = vsel %vm1475, %v2639, %v2643
      %v2646 = vshrl.u32 %v2417, 16
      %v2648 = vshll.u32 %v2417, 16
      %v2650 = vrot.slane %v2648, 1
      %v2651 = vor.u32 %v2646, %v2650
      %v2653 = vshll.u32 %v2497, 16
      %v2655 = vrot.slane %v2653, 1
      %v2656 = vsel %vm1475, %v2651, %v2655
      %v2658 = vshrl.u32 %v2418, 16
      %v2660 = vshll.u32 %v2418, 16
      %v2662 = vrot.slane %v2660, 1
      %v2663 = vor.u32 %v2658, %v2662
      %v2665 = vshll.u32 %v2498, 16
      %v2667 = vrot.slane %v2665, 1
      %v2668 = vsel %vm1475, %v2663, %v2667
      %v2670 = vshrl.u32 %v2419, 16
      %v2672 = vshll.u32 %v2419, 16
      %v2674 = vrot.slane %v2672, 1
      %v2675 = vor.u32 %v2670, %v2674
      %v2677 = vshll.u32 %v2499, 16
      %v2679 = vrot.slane %v2677, 1
      %v2680 = vsel %vm1475, %v2675, %v2679
      %v2682 = vshrl.u32 %v2420, 16
      %v2684 = vshll.u32 %v2420, 16
      %v2686 = vrot.slane %v2684, 1
      %v2687 = vor.u32 %v2682, %v2686
      %v2689 = vshll.u32 %v2500, 16
      %v2691 = vrot.slane %v2689, 1
      %v2692 = vsel %vm1475, %v2687, %v2691
      %2693 = vrot.lane.b32.xlu0 %v2512, 28
      %v2694 = vpop.permute.xlu0 %2693
      %2695 = vrot.lane.b32.xlu0 %v2524, 28
      %v2696 = vpop.permute.xlu0 %2695
      %2697 = vrot.lane.b32.xlu0 %v2536, 28
      %v2698 = vpop.permute.xlu0 %2697
      %2699 = vrot.lane.b32.xlu0 %v2548, 28
      %v2700 = vpop.permute.xlu0 %2699
      %2701 = vrot.lane.b32.xlu0 %v2560, 28
      %v2702 = vpop.permute.xlu0 %2701
      %2703 = vrot.lane.b32.xlu0 %v2572, 28
      %v2704 = vpop.permute.xlu0 %2703
      %2705 = vrot.lane.b32.xlu0 %v2584, 28
      %v2706 = vpop.permute.xlu0 %2705
      %2707 = vrot.lane.b32.xlu0 %v2596, 28
      %v2708 = vpop.permute.xlu0 %2707
      %2709 = vrot.lane.b32.xlu0 %v2608, 28
      %v2710 = vpop.permute.xlu0 %2709
      %2711 = vrot.lane.b32.xlu0 %v2620, 28
      %v2712 = vpop.permute.xlu0 %2711
      %2713 = vrot.lane.b32.xlu0 %v2632, 28
      %v2714 = vpop.permute.xlu0 %2713
      %2715 = vrot.lane.b32.xlu0 %v2644, 28
      %v2716 = vpop.permute.xlu0 %2715
      %2717 = vrot.lane.b32.xlu0 %v2656, 28
      %v2718 = vpop.permute.xlu0 %2717
      %2719 = vrot.lane.b32.xlu0 %v2668, 28
      %v2720 = vpop.permute.xlu0 %2719
      %2721 = vrot.lane.b32.xlu0 %v2680, 28
      %v2722 = vpop.permute.xlu0 %2721
      %2723 = vrot.lane.b32.xlu0 %v2692, 28
      %v2724 = vpop.permute.xlu0 %2723
      %v2741 = vunpack.c.l.b16 %v1331
      %v2742 = vunpack.c.l.b16 %v1332
      %v2743 = vunpack.c.l.b16 %v1333
      %v2744 = vunpack.c.l.b16 %v1334
      %v2745 = vunpack.c.l.b16 %v1335
      %v2746 = vunpack.c.l.b16 %v1336
      %v2747 = vunpack.c.l.b16 %v1337
      %v2748 = vunpack.c.l.b16 %v1338
      %v2749 = vunpack.c.l.b16 %v1339
      %v2750 = vunpack.c.l.b16 %v1340
      %v2751 = vunpack.c.l.b16 %v1341
      %v2752 = vunpack.c.l.b16 %v1342
      %v2753 = vunpack.c.l.b16 %v1343
      %v2754 = vunpack.c.l.b16 %v1344
      %v2755 = vunpack.c.l.b16 %v1345
      %v2756 = vunpack.c.l.b16 %v1346
      %v2757 = vpack.c.b16 %v2374, %v2741
      %v2758 = vpack.c.b16 %v2376, %v2742
      %v2759 = vpack.c.b16 %v2378, %v2743
      %v2760 = vpack.c.b16 %v2380, %v2744
      %v2761 = vpack.c.b16 %v2382, %v2745
      %v2762 = vpack.c.b16 %v2384, %v2746
      %v2763 = vpack.c.b16 %v2386, %v2747
      %v2764 = vpack.c.b16 %v2388, %v2748
      %v2765 = vpack.c.b16 %v2390, %v2749
      %v2766 = vpack.c.b16 %v2392, %v2750
      %v2767 = vpack.c.b16 %v2394, %v2751
      %v2768 = vpack.c.b16 %v2396, %v2752
      %v2769 = vpack.c.b16 %v2398, %v2753
      %v2770 = vpack.c.b16 %v2400, %v2754
      %v2771 = vpack.c.b16 %v2402, %v2755
      %v2772 = vpack.c.b16 %v2404, %v2756
      %v2773 = vrot.slane %v2757, 1
      %v2774 = vrot.slane %v2485, 1
      %v2775 = vsel %vm1748, %v2773, %v2774
      %v2776 = vrot.slane %v2758, 1
      %v2777 = vrot.slane %v2486, 1
      %v2778 = vsel %vm1748, %v2776, %v2777
      %v2779 = vrot.slane %v2759, 1
      %v2780 = vrot.slane %v2487, 1
      %v2781 = vsel %vm1748, %v2779, %v2780
      %v2782 = vrot.slane %v2760, 1
      %v2783 = vrot.slane %v2488, 1
      %v2784 = vsel %vm1748, %v2782, %v2783
      %v2785 = vrot.slane %v2761, 1
      %v2786 = vrot.slane %v2489, 1
      %v2787 = vsel %vm1748, %v2785, %v2786
      %v2788 = vrot.slane %v2762, 1
      %v2789 = vrot.slane %v2490, 1
      %v2790 = vsel %vm1748, %v2788, %v2789
      %v2791 = vrot.slane %v2763, 1
      %v2792 = vrot.slane %v2491, 1
      %v2793 = vsel %vm1748, %v2791, %v2792
      %v2794 = vrot.slane %v2764, 1
      %v2795 = vrot.slane %v2492, 1
      %v2796 = vsel %vm1748, %v2794, %v2795
      %v2797 = vrot.slane %v2765, 1
      %v2798 = vrot.slane %v2493, 1
      %v2799 = vsel %vm1748, %v2797, %v2798
      %v2800 = vrot.slane %v2766, 1
      %v2801 = vrot.slane %v2494, 1
      %v2802 = vsel %vm1748, %v2800, %v2801
      %v2803 = vrot.slane %v2767, 1
      %v2804 = vrot.slane %v2495, 1
      %v2805 = vsel %vm1748, %v2803, %v2804
      %v2806 = vrot.slane %v2768, 1
      %v2807 = vrot.slane %v2496, 1
      %v2808 = vsel %vm1748, %v2806, %v2807
      %v2809 = vrot.slane %v2769, 1
      %v2810 = vrot.slane %v2497, 1
      %v2811 = vsel %vm1748, %v2809, %v2810
      %v2812 = vrot.slane %v2770, 1
      %v2813 = vrot.slane %v2498, 1
      %v2814 = vsel %vm1748, %v2812, %v2813
      %v2815 = vrot.slane %v2771, 1
      %v2816 = vrot.slane %v2499, 1
      %v2817 = vsel %vm1748, %v2815, %v2816
      %v2818 = vrot.slane %v2772, 1
      %v2819 = vrot.slane %v2500, 1
      %v2820 = vsel %vm1748, %v2818, %v2819
      %2821 = vrot.lane.b32.xlu0 %v2775, 32
      %v2822 = vpop.permute.xlu0 %2821
      %2823 = vrot.lane.b32.xlu0 %v2778, 32
      %v2824 = vpop.permute.xlu0 %2823
      %2825 = vrot.lane.b32.xlu0 %v2781, 32
      %v2826 = vpop.permute.xlu0 %2825
      %2827 = vrot.lane.b32.xlu0 %v2784, 32
      %v2828 = vpop.permute.xlu0 %2827
      %2829 = vrot.lane.b32.xlu0 %v2787, 32
      %v2830 = vpop.permute.xlu0 %2829
      %2831 = vrot.lane.b32.xlu0 %v2790, 32
      %v2832 = vpop.permute.xlu0 %2831
      %2833 = vrot.lane.b32.xlu0 %v2793, 32
      %v2834 = vpop.permute.xlu0 %2833
      %2835 = vrot.lane.b32.xlu0 %v2796, 32
      %v2836 = vpop.permute.xlu0 %2835
      %2837 = vrot.lane.b32.xlu0 %v2799, 32
      %v2838 = vpop.permute.xlu0 %2837
      %2839 = vrot.lane.b32.xlu0 %v2802, 32
      %v2840 = vpop.permute.xlu0 %2839
      %2841 = vrot.lane.b32.xlu0 %v2805, 32
      %v2842 = vpop.permute.xlu0 %2841
      %2843 = vrot.lane.b32.xlu0 %v2808, 32
      %v2844 = vpop.permute.xlu0 %2843
      %2845 = vrot.lane.b32.xlu0 %v2811, 32
      %v2846 = vpop.permute.xlu0 %2845
      %2847 = vrot.lane.b32.xlu0 %v2814, 32
      %v2848 = vpop.permute.xlu0 %2847
      %2849 = vrot.lane.b32.xlu0 %v2817, 32
      %v2850 = vpop.permute.xlu0 %2849
      %2851 = vrot.lane.b32.xlu0 %v2820, 32
      %v2852 = vpop.permute.xlu0 %2851
      %vm2853 = vcmask 31744
      %v2855 = vsel %vm2853, %v1411, %v1669
      %v2857 = vsel %vm2853, %v1412, %v1671
      %v2859 = vsel %vm2853, %v1413, %v1673
      %v2861 = vsel %vm2853, %v1414, %v1675
      %v2863 = vsel %vm2853, %v1415, %v1677
      %v2865 = vsel %vm2853, %v1416, %v1679
      %v2867 = vsel %vm2853, %v1417, %v1681
      %v2869 = vsel %vm2853, %v1418, %v1683
      %v2871 = vsel %vm2853, %v1419, %v1685
      %v2873 = vsel %vm2853, %v1420, %v1687
      %v2875 = vsel %vm2853, %v1421, %v1689
      %v2877 = vsel %vm2853, %v1422, %v1691
      %v2879 = vsel %vm2853, %v1423, %v1693
      %v2881 = vsel %vm2853, %v1424, %v1695
      %v2883 = vsel %vm2853, %v1425, %v1697
      %v2885 = vsel %vm2853, %v1426, %v1699
      %vm2886 = vcmask 64512
      %v2888 = vsel %vm2886, %v2855, %v1798
      %v2890 = vsel %vm2886, %v2857, %v1800
      %v2892 = vsel %vm2886, %v2859, %v1802
      %v2894 = vsel %vm2886, %v2861, %v1804
      %v2896 = vsel %vm2886, %v2863, %v1806
      %v2898 = vsel %vm2886, %v2865, %v1808
      %v2900 = vsel %vm2886, %v2867, %v1810
      %v2902 = vsel %vm2886, %v2869, %v1812
      %v2904 = vsel %vm2886, %v2871, %v1814
      %v2906 = vsel %vm2886, %v2873, %v1816
      %v2908 = vsel %vm2886, %v2875, %v1818
      %v2910 = vsel %vm2886, %v2877, %v1820
      %v2912 = vsel %vm2886, %v2879, %v1822
      %v2914 = vsel %vm2886, %v2881, %v1824
      %v2916 = vsel %vm2886, %v2883, %v1826
      %v2918 = vsel %vm2886, %v2885, %v1828
      %vm2919 = vcmask 97280
      %v2921 = vsel %vm2919, %v2888, %v1910
      %v2923 = vsel %vm2919, %v2890, %v1912
      %v2925 = vsel %vm2919, %v2892, %v1914
      %v2927 = vsel %vm2919, %v2894, %v1916
      %v2929 = vsel %vm2919, %v2896, %v1918
      %v2931 = vsel %vm2919, %v2898, %v1920
      %v2933 = vsel %vm2919, %v2900, %v1922
      %v2935 = vsel %vm2919, %v2902, %v1924
      %v2937 = vsel %vm2919, %v2904, %v1926
      %v2939 = vsel %vm2919, %v2906, %v1928
      %v2941 = vsel %vm2919, %v2908, %v1930
      %v2943 = vsel %vm2919, %v2910, %v1932
      %v2945 = vsel %vm2919, %v2912, %v1934
      %v2947 = vsel %vm2919, %v2914, %v1936
      %v2949 = vsel %vm2919, %v2916, %v1938
      %v2951 = vsel %vm2919, %v2918, %v1940
      %vm2952 = vcmask 130048
      %v2954 = vsel %vm2952, %v2921, %v2182
      %v2956 = vsel %vm2952, %v2923, %v2184
      %v2958 = vsel %vm2952, %v2925, %v2186
      %v2960 = vsel %vm2952, %v2927, %v2188
      %v2962 = vsel %vm2952, %v2929, %v2190
      %v2964 = vsel %vm2952, %v2931, %v2192
      %v2966 = vsel %vm2952, %v2933, %v2194
      %v2968 = vsel %vm2952, %v2935, %v2196
      %v2970 = vsel %vm2952, %v2937, %v2198
      %v2972 = vsel %vm2952, %v2939, %v2200
      %v2974 = vsel %vm2952, %v2941, %v2202
      %v2976 = vsel %vm2952, %v2943, %v2204
      %v2978 = vsel %vm2952, %v2945, %v2206
      %v2980 = vsel %vm2952, %v2947, %v2208
      %v2982 = vsel %vm2952, %v2949, %v2210
      %v2984 = vsel %vm2952, %v2951, %v2212
      %vm2985 = vcmask 162816
      %v2987 = vsel %vm2985, %v2954, %v2310
      %v2989 = vsel %vm2985, %v2956, %v2312
      %v2991 = vsel %vm2985, %v2958, %v2314
      %v2993 = vsel %vm2985, %v2960, %v2316
      %v2995 = vsel %vm2985, %v2962, %v2318
      %v2997 = vsel %vm2985, %v2964, %v2320
      %v2999 = vsel %vm2985, %v2966, %v2322
      %v3001 = vsel %vm2985, %v2968, %v2324
      %v3003 = vsel %vm2985, %v2970, %v2326
      %v3005 = vsel %vm2985, %v2972, %v2328
      %v3007 = vsel %vm2985, %v2974, %v2330
      %v3009 = vsel %vm2985, %v2976, %v2332
      %v3011 = vsel %vm2985, %v2978, %v2334
      %v3013 = vsel %vm2985, %v2980, %v2336
      %v3015 = vsel %vm2985, %v2982, %v2338
      %v3017 = vsel %vm2985, %v2984, %v2340
      %vm3018 = vcmask 195584
      %v3020 = vsel %vm3018, %v2987, %v2422
      %v3022 = vsel %vm3018, %v2989, %v2424
      %v3024 = vsel %vm3018, %v2991, %v2426
      %v3026 = vsel %vm3018, %v2993, %v2428
      %v3028 = vsel %vm3018, %v2995, %v2430
      %v3030 = vsel %vm3018, %v2997, %v2432
      %v3032 = vsel %vm3018, %v2999, %v2434
      %v3034 = vsel %vm3018, %v3001, %v2436
      %v3036 = vsel %vm3018, %v3003, %v2438
      %v3038 = vsel %vm3018, %v3005, %v2440
      %v3040 = vsel %vm3018, %v3007, %v2442
      %v3042 = vsel %vm3018, %v3009, %v2444
      %v3044 = vsel %vm3018, %v3011, %v2446
      %v3046 = vsel %vm3018, %v3013, %v2448
      %v3048 = vsel %vm3018, %v3015, %v2450
      %v3050 = vsel %vm3018, %v3017, %v2452
      %vm3051 = vcmask 228352
      %v3053 = vsel %vm3051, %v3020, %v2694
      %v3055 = vsel %vm3051, %v3022, %v2696
      %v3057 = vsel %vm3051, %v3024, %v2698
      %v3059 = vsel %vm3051, %v3026, %v2700
      %v3061 = vsel %vm3051, %v3028, %v2702
      %v3063 = vsel %vm3051, %v3030, %v2704
      %v3065 = vsel %vm3051, %v3032, %v2706
      %v3067 = vsel %vm3051, %v3034, %v2708
      %v3069 = vsel %vm3051, %v3036, %v2710
      %v3071 = vsel %vm3051, %v3038, %v2712
      %v3073 = vsel %vm3051, %v3040, %v2714
      %v3075 = vsel %vm3051, %v3042, %v2716
      %v3077 = vsel %vm3051, %v3044, %v2718
      %v3079 = vsel %vm3051, %v3046, %v2720
      %v3081 = vsel %vm3051, %v3048, %v2722
      %v3083 = vsel %vm3051, %v3050, %v2724
      %vm3084 = vcmask 261120
      %v3086 = vsel %vm3084, %v3053, %v2822
      %v3088 = vsel %vm3084, %v3055, %v2824
      %v3090 = vsel %vm3084, %v3057, %v2826
      %v3092 = vsel %vm3084, %v3059, %v2828
      %v3094 = vsel %vm3084, %v3061, %v2830
      %v3096 = vsel %vm3084, %v3063, %v2832
      %v3098 = vsel %vm3084, %v3065, %v2834
      %v3100 = vsel %vm3084, %v3067, %v2836
      %v3102 = vsel %vm3084, %v3069, %v2838
      %v3104 = vsel %vm3084, %v3071, %v2840
      %v3106 = vsel %vm3084, %v3073, %v2842
      %v3108 = vsel %vm3084, %v3075, %v2844
      %v3110 = vsel %vm3084, %v3077, %v2846
      %v3112 = vsel %vm3084, %v3079, %v2848
      %v3114 = vsel %vm3084, %v3081, %v2850
      %v3116 = vsel %vm3084, %v3083, %v2852
      %v3117 = vld [vmem:[%s3] sm:$0xf]
      %v3118 = vld [vmem:[%s3 + $0x4] sm:$0xf]
      %v3119 = vld [vmem:[%s3 + $0x8] sm:$0xf]
      %v3120 = vld [vmem:[%s3 + $0xc] sm:$0xf]
      %v3121 = vld [vmem:[%s3 + $0x10] sm:$0x3]
      %v3127 = vunpack.c.l.b16 %v3117
      %v3128 = vunpack.c.l.b16 %v3118
      %v3129 = vunpack.c.l.b16 %v3119
      %v3130 = vunpack.c.l.b16 %v3120
      %v3131 = vunpack.c.l.b16 %v3121
      %v3132 = vpack.c.b16 %v3128, %v3127
      %v3133 = vpack.c.b16 %v3130, %v3129
      %v3134 = vpack.c.b16 %v3131, %v3131
      %vm3137 = vcmask 293888
      %v3138 = vsel %vm3137, %v3086, 0
      %v3140 = vsel %vm3137, %v3088, 0
      %v3142 = vsel %vm3137, %v3090, 0
      %v3144 = vsel %vm3137, %v3092, 0
      %v3146 = vsel %vm3137, %v3094, 0
      %v3148 = vsel %vm3137, %v3096, 0
      %v3150 = vsel %vm3137, %v3098, 0
      %v3152 = vsel %vm3137, %v3100, 0
      %v3154 = vsel %vm3137, %v3102, 0
      %v3156 = vsel %vm3137, %v3104, 0
      %v3158 = vsel %vm3137, %v3106, 0
      %v3160 = vsel %vm3137, %v3108, 0
      %v3162 = vsel %vm3137, %v3110, 0
      %v3164 = vsel %vm3137, %v3112, 0
      %v3166 = vsel %vm3137, %v3114, 0
      %v3168 = vsel %vm3137, %v3116, 0
      %vm3170 = vcmask 1041408
      %v3172 = vsel %vm3170, %v3134, 0
      %3174 = vmatpush.bf16.msra.mxu0 0
      %3175 = vmatpush.bf16.msra.mxu0 0
      %3176 = vmatpush.bf16.msra.mxu0 0
      %3177 = vmatpush.bf16.msra.mxu0 0
      %3178 = vmatpush.bf16.msra.mxu0 0
      %3179 = vmatpush.bf16.msra.mxu0 %v3172
      %3180 = vmatpush.bf16.msra.mxu0 %v3133
      %3181 = vmatpush.bf16.msra.mxu0 %v3132
      %3182 = vmatmul.bf16.gmra.mxu0 %v3138
      %v3183 = vpop.f32.mrf.mxu0
      %v3184 = vadd.f32 0.0, %v3183
      %v3185 = vpop.f32.mrf.mxu0
      %v3186 = vadd.f32 0.0, %v3185
      %3187 = vmatmul.bf16.gmra.mxu0 %v3140
      %v3188 = vpop.f32.mrf.mxu0
      %v3189 = vadd.f32 0.0, %v3188
      %v3190 = vpop.f32.mrf.mxu0
      %v3191 = vadd.f32 0.0, %v3190
      %3192 = vmatmul.bf16.gmra.mxu0 %v3142
      %v3193 = vpop.f32.mrf.mxu0
      %v3194 = vadd.f32 0.0, %v3193
      %v3195 = vpop.f32.mrf.mxu0
      %v3196 = vadd.f32 0.0, %v3195
      %3197 = vmatmul.bf16.gmra.mxu0 %v3144
      %v3198 = vpop.f32.mrf.mxu0
      %v3199 = vadd.f32 0.0, %v3198
      %v3200 = vpop.f32.mrf.mxu0
      %v3201 = vadd.f32 0.0, %v3200
      %3202 = vmatmul.bf16.gmra.mxu0 %v3146
      %v3203 = vpop.f32.mrf.mxu0
      %v3204 = vadd.f32 0.0, %v3203
      %v3205 = vpop.f32.mrf.mxu0
      %v3206 = vadd.f32 0.0, %v3205
      %3207 = vmatmul.bf16.gmra.mxu0 %v3148
      %v3208 = vpop.f32.mrf.mxu0
      %v3209 = vadd.f32 0.0, %v3208
      %v3210 = vpop.f32.mrf.mxu0
      %v3211 = vadd.f32 0.0, %v3210
      %3212 = vmatmul.bf16.gmra.mxu0 %v3150
      %v3213 = vpop.f32.mrf.mxu0
      %v3214 = vadd.f32 0.0, %v3213
      %v3215 = vpop.f32.mrf.mxu0
      %v3216 = vadd.f32 0.0, %v3215
      %3217 = vmatmul.bf16.gmra.mxu0 %v3152
      %v3218 = vpop.f32.mrf.mxu0
      %v3219 = vadd.f32 0.0, %v3218
      %v3220 = vpop.f32.mrf.mxu0
      %v3221 = vadd.f32 0.0, %v3220
      %3222 = vmatmul.bf16.gmra.mxu0 %v3154
      %v3223 = vpop.f32.mrf.mxu0
      %v3224 = vadd.f32 0.0, %v3223
      %v3225 = vpop.f32.mrf.mxu0
      %v3226 = vadd.f32 0.0, %v3225
      %3227 = vmatmul.bf16.gmra.mxu0 %v3156
      %v3228 = vpop.f32.mrf.mxu0
      %v3229 = vadd.f32 0.0, %v3228
      %v3230 = vpop.f32.mrf.mxu0
      %v3231 = vadd.f32 0.0, %v3230
      %3232 = vmatmul.bf16.gmra.mxu0 %v3158
      %v3233 = vpop.f32.mrf.mxu0
      %v3234 = vadd.f32 0.0, %v3233
      %v3235 = vpop.f32.mrf.mxu0
      %v3236 = vadd.f32 0.0, %v3235
      %3237 = vmatmul.bf16.gmra.mxu0 %v3160
      %v3238 = vpop.f32.mrf.mxu0
      %v3239 = vadd.f32 0.0, %v3238
      %v3240 = vpop.f32.mrf.mxu0
      %v3241 = vadd.f32 0.0, %v3240
      %3242 = vmatmul.bf16.gmra.mxu0 %v3162
      %v3243 = vpop.f32.mrf.mxu0
      %v3244 = vadd.f32 0.0, %v3243
      %v3245 = vpop.f32.mrf.mxu0
      %v3246 = vadd.f32 0.0, %v3245
      %3247 = vmatmul.bf16.gmra.mxu0 %v3164
      %v3248 = vpop.f32.mrf.mxu0
      %v3249 = vadd.f32 0.0, %v3248
      %v3250 = vpop.f32.mrf.mxu0
      %v3251 = vadd.f32 0.0, %v3250
      %3252 = vmatmul.bf16.gmra.mxu0 %v3166
      %v3253 = vpop.f32.mrf.mxu0
      %v3254 = vadd.f32 0.0, %v3253
      %v3255 = vpop.f32.mrf.mxu0
      %v3256 = vadd.f32 0.0, %v3255
      %3257 = vmatmul.bf16.gmra.mxu0 %v3168
      %v3258 = vpop.f32.mrf.mxu0
      %v3259 = vadd.f32 0.0, %v3258
      %v3260 = vpop.f32.mrf.mxu0
      %v3261 = vadd.f32 0.0, %v3260
      %3262 = vdwg.mxu0
      %v3263 = vld [vmem:[%s4] sm:$0x1]
      %v3265 = vperm.slane %v3263, 0
      %v3267 = vmul.f32 %v3184, %v3265
      %v3268 = vmul.f32 %v3186, %v3265
      %v3269 = vmul.f32 %v3189, %v3265
      %v3270 = vmul.f32 %v3191, %v3265
      %v3271 = vmul.f32 %v3194, %v3265
      %v3272 = vmul.f32 %v3196, %v3265
      %v3273 = vmul.f32 %v3199, %v3265
      %v3274 = vmul.f32 %v3201, %v3265
      %v3275 = vmul.f32 %v3204, %v3265
      %v3276 = vmul.f32 %v3206, %v3265
      %v3277 = vmul.f32 %v3209, %v3265
      %v3278 = vmul.f32 %v3211, %v3265
      %v3279 = vmul.f32 %v3214, %v3265
      %v3280 = vmul.f32 %v3216, %v3265
      %v3281 = vmul.f32 %v3219, %v3265
      %v3282 = vmul.f32 %v3221, %v3265
      %v3283 = vmul.f32 %v3224, %v3265
      %v3284 = vmul.f32 %v3226, %v3265
      %v3285 = vmul.f32 %v3229, %v3265
      %v3286 = vmul.f32 %v3231, %v3265
      %v3287 = vmul.f32 %v3234, %v3265
      %v3288 = vmul.f32 %v3236, %v3265
      %v3289 = vmul.f32 %v3239, %v3265
      %v3290 = vmul.f32 %v3241, %v3265
      %v3291 = vmul.f32 %v3244, %v3265
      %v3292 = vmul.f32 %v3246, %v3265
      %v3293 = vmul.f32 %v3249, %v3265
      %v3294 = vmul.f32 %v3251, %v3265
      %v3295 = vmul.f32 %v3254, %v3265
      %v3296 = vmul.f32 %v3256, %v3265
      %v3297 = vmul.f32 %v3259, %v3265
      %v3298 = vmul.f32 %v3261, %v3265
      %v3299 = vld [vmem:[%s5] sm:$0x1]
      %v3301 = vperm.slane %v3299, 0
      %v3303 = vadd.f32 %v3267, %v3301
      %v3304 = vadd.f32 %v3268, %v3301
      %v3305 = vadd.f32 %v3269, %v3301
      %v3306 = vadd.f32 %v3270, %v3301
      %v3307 = vadd.f32 %v3271, %v3301
      %v3308 = vadd.f32 %v3272, %v3301
      %v3309 = vadd.f32 %v3273, %v3301
      %v3310 = vadd.f32 %v3274, %v3301
      %v3311 = vadd.f32 %v3275, %v3301
      %v3312 = vadd.f32 %v3276, %v3301
      %v3313 = vadd.f32 %v3277, %v3301
      %v3314 = vadd.f32 %v3278, %v3301
      %v3315 = vadd.f32 %v3279, %v3301
      %v3316 = vadd.f32 %v3280, %v3301
      %v3317 = vadd.f32 %v3281, %v3301
      %v3318 = vadd.f32 %v3282, %v3301
      %v3319 = vadd.f32 %v3283, %v3301
      %v3320 = vadd.f32 %v3284, %v3301
      %v3321 = vadd.f32 %v3285, %v3301
      %v3322 = vadd.f32 %v3286, %v3301
      %v3323 = vadd.f32 %v3287, %v3301
      %v3324 = vadd.f32 %v3288, %v3301
      %v3325 = vadd.f32 %v3289, %v3301
      %v3326 = vadd.f32 %v3290, %v3301
      %v3327 = vadd.f32 %v3291, %v3301
      %v3328 = vadd.f32 %v3292, %v3301
      %v3329 = vadd.f32 %v3293, %v3301
      %v3330 = vadd.f32 %v3294, %v3301
      %v3331 = vadd.f32 %v3295, %v3301
      %v3332 = vadd.f32 %v3296, %v3301
      %v3333 = vadd.f32 %v3297, %v3301
      %v3334 = vadd.f32 %v3298, %v3301
      %v3335 = vmax.f32 %v3303, 0.0
      %v3336 = vmax.f32 %v3304, 0.0
      %v3337 = vmax.f32 %v3305, 0.0
      %v3338 = vmax.f32 %v3306, 0.0
      %v3339 = vmax.f32 %v3307, 0.0
      %v3340 = vmax.f32 %v3308, 0.0
      %v3341 = vmax.f32 %v3309, 0.0
      %v3342 = vmax.f32 %v3310, 0.0
      %v3343 = vmax.f32 %v3311, 0.0
      %v3344 = vmax.f32 %v3312, 0.0
      %v3345 = vmax.f32 %v3313, 0.0
      %v3346 = vmax.f32 %v3314, 0.0
      %v3347 = vmax.f32 %v3315, 0.0
      %v3348 = vmax.f32 %v3316, 0.0
      %v3349 = vmax.f32 %v3317, 0.0
      %v3350 = vmax.f32 %v3318, 0.0
      %v3351 = vmax.f32 %v3319, 0.0
      %v3352 = vmax.f32 %v3320, 0.0
      %v3353 = vmax.f32 %v3321, 0.0
      %v3354 = vmax.f32 %v3322, 0.0
      %v3355 = vmax.f32 %v3323, 0.0
      %v3356 = vmax.f32 %v3324, 0.0
      %v3357 = vmax.f32 %v3325, 0.0
      %v3358 = vmax.f32 %v3326, 0.0
      %v3359 = vmax.f32 %v3327, 0.0
      %v3360 = vmax.f32 %v3328, 0.0
      %v3361 = vmax.f32 %v3329, 0.0
      %v3362 = vmax.f32 %v3330, 0.0
      %v3363 = vmax.f32 %v3331, 0.0
      %v3364 = vmax.f32 %v3332, 0.0
      %v3365 = vmax.f32 %v3333, 0.0
      %v3366 = vmax.f32 %v3334, 0.0
      %v3367 = vpack.c.bf16 %v3335, %v3335
      %v3368 = vpack.c.bf16 %v3336, %v3336
      %v3369 = vpack.c.bf16 %v3337, %v3337
      %v3370 = vpack.c.bf16 %v3338, %v3338
      %v3371 = vpack.c.bf16 %v3339, %v3339
      %v3372 = vpack.c.bf16 %v3340, %v3340
      %v3373 = vpack.c.bf16 %v3341, %v3341
      %v3374 = vpack.c.bf16 %v3342, %v3342
      %v3375 = vpack.c.bf16 %v3343, %v3343
      %v3376 = vpack.c.bf16 %v3344, %v3344
      %v3377 = vpack.c.bf16 %v3345, %v3345
      %v3378 = vpack.c.bf16 %v3346, %v3346
      %v3379 = vpack.c.bf16 %v3347, %v3347
      %v3380 = vpack.c.bf16 %v3348, %v3348
      %v3381 = vpack.c.bf16 %v3349, %v3349
      %v3382 = vpack.c.bf16 %v3350, %v3350
      %v3383 = vpack.c.bf16 %v3351, %v3351
      %v3384 = vpack.c.bf16 %v3352, %v3352
      %v3385 = vpack.c.bf16 %v3353, %v3353
      %v3386 = vpack.c.bf16 %v3354, %v3354
      %v3387 = vpack.c.bf16 %v3355, %v3355
      %v3388 = vpack.c.bf16 %v3356, %v3356
      %v3389 = vpack.c.bf16 %v3357, %v3357
      %v3390 = vpack.c.bf16 %v3358, %v3358
      %v3391 = vpack.c.bf16 %v3359, %v3359
      %v3392 = vpack.c.bf16 %v3360, %v3360
      %v3393 = vpack.c.bf16 %v3361, %v3361
      %v3394 = vpack.c.bf16 %v3362, %v3362
      %v3395 = vpack.c.bf16 %v3363, %v3363
      %v3396 = vpack.c.bf16 %v3364, %v3364
      %v3397 = vpack.c.bf16 %v3365, %v3365
      %v3398 = vpack.c.bf16 %v3366, %v3366
      %v3400 = vshrl.u32 %v3367, 16
      %v3402 = vrot.slane %v3400, 7
      %v3403 = vshll.u32 %v3367, 16
      %v3405 = vor.u32 %v3402, %v3403
      %v3406 = vrot.slane %v3402, 4
      %v3408 = vshrl.u32 %v3368, 16
      %v3410 = vrot.slane %v3408, 7
      %v3411 = vshll.u32 %v3368, 16
      %v3413 = vor.u32 %v3410, %v3411
      %v3414 = vsel %vm718, %v3406, %v3413
      %v3415 = vrot.slane %v3410, 4
      %v3417 = vshrl.u32 %v3369, 16
      %v3419 = vrot.slane %v3417, 7
      %v3420 = vshll.u32 %v3369, 16
      %v3422 = vor.u32 %v3419, %v3420
      %v3423 = vrot.slane %v3419, 4
      %v3425 = vshrl.u32 %v3370, 16
      %v3427 = vrot.slane %v3425, 7
      %v3428 = vshll.u32 %v3370, 16
      %v3430 = vor.u32 %v3427, %v3428
      %v3431 = vsel %vm718, %v3423, %v3430
      %v3432 = vrot.slane %v3427, 4
      %v3434 = vshrl.u32 %v3371, 16
      %v3436 = vrot.slane %v3434, 7
      %v3437 = vshll.u32 %v3371, 16
      %v3439 = vor.u32 %v3436, %v3437
      %v3440 = vrot.slane %v3436, 4
      %v3442 = vshrl.u32 %v3372, 16
      %v3444 = vrot.slane %v3442, 7
      %v3445 = vshll.u32 %v3372, 16
      %v3447 = vor.u32 %v3444, %v3445
      %v3448 = vsel %vm718, %v3440, %v3447
      %v3449 = vrot.slane %v3444, 4
      %v3451 = vshrl.u32 %v3373, 16
      %v3453 = vrot.slane %v3451, 7
      %v3454 = vshll.u32 %v3373, 16
      %v3456 = vor.u32 %v3453, %v3454
      %v3457 = vrot.slane %v3453, 4
      %v3459 = vshrl.u32 %v3374, 16
      %v3461 = vrot.slane %v3459, 7
      %v3462 = vshll.u32 %v3374, 16
      %v3464 = vor.u32 %v3461, %v3462
      %v3465 = vsel %vm718, %v3457, %v3464
      %v3466 = vrot.slane %v3461, 4
      %v3468 = vshrl.u32 %v3375, 16
      %v3470 = vrot.slane %v3468, 7
      %v3471 = vshll.u32 %v3375, 16
      %v3473 = vor.u32 %v3470, %v3471
      %v3474 = vrot.slane %v3470, 4
      %v3476 = vshrl.u32 %v3376, 16
      %v3478 = vrot.slane %v3476, 7
      %v3479 = vshll.u32 %v3376, 16
      %v3481 = vor.u32 %v3478, %v3479
      %v3482 = vsel %vm718, %v3474, %v3481
      %v3483 = vrot.slane %v3478, 4
      %v3485 = vshrl.u32 %v3377, 16
      %v3487 = vrot.slane %v3485, 7
      %v3488 = vshll.u32 %v3377, 16
      %v3490 = vor.u32 %v3487, %v3488
      %v3491 = vrot.slane %v3487, 4
      %v3493 = vshrl.u32 %v3378, 16
      %v3495 = vrot.slane %v3493, 7
      %v3496 = vshll.u32 %v3378, 16
      %v3498 = vor.u32 %v3495, %v3496
      %v3499 = vsel %vm718, %v3491, %v3498
      %v3500 = vrot.slane %v3495, 4
      %v3502 = vshrl.u32 %v3379, 16
      %v3504 = vrot.slane %v3502, 7
      %v3505 = vshll.u32 %v3379, 16
      %v3507 = vor.u32 %v3504, %v3505
      %v3508 = vrot.slane %v3504, 4
      %v3510 = vshrl.u32 %v3380, 16
      %v3512 = vrot.slane %v3510, 7
      %v3513 = vshll.u32 %v3380, 16
      %v3515 = vor.u32 %v3512, %v3513
      %v3516 = vsel %vm718, %v3508, %v3515
      %v3517 = vrot.slane %v3512, 4
      %v3519 = vshrl.u32 %v3381, 16
      %v3521 = vrot.slane %v3519, 7
      %v3522 = vshll.u32 %v3381, 16
      %v3524 = vor.u32 %v3521, %v3522
      %v3525 = vrot.slane %v3521, 4
      %v3527 = vshrl.u32 %v3382, 16
      %v3529 = vrot.slane %v3527, 7
      %v3530 = vshll.u32 %v3382, 16
      %v3532 = vor.u32 %v3529, %v3530
      %v3533 = vsel %vm718, %v3525, %v3532
      %v3534 = vrot.slane %v3529, 4
      %v3536 = vshrl.u32 %v3383, 16
      %v3538 = vrot.slane %v3536, 7
      %v3539 = vshll.u32 %v3383, 16
      %v3541 = vor.u32 %v3538, %v3539
      %v3542 = vrot.slane %v3538, 4
      %v3544 = vshrl.u32 %v3384, 16
      %v3546 = vrot.slane %v3544, 7
      %v3547 = vshll.u32 %v3384, 16
      %v3549 = vor.u32 %v3546, %v3547
      %v3550 = vsel %vm718, %v3542, %v3549
      %v3551 = vrot.slane %v3546, 4
      %v3553 = vshrl.u32 %v3385, 16
      %v3555 = vrot.slane %v3553, 7
      %v3556 = vshll.u32 %v3385, 16
      %v3558 = vor.u32 %v3555, %v3556
      %v3559 = vrot.slane %v3555, 4
      %v3561 = vshrl.u32 %v3386, 16
      %v3563 = vrot.slane %v3561, 7
      %v3564 = vshll.u32 %v3386, 16
      %v3566 = vor.u32 %v3563, %v3564
      %v3567 = vsel %vm718, %v3559, %v3566
      %v3568 = vrot.slane %v3563, 4
      %v3570 = vshrl.u32 %v3387, 16
      %v3572 = vrot.slane %v3570, 7
      %v3573 = vshll.u32 %v3387, 16
      %v3575 = vor.u32 %v3572, %v3573
      %v3576 = vrot.slane %v3572, 4
      %v3578 = vshrl.u32 %v3388, 16
      %v3580 = vrot.slane %v3578, 7
      %v3581 = vshll.u32 %v3388, 16
      %v3583 = vor.u32 %v3580, %v3581
      %v3584 = vsel %vm718, %v3576, %v3583
      %v3585 = vrot.slane %v3580, 4
      %v3587 = vshrl.u32 %v3389, 16
      %v3589 = vrot.slane %v3587, 7
      %v3590 = vshll.u32 %v3389, 16
      %v3592 = vor.u32 %v3589, %v3590
      %v3593 = vrot.slane %v3589, 4
      %v3595 = vshrl.u32 %v3390, 16
      %v3597 = vrot.slane %v3595, 7
      %v3598 = vshll.u32 %v3390, 16
      %v3600 = vor.u32 %v3597, %v3598
      %v3601 = vsel %vm718, %v3593, %v3600
      %v3602 = vrot.slane %v3597, 4
      %v3604 = vshrl.u32 %v3391, 16
      %v3606 = vrot.slane %v3604, 7
      %v3607 = vshll.u32 %v3391, 16
      %v3609 = vor.u32 %v3606, %v3607
      %v3610 = vrot.slane %v3606, 4
      %v3612 = vshrl.u32 %v3392, 16
      %v3614 = vrot.slane %v3612, 7
      %v3615 = vshll.u32 %v3392, 16
      %v3617 = vor.u32 %v3614, %v3615
      %v3618 = vsel %vm718, %v3610, %v3617
      %v3619 = vrot.slane %v3614, 4
      %v3621 = vshrl.u32 %v3393, 16
      %v3623 = vrot.slane %v3621, 7
      %v3624 = vshll.u32 %v3393, 16
      %v3626 = vor.u32 %v3623, %v3624
      %v3627 = vrot.slane %v3623, 4
      %v3629 = vshrl.u32 %v3394, 16
      %v3631 = vrot.slane %v3629, 7
      %v3632 = vshll.u32 %v3394, 16
      %v3634 = vor.u32 %v3631, %v3632
      %v3635 = vsel %vm718, %v3627, %v3634
      %v3636 = vrot.slane %v3631, 4
      %v3638 = vshrl.u32 %v3395, 16
      %v3640 = vrot.slane %v3638, 7
      %v3641 = vshll.u32 %v3395, 16
      %v3643 = vor.u32 %v3640, %v3641
      %v3644 = vrot.slane %v3640, 4
      %v3646 = vshrl.u32 %v3396, 16
      %v3648 = vrot.slane %v3646, 7
      %v3649 = vshll.u32 %v3396, 16
      %v3651 = vor.u32 %v3648, %v3649
      %v3652 = vsel %vm718, %v3644, %v3651
      %v3653 = vrot.slane %v3648, 4
      %v3655 = vshrl.u32 %v3397, 16
      %v3657 = vrot.slane %v3655, 7
      %v3658 = vshll.u32 %v3397, 16
      %v3660 = vor.u32 %v3657, %v3658
      %v3661 = vrot.slane %v3657, 4
      %v3663 = vshrl.u32 %v3398, 16
      %v3665 = vrot.slane %v3663, 7
      %v3666 = vshll.u32 %v3398, 16
      %v3668 = vor.u32 %v3665, %v3666
      %v3669 = vsel %vm718, %v3661, %v3668
      %v3670 = vrot.slane %v3665, 4
      %s3719 = scalar_lea.vmem [#allocation3], 12
      %vm3720 = vcmask 60416
      %vm3721 = vmand %vm3720, %vm373
      %v3722 = vld [vmem:[%s3719] sm:$0xf]
      %v3723 = vsel %vm3721, %v3405, %v3722
      %3724 = vst [vmem:[%s3719] sm:$0xf] %v3723
      %3725 = vst.msk [vmem:[%s3719 + $0x4] sm:$0xf] %vm429, %v3414
      %v3726 = vld [vmem:[%s3719 + $0x8] sm:$0x1]
      %v3727 = vsel %vm439, %v3415, %v3726
      %3728 = vst [vmem:[%s3719 + $0x8] sm:$0x1] %v3727
      %v3729 = vld [vmem:[%s3719 + $0xc] sm:$0xf]
      %v3730 = vsel %vm3721, %v3422, %v3729
      %3731 = vst [vmem:[%s3719 + $0xc] sm:$0xf] %v3730
      %3732 = vst.msk [vmem:[%s3719 + $0x10] sm:$0xf] %vm429, %v3431
      %v3733 = vld [vmem:[%s3719 + $0x14] sm:$0x1]
      %v3734 = vsel %vm439, %v3432, %v3733
      %3735 = vst [vmem:[%s3719 + $0x14] sm:$0x1] %v3734
      %v3736 = vld [vmem:[%s3719 + $0x18] sm:$0xf]
      %v3737 = vsel %vm3721, %v3439, %v3736
      %3738 = vst [vmem:[%s3719 + $0x18] sm:$0xf] %v3737
      %3739 = vst.msk [vmem:[%s3719 + $0x1c] sm:$0xf] %vm429, %v3448
      %v3740 = vld [vmem:[%s3719 + $0x20] sm:$0x1]
      %v3741 = vsel %vm439, %v3449, %v3740
      %3742 = vst [vmem:[%s3719 + $0x20] sm:$0x1] %v3741
      %v3743 = vld [vmem:[%s3719 + $0x24] sm:$0xf]
      %v3744 = vsel %vm3721, %v3456, %v3743
      %3745 = vst [vmem:[%s3719 + $0x24] sm:$0xf] %v3744
      %3746 = vst.msk [vmem:[%s3719 + $0x28] sm:$0xf] %vm429, %v3465
      %v3747 = vld [vmem:[%s3719 + $0x2c] sm:$0x1]
      %v3748 = vsel %vm439, %v3466, %v3747
      %3749 = vst [vmem:[%s3719 + $0x2c] sm:$0x1] %v3748
      %v3750 = vld [vmem:[%s3719 + $0x30] sm:$0xf]
      %v3751 = vsel %vm3721, %v3473, %v3750
      %3752 = vst [vmem:[%s3719 + $0x30] sm:$0xf] %v3751
      %3753 = vst.msk [vmem:[%s3719 + $0x34] sm:$0xf] %vm429, %v3482
      %v3754 = vld [vmem:[%s3719 + $0x38] sm:$0x1]
      %v3755 = vsel %vm439, %v3483, %v3754
      %3756 = vst [vmem:[%s3719 + $0x38] sm:$0x1] %v3755
      %v3757 = vld [vmem:[%s3719 + $0x3c] sm:$0xf]
      %v3758 = vsel %vm3721, %v3490, %v3757
      %3759 = vst [vmem:[%s3719 + $0x3c] sm:$0xf] %v3758
      %3760 = vst.msk [vmem:[%s3719 + $0x40] sm:$0xf] %vm429, %v3499
      %v3761 = vld [vmem:[%s3719 + $0x44] sm:$0x1]
      %v3762 = vsel %vm439, %v3500, %v3761
      %3763 = vst [vmem:[%s3719 + $0x44] sm:$0x1] %v3762
      %v3764 = vld [vmem:[%s3719 + $0x48] sm:$0xf]
      %v3765 = vsel %vm3721, %v3507, %v3764
      %3766 = vst [vmem:[%s3719 + $0x48] sm:$0xf] %v3765
      %3767 = vst.msk [vmem:[%s3719 + $0x4c] sm:$0xf] %vm429, %v3516
      %v3768 = vld [vmem:[%s3719 + $0x50] sm:$0x1]
      %v3769 = vsel %vm439, %v3517, %v3768
      %3770 = vst [vmem:[%s3719 + $0x50] sm:$0x1] %v3769
      %v3771 = vld [vmem:[%s3719 + $0x54] sm:$0xf]
      %v3772 = vsel %vm3721, %v3524, %v3771
      %3773 = vst [vmem:[%s3719 + $0x54] sm:$0xf] %v3772
      %3774 = vst.msk [vmem:[%s3719 + $0x58] sm:$0xf] %vm429, %v3533
      %v3775 = vld [vmem:[%s3719 + $0x5c] sm:$0x1]
      %v3776 = vsel %vm439, %v3534, %v3775
      %3777 = vst [vmem:[%s3719 + $0x5c] sm:$0x1] %v3776
      %v3778 = vld [vmem:[%s3719 + $0x60] sm:$0xf]
      %v3779 = vsel %vm3721, %v3541, %v3778
      %3780 = vst [vmem:[%s3719 + $0x60] sm:$0xf] %v3779
      %3781 = vst.msk [vmem:[%s3719 + $0x64] sm:$0xf] %vm429, %v3550
      %v3782 = vld [vmem:[%s3719 + $0x68] sm:$0x1]
      %v3783 = vsel %vm439, %v3551, %v3782
      %3784 = vst [vmem:[%s3719 + $0x68] sm:$0x1] %v3783
      %v3785 = vld [vmem:[%s3719 + $0x6c] sm:$0xf]
      %v3786 = vsel %vm3721, %v3558, %v3785
      %3787 = vst [vmem:[%s3719 + $0x6c] sm:$0xf] %v3786
      %3788 = vst.msk [vmem:[%s3719 + $0x70] sm:$0xf] %vm429, %v3567
      %v3789 = vld [vmem:[%s3719 + $0x74] sm:$0x1]
      %v3790 = vsel %vm439, %v3568, %v3789
      %3791 = vst [vmem:[%s3719 + $0x74] sm:$0x1] %v3790
      %v3792 = vld [vmem:[%s3719 + $0x78] sm:$0xf]
      %v3793 = vsel %vm3721, %v3575, %v3792
      %3794 = vst [vmem:[%s3719 + $0x78] sm:$0xf] %v3793
      %3795 = vst.msk [vmem:[%s3719 + $0x7c] sm:$0xf] %vm429, %v3584
      %v3796 = vld [vmem:[%s3719 + $0x80] sm:$0x1]
      %v3797 = vsel %vm439, %v3585, %v3796
      %3798 = vst [vmem:[%s3719 + $0x80] sm:$0x1] %v3797
      %v3799 = vld [vmem:[%s3719 + $0x84] sm:$0xf]
      %v3800 = vsel %vm3721, %v3592, %v3799
      %3801 = vst [vmem:[%s3719 + $0x84] sm:$0xf] %v3800
      %3802 = vst.msk [vmem:[%s3719 + $0x88] sm:$0xf] %vm429, %v3601
      %v3803 = vld [vmem:[%s3719 + $0x8c] sm:$0x1]
      %v3804 = vsel %vm439, %v3602, %v3803
      %3805 = vst [vmem:[%s3719 + $0x8c] sm:$0x1] %v3804
      %v3806 = vld [vmem:[%s3719 + $0x90] sm:$0xf]
      %v3807 = vsel %vm3721, %v3609, %v3806
      %3808 = vst [vmem:[%s3719 + $0x90] sm:$0xf] %v3807
      %3809 = vst.msk [vmem:[%s3719 + $0x94] sm:$0xf] %vm429, %v3618
      %v3810 = vld [vmem:[%s3719 + $0x98] sm:$0x1]
      %v3811 = vsel %vm439, %v3619, %v3810
      %3812 = vst [vmem:[%s3719 + $0x98] sm:$0x1] %v3811
      %v3813 = vld [vmem:[%s3719 + $0x9c] sm:$0xf]
      %v3814 = vsel %vm3721, %v3626, %v3813
      %3815 = vst [vmem:[%s3719 + $0x9c] sm:$0xf] %v3814
      %3816 = vst.msk [vmem:[%s3719 + $0xa0] sm:$0xf] %vm429, %v3635
      %v3817 = vld [vmem:[%s3719 + $0xa4] sm:$0x1]
      %v3818 = vsel %vm439, %v3636, %v3817
      %3819 = vst [vmem:[%s3719 + $0xa4] sm:$0x1] %v3818
      %v3820 = vld [vmem:[%s3719 + $0xa8] sm:$0xf]
      %v3821 = vsel %vm3721, %v3643, %v3820
      %3822 = vst [vmem:[%s3719 + $0xa8] sm:$0xf] %v3821
      %3823 = vst.msk [vmem:[%s3719 + $0xac] sm:$0xf] %vm429, %v3652
      %v3824 = vld [vmem:[%s3719 + $0xb0] sm:$0x1]
      %v3825 = vsel %vm439, %v3653, %v3824
      %3826 = vst [vmem:[%s3719 + $0xb0] sm:$0x1] %v3825
      %v3827 = vld [vmem:[%s3719 + $0xb4] sm:$0xf]
      %v3828 = vsel %vm3721, %v3660, %v3827
      %3829 = vst [vmem:[%s3719 + $0xb4] sm:$0xf] %v3828
      %3830 = vst.msk [vmem:[%s3719 + $0xb8] sm:$0xf] %vm429, %v3669
      %v3831 = vld [vmem:[%s3719 + $0xbc] sm:$0x1]
      %v3832 = vsel %vm439, %v3670, %v3831
      %3833 = vst [vmem:[%s3719 + $0xbc] sm:$0x1] %v3832
      %v3834 = vld [vmem:[#allocation3] sm:$0xf]
      %v3835 = vld [vmem:[#allocation3 + $0x4] sm:$0xf]
      %v3836 = vld [vmem:[#allocation3 + $0xc] sm:$0xf]
      %v3837 = vld [vmem:[#allocation3 + $0x10] sm:$0xf]
      %v3838 = vld [vmem:[#allocation3 + $0x18] sm:$0xf]
      %v3839 = vld [vmem:[#allocation3 + $0x1c] sm:$0xf]
      %v3840 = vld [vmem:[#allocation3 + $0x24] sm:$0xf]
      %v3841 = vld [vmem:[#allocation3 + $0x28] sm:$0xf]
      %v3842 = vld [vmem:[#allocation3 + $0x30] sm:$0xf]
      %v3843 = vld [vmem:[#allocation3 + $0x34] sm:$0xf]
      %v3844 = vld [vmem:[#allocation3 + $0x3c] sm:$0xf]
      %v3845 = vld [vmem:[#allocation3 + $0x40] sm:$0xf]
      %v3846 = vld [vmem:[#allocation3 + $0x48] sm:$0xf]
      %v3847 = vld [vmem:[#allocation3 + $0x4c] sm:$0xf]
      %v3848 = vld [vmem:[#allocation3 + $0x54] sm:$0xf]
      %v3849 = vld [vmem:[#allocation3 + $0x58] sm:$0xf]
      %v3850 = vld [vmem:[#allocation3 + $0x60] sm:$0xf]
      %v3851 = vld [vmem:[#allocation3 + $0x64] sm:$0xf]
      %v3852 = vld [vmem:[#allocation3 + $0x6c] sm:$0xf]
      %v3853 = vld [vmem:[#allocation3 + $0x70] sm:$0xf]
      %v3854 = vld [vmem:[#allocation3 + $0x78] sm:$0xf]
      %v3855 = vld [vmem:[#allocation3 + $0x7c] sm:$0xf]
      %v3856 = vld [vmem:[#allocation3 + $0x84] sm:$0xf]
      %v3857 = vld [vmem:[#allocation3 + $0x88] sm:$0xf]
      %v3858 = vld [vmem:[#allocation3 + $0x90] sm:$0xf]
      %v3859 = vld [vmem:[#allocation3 + $0x94] sm:$0xf]
      %v3860 = vld [vmem:[#allocation3 + $0x9c] sm:$0xf]
      %v3861 = vld [vmem:[#allocation3 + $0xa0] sm:$0xf]
      %v3862 = vld [vmem:[#allocation3 + $0xa8] sm:$0xf]
      %v3863 = vld [vmem:[#allocation3 + $0xac] sm:$0xf]
      %v3864 = vld [vmem:[#allocation3 + $0xb4] sm:$0xf]
      %v3865 = vld [vmem:[#allocation3 + $0xb8] sm:$0xf]
      %v3866 = vld [vmem:[#allocation3 + $0x8] sm:$0x1]
      %v3867 = vld [vmem:[#allocation3 + $0x14] sm:$0x1]
      %v3868 = vld [vmem:[#allocation3 + $0x20] sm:$0x1]
      %v3869 = vld [vmem:[#allocation3 + $0x2c] sm:$0x1]
      %v3870 = vld [vmem:[#allocation3 + $0x38] sm:$0x1]
      %v3871 = vld [vmem:[#allocation3 + $0x44] sm:$0x1]
      %v3872 = vld [vmem:[#allocation3 + $0x50] sm:$0x1]
      %v3873 = vld [vmem:[#allocation3 + $0x5c] sm:$0x1]
      %v3874 = vld [vmem:[#allocation3 + $0x68] sm:$0x1]
      %v3875 = vld [vmem:[#allocation3 + $0x74] sm:$0x1]
      %v3876 = vld [vmem:[#allocation3 + $0x80] sm:$0x1]
      %v3877 = vld [vmem:[#allocation3 + $0x8c] sm:$0x1]
      %v3878 = vld [vmem:[#allocation3 + $0x98] sm:$0x1]
      %v3879 = vld [vmem:[#allocation3 + $0xa4] sm:$0x1]
      %v3880 = vld [vmem:[#allocation3 + $0xb0] sm:$0x1]
      %v3881 = vld [vmem:[#allocation3 + $0xbc] sm:$0x1]
      %v3882 = vld [vmem:[#allocation3] sm:$0xe]
      %v3883 = vld [vmem:[#allocation3 + $0xc] sm:$0xe]
      %v3884 = vld [vmem:[#allocation3 + $0x18] sm:$0xe]
      %v3885 = vld [vmem:[#allocation3 + $0x24] sm:$0xe]
      %v3886 = vld [vmem:[#allocation3 + $0x30] sm:$0xe]
      %v3887 = vld [vmem:[#allocation3 + $0x3c] sm:$0xe]
      %v3888 = vld [vmem:[#allocation3 + $0x48] sm:$0xe]
      %v3889 = vld [vmem:[#allocation3 + $0x54] sm:$0xe]
      %v3890 = vld [vmem:[#allocation3 + $0x60] sm:$0xe]
      %v3891 = vld [vmem:[#allocation3 + $0x6c] sm:$0xe]
      %v3892 = vld [vmem:[#allocation3 + $0x78] sm:$0xe]
      %v3893 = vld [vmem:[#allocation3 + $0x84] sm:$0xe]
      %v3894 = vld [vmem:[#allocation3 + $0x90] sm:$0xe]
      %v3895 = vld [vmem:[#allocation3 + $0x9c] sm:$0xe]
      %v3896 = vld [vmem:[#allocation3 + $0xa8] sm:$0xe]
      %v3897 = vld [vmem:[#allocation3 + $0xb4] sm:$0xe]
      %v3898 = vld [vmem:[%s3719] sm:$0xf]
      %v3899 = vld [vmem:[%s3719 + $0x4] sm:$0xf]
      %v3900 = vld [vmem:[%s3719 + $0xc] sm:$0xf]
      %v3901 = vld [vmem:[%s3719 + $0x10] sm:$0xf]
      %v3902 = vld [vmem:[%s3719 + $0x18] sm:$0xf]
      %v3903 = vld [vmem:[%s3719 + $0x1c] sm:$0xf]
      %v3904 = vld [vmem:[%s3719 + $0x24] sm:$0xf]
      %v3905 = vld [vmem:[%s3719 + $0x28] sm:$0xf]
      %v3906 = vld [vmem:[%s3719 + $0x30] sm:$0xf]
      %v3907 = vld [vmem:[%s3719 + $0x34] sm:$0xf]
      %v3908 = vld [vmem:[%s3719 + $0x3c] sm:$0xf]
      %v3909 = vld [vmem:[%s3719 + $0x40] sm:$0xf]
      %v3910 = vld [vmem:[%s3719 + $0x48] sm:$0xf]
      %v3911 = vld [vmem:[%s3719 + $0x4c] sm:$0xf]
      %v3912 = vld [vmem:[%s3719 + $0x54] sm:$0xf]
      %v3913 = vld [vmem:[%s3719 + $0x58] sm:$0xf]
      %v3914 = vld [vmem:[%s3719 + $0x60] sm:$0xf]
      %v3915 = vld [vmem:[%s3719 + $0x64] sm:$0xf]
      %v3916 = vld [vmem:[%s3719 + $0x6c] sm:$0xf]
      %v3917 = vld [vmem:[%s3719 + $0x70] sm:$0xf]
      %v3918 = vld [vmem:[%s3719 + $0x78] sm:$0xf]
      %v3919 = vld [vmem:[%s3719 + $0x7c] sm:$0xf]
      %v3920 = vld [vmem:[%s3719 + $0x84] sm:$0xf]
      %v3921 = vld [vmem:[%s3719 + $0x88] sm:$0xf]
      %v3922 = vld [vmem:[%s3719 + $0x90] sm:$0xf]
      %v3923 = vld [vmem:[%s3719 + $0x94] sm:$0xf]
      %v3924 = vld [vmem:[%s3719 + $0x9c] sm:$0xf]
      %v3925 = vld [vmem:[%s3719 + $0xa0] sm:$0xf]
      %v3926 = vld [vmem:[%s3719 + $0xa8] sm:$0xf]
      %v3927 = vld [vmem:[%s3719 + $0xac] sm:$0xf]
      %v3928 = vld [vmem:[%s3719 + $0xb4] sm:$0xf]
      %v3929 = vld [vmem:[%s3719 + $0xb8] sm:$0xf]
      %v3930 = vld [vmem:[%s3719 + $0x8] sm:$0x1]
      %v3931 = vld [vmem:[%s3719 + $0x14] sm:$0x1]
      %v3932 = vld [vmem:[%s3719 + $0x20] sm:$0x1]
      %v3933 = vld [vmem:[%s3719 + $0x2c] sm:$0x1]
      %v3934 = vld [vmem:[%s3719 + $0x38] sm:$0x1]
      %v3935 = vld [vmem:[%s3719 + $0x44] sm:$0x1]
      %v3936 = vld [vmem:[%s3719 + $0x50] sm:$0x1]
      %v3937 = vld [vmem:[%s3719 + $0x5c] sm:$0x1]
      %v3938 = vld [vmem:[%s3719 + $0x68] sm:$0x1]
      %v3939 = vld [vmem:[%s3719 + $0x74] sm:$0x1]
      %v3940 = vld [vmem:[%s3719 + $0x80] sm:$0x1]
      %v3941 = vld [vmem:[%s3719 + $0x8c] sm:$0x1]
      %v3942 = vld [vmem:[%s3719 + $0x98] sm:$0x1]
      %v3943 = vld [vmem:[%s3719 + $0xa4] sm:$0x1]
      %v3944 = vld [vmem:[%s3719 + $0xb0] sm:$0x1]
      %v3945 = vld [vmem:[%s3719 + $0xbc] sm:$0x1]
      %v3946 = vld [vmem:[%s3719] sm:$0xe]
      %v3947 = vld [vmem:[%s3719 + $0xc] sm:$0xe]
      %v3948 = vld [vmem:[%s3719 + $0x18] sm:$0xe]
      %v3949 = vld [vmem:[%s3719 + $0x24] sm:$0xe]
      %v3950 = vld [vmem:[%s3719 + $0x30] sm:$0xe]
      %v3951 = vld [vmem:[%s3719 + $0x3c] sm:$0xe]
      %v3952 = vld [vmem:[%s3719 + $0x48] sm:$0xe]
      %v3953 = vld [vmem:[%s3719 + $0x54] sm:$0xe]
      %v3954 = vld [vmem:[%s3719 + $0x60] sm:$0xe]
      %v3955 = vld [vmem:[%s3719 + $0x6c] sm:$0xe]
      %v3956 = vld [vmem:[%s3719 + $0x78] sm:$0xe]
      %v3957 = vld [vmem:[%s3719 + $0x84] sm:$0xe]
      %v3958 = vld [vmem:[%s3719 + $0x90] sm:$0xe]
      %v3959 = vld [vmem:[%s3719 + $0x9c] sm:$0xe]
      %v3960 = vld [vmem:[%s3719 + $0xa8] sm:$0xe]
      %v3961 = vld [vmem:[%s3719 + $0xb4] sm:$0xe]
      %s3962 = scalar_lea.vmem [#allocation3], 24
      %v3963 = vld [vmem:[%s3962] sm:$0xf]
      %v3964 = vld [vmem:[%s3962 + $0x4] sm:$0xf]
      %v3965 = vld [vmem:[%s3962 + $0xc] sm:$0xf]
      %v3966 = vld [vmem:[%s3962 + $0x10] sm:$0xf]
      %v3967 = vld [vmem:[%s3962 + $0x18] sm:$0xf]
      %v3968 = vld [vmem:[%s3962 + $0x1c] sm:$0xf]
      %v3969 = vld [vmem:[%s3962 + $0x24] sm:$0xf]
      %v3970 = vld [vmem:[%s3962 + $0x28] sm:$0xf]
      %v3971 = vld [vmem:[%s3962 + $0x30] sm:$0xf]
      %v3972 = vld [vmem:[%s3962 + $0x34] sm:$0xf]
      %v3973 = vld [vmem:[%s3962 + $0x3c] sm:$0xf]
      %v3974 = vld [vmem:[%s3962 + $0x40] sm:$0xf]
      %v3975 = vld [vmem:[%s3962 + $0x48] sm:$0xf]
      %v3976 = vld [vmem:[%s3962 + $0x4c] sm:$0xf]
      %v3977 = vld [vmem:[%s3962 + $0x54] sm:$0xf]
      %v3978 = vld [vmem:[%s3962 + $0x58] sm:$0xf]
      %v3979 = vld [vmem:[%s3962 + $0x60] sm:$0xf]
      %v3980 = vld [vmem:[%s3962 + $0x64] sm:$0xf]
      %v3981 = vld [vmem:[%s3962 + $0x6c] sm:$0xf]
      %v3982 = vld [vmem:[%s3962 + $0x70] sm:$0xf]
      %v3983 = vld [vmem:[%s3962 + $0x78] sm:$0xf]
      %v3984 = vld [vmem:[%s3962 + $0x7c] sm:$0xf]
      %v3985 = vld [vmem:[%s3962 + $0x84] sm:$0xf]
      %v3986 = vld [vmem:[%s3962 + $0x88] sm:$0xf]
      %v3987 = vld [vmem:[%s3962 + $0x90] sm:$0xf]
      %v3988 = vld [vmem:[%s3962 + $0x94] sm:$0xf]
      %v3989 = vld [vmem:[%s3962 + $0x9c] sm:$0xf]
      %v3990 = vld [vmem:[%s3962 + $0xa0] sm:$0xf]
      %v3991 = vld [vmem:[%s3962 + $0xa8] sm:$0xf]
      %v3992 = vld [vmem:[%s3962 + $0xac] sm:$0xf]
      %v3993 = vld [vmem:[%s3962 + $0xb4] sm:$0xf]
      %v3994 = vld [vmem:[%s3962 + $0xb8] sm:$0xf]
      %v3995 = vld [vmem:[%s3962 + $0x8] sm:$0x1]
      %v3996 = vld [vmem:[%s3962 + $0x14] sm:$0x1]
      %v3997 = vld [vmem:[%s3962 + $0x20] sm:$0x1]
      %v3998 = vld [vmem:[%s3962 + $0x2c] sm:$0x1]
      %v3999 = vld [vmem:[%s3962 + $0x38] sm:$0x1]
      %v4000 = vld [vmem:[%s3962 + $0x44] sm:$0x1]
      %v4001 = vld [vmem:[%s3962 + $0x50] sm:$0x1]
      %v4002 = vld [vmem:[%s3962 + $0x5c] sm:$0x1]
      %v4003 = vld [vmem:[%s3962 + $0x68] sm:$0x1]
      %v4004 = vld [vmem:[%s3962 + $0x74] sm:$0x1]
      %v4005 = vld [vmem:[%s3962 + $0x80] sm:$0x1]
      %v4006 = vld [vmem:[%s3962 + $0x8c] sm:$0x1]
      %v4007 = vld [vmem:[%s3962 + $0x98] sm:$0x1]
      %v4008 = vld [vmem:[%s3962 + $0xa4] sm:$0x1]
      %v4009 = vld [vmem:[%s3962 + $0xb0] sm:$0x1]
      %v4010 = vld [vmem:[%s3962 + $0xbc] sm:$0x1]
      %v4011 = vld [vmem:[%s3962] sm:$0xe]
      %v4012 = vld [vmem:[%s3962 + $0xc] sm:$0xe]
      %v4013 = vld [vmem:[%s3962 + $0x18] sm:$0xe]
      %v4014 = vld [vmem:[%s3962 + $0x24] sm:$0xe]
      %v4015 = vld [vmem:[%s3962 + $0x30] sm:$0xe]
      %v4016 = vld [vmem:[%s3962 + $0x3c] sm:$0xe]
      %v4017 = vld [vmem:[%s3962 + $0x48] sm:$0xe]
      %v4018 = vld [vmem:[%s3962 + $0x54] sm:$0xe]
      %v4019 = vld [vmem:[%s3962 + $0x60] sm:$0xe]
      %v4020 = vld [vmem:[%s3962 + $0x6c] sm:$0xe]
      %v4021 = vld [vmem:[%s3962 + $0x78] sm:$0xe]
      %v4022 = vld [vmem:[%s3962 + $0x84] sm:$0xe]
      %v4023 = vld [vmem:[%s3962 + $0x90] sm:$0xe]
      %v4024 = vld [vmem:[%s3962 + $0x9c] sm:$0xe]
      %v4025 = vld [vmem:[%s3962 + $0xa8] sm:$0xe]
      %v4026 = vld [vmem:[%s3962 + $0xb4] sm:$0xe]
      %v4059 = vunpack.c.l.b16 %v3834
      %v4060 = vunpack.c.l.b16 %v3835
      %v4061 = vunpack.c.l.b16 %v3836
      %v4062 = vunpack.c.l.b16 %v3837
      %v4063 = vunpack.c.l.b16 %v3838
      %v4064 = vunpack.c.l.b16 %v3839
      %v4065 = vunpack.c.l.b16 %v3840
      %v4066 = vunpack.c.l.b16 %v3841
      %v4067 = vunpack.c.l.b16 %v3842
      %v4068 = vunpack.c.l.b16 %v3843
      %v4069 = vunpack.c.l.b16 %v3844
      %v4070 = vunpack.c.l.b16 %v3845
      %v4071 = vunpack.c.l.b16 %v3846
      %v4072 = vunpack.c.l.b16 %v3847
      %v4073 = vunpack.c.l.b16 %v3848
      %v4074 = vunpack.c.l.b16 %v3849
      %v4075 = vunpack.c.l.b16 %v3850
      %v4076 = vunpack.c.l.b16 %v3851
      %v4077 = vunpack.c.l.b16 %v3852
      %v4078 = vunpack.c.l.b16 %v3853
      %v4079 = vunpack.c.l.b16 %v3854
      %v4080 = vunpack.c.l.b16 %v3855
      %v4081 = vunpack.c.l.b16 %v3856
      %v4082 = vunpack.c.l.b16 %v3857
      %v4083 = vunpack.c.l.b16 %v3858
      %v4084 = vunpack.c.l.b16 %v3859
      %v4085 = vunpack.c.l.b16 %v3860
      %v4086 = vunpack.c.l.b16 %v3861
      %v4087 = vunpack.c.l.b16 %v3862
      %v4088 = vunpack.c.l.b16 %v3863
      %v4089 = vunpack.c.l.b16 %v3864
      %v4090 = vunpack.c.l.b16 %v3865
      %v4091 = vpack.c.b16 %v4060, %v4059
      %v4092 = vpack.c.b16 %v4062, %v4061
      %v4093 = vpack.c.b16 %v4064, %v4063
      %v4094 = vpack.c.b16 %v4066, %v4065
      %v4095 = vpack.c.b16 %v4068, %v4067
      %v4096 = vpack.c.b16 %v4070, %v4069
      %v4097 = vpack.c.b16 %v4072, %v4071
      %v4098 = vpack.c.b16 %v4074, %v4073
      %v4099 = vpack.c.b16 %v4076, %v4075
      %v4100 = vpack.c.b16 %v4078, %v4077
      %v4101 = vpack.c.b16 %v4080, %v4079
      %v4102 = vpack.c.b16 %v4082, %v4081
      %v4103 = vpack.c.b16 %v4084, %v4083
      %v4104 = vpack.c.b16 %v4086, %v4085
      %v4105 = vpack.c.b16 %v4088, %v4087
      %v4106 = vpack.c.b16 %v4090, %v4089
      %v4123 = vunpack.c.l.b16 %v3866
      %v4124 = vunpack.c.l.b16 %v3867
      %v4125 = vunpack.c.l.b16 %v3868
      %v4126 = vunpack.c.l.b16 %v3869
      %v4127 = vunpack.c.l.b16 %v3870
      %v4128 = vunpack.c.l.b16 %v3871
      %v4129 = vunpack.c.l.b16 %v3872
      %v4130 = vunpack.c.l.b16 %v3873
      %v4131 = vunpack.c.l.b16 %v3874
      %v4132 = vunpack.c.l.b16 %v3875
      %v4133 = vunpack.c.l.b16 %v3876
      %v4134 = vunpack.c.l.b16 %v3877
      %v4135 = vunpack.c.l.b16 %v3878
      %v4136 = vunpack.c.l.b16 %v3879
      %v4137 = vunpack.c.l.b16 %v3880
      %v4138 = vunpack.c.l.b16 %v3881
      %v4139 = vpack.c.b16 %v4123, %v4123
      %v4140 = vpack.c.b16 %v4124, %v4124
      %v4141 = vpack.c.b16 %v4125, %v4125
      %v4142 = vpack.c.b16 %v4126, %v4126
      %v4143 = vpack.c.b16 %v4127, %v4127
      %v4144 = vpack.c.b16 %v4128, %v4128
      %v4145 = vpack.c.b16 %v4129, %v4129
      %v4146 = vpack.c.b16 %v4130, %v4130
      %v4147 = vpack.c.b16 %v4131, %v4131
      %v4148 = vpack.c.b16 %v4132, %v4132
      %v4149 = vpack.c.b16 %v4133, %v4133
      %v4150 = vpack.c.b16 %v4134, %v4134
      %v4151 = vpack.c.b16 %v4135, %v4135
      %v4152 = vpack.c.b16 %v4136, %v4136
      %v4153 = vpack.c.b16 %v4137, %v4137
      %v4154 = vpack.c.b16 %v4138, %v4138
      %v4156 = vshrl.u32 %v4091, 16
      %v4158 = vshll.u32 %v4091, 16
      %v4160 = vrot.slane %v4158, 1
      %v4161 = vor.u32 %v4156, %v4160
      %v4163 = vshll.u32 %v4139, 16
      %v4165 = vrot.slane %v4163, 1
      %v4166 = vsel %vm1475, %v4161, %v4165
      %v4168 = vshrl.u32 %v4092, 16
      %v4170 = vshll.u32 %v4092, 16
      %v4172 = vrot.slane %v4170, 1
      %v4173 = vor.u32 %v4168, %v4172
      %v4175 = vshll.u32 %v4140, 16
      %v4177 = vrot.slane %v4175, 1
      %v4178 = vsel %vm1475, %v4173, %v4177
      %v4180 = vshrl.u32 %v4093, 16
      %v4182 = vshll.u32 %v4093, 16
      %v4184 = vrot.slane %v4182, 1
      %v4185 = vor.u32 %v4180, %v4184
      %v4187 = vshll.u32 %v4141, 16
      %v4189 = vrot.slane %v4187, 1
      %v4190 = vsel %vm1475, %v4185, %v4189
      %v4192 = vshrl.u32 %v4094, 16
      %v4194 = vshll.u32 %v4094, 16
      %v4196 = vrot.slane %v4194, 1
      %v4197 = vor.u32 %v4192, %v4196
      %v4199 = vshll.u32 %v4142, 16
      %v4201 = vrot.slane %v4199, 1
      %v4202 = vsel %vm1475, %v4197, %v4201
      %v4204 = vshrl.u32 %v4095, 16
      %v4206 = vshll.u32 %v4095, 16
      %v4208 = vrot.slane %v4206, 1
      %v4209 = vor.u32 %v4204, %v4208
      %v4211 = vshll.u32 %v4143, 16
      %v4213 = vrot.slane %v4211, 1
      %v4214 = vsel %vm1475, %v4209, %v4213
      %v4216 = vshrl.u32 %v4096, 16
      %v4218 = vshll.u32 %v4096, 16
      %v4220 = vrot.slane %v4218, 1
      %v4221 = vor.u32 %v4216, %v4220
      %v4223 = vshll.u32 %v4144, 16
      %v4225 = vrot.slane %v4223, 1
      %v4226 = vsel %vm1475, %v4221, %v4225
      %v4228 = vshrl.u32 %v4097, 16
      %v4230 = vshll.u32 %v4097, 16
      %v4232 = vrot.slane %v4230, 1
      %v4233 = vor.u32 %v4228, %v4232
      %v4235 = vshll.u32 %v4145, 16
      %v4237 = vrot.slane %v4235, 1
      %v4238 = vsel %vm1475, %v4233, %v4237
      %v4240 = vshrl.u32 %v4098, 16
      %v4242 = vshll.u32 %v4098, 16
      %v4244 = vrot.slane %v4242, 1
      %v4245 = vor.u32 %v4240, %v4244
      %v4247 = vshll.u32 %v4146, 16
      %v4249 = vrot.slane %v4247, 1
      %v4250 = vsel %vm1475, %v4245, %v4249
      %v4252 = vshrl.u32 %v4099, 16
      %v4254 = vshll.u32 %v4099, 16
      %v4256 = vrot.slane %v4254, 1
      %v4257 = vor.u32 %v4252, %v4256
      %v4259 = vshll.u32 %v4147, 16
      %v4261 = vrot.slane %v4259, 1
      %v4262 = vsel %vm1475, %v4257, %v4261
      %v4264 = vshrl.u32 %v4100, 16
      %v4266 = vshll.u32 %v4100, 16
      %v4268 = vrot.slane %v4266, 1
      %v4269 = vor.u32 %v4264, %v4268
      %v4271 = vshll.u32 %v4148, 16
      %v4273 = vrot.slane %v4271, 1
      %v4274 = vsel %vm1475, %v4269, %v4273
      %v4276 = vshrl.u32 %v4101, 16
      %v4278 = vshll.u32 %v4101, 16
      %v4280 = vrot.slane %v4278, 1
      %v4281 = vor.u32 %v4276, %v4280
      %v4283 = vshll.u32 %v4149, 16
      %v4285 = vrot.slane %v4283, 1
      %v4286 = vsel %vm1475, %v4281, %v4285
      %v4288 = vshrl.u32 %v4102, 16
      %v4290 = vshll.u32 %v4102, 16
      %v4292 = vrot.slane %v4290, 1
      %v4293 = vor.u32 %v4288, %v4292
      %v4295 = vshll.u32 %v4150, 16
      %v4297 = vrot.slane %v4295, 1
      %v4298 = vsel %vm1475, %v4293, %v4297
      %v4300 = vshrl.u32 %v4103, 16
      %v4302 = vshll.u32 %v4103, 16
      %v4304 = vrot.slane %v4302, 1
      %v4305 = vor.u32 %v4300, %v4304
      %v4307 = vshll.u32 %v4151, 16
      %v4309 = vrot.slane %v4307, 1
      %v4310 = vsel %vm1475, %v4305, %v4309
      %v4312 = vshrl.u32 %v4104, 16
      %v4314 = vshll.u32 %v4104, 16
      %v4316 = vrot.slane %v4314, 1
      %v4317 = vor.u32 %v4312, %v4316
      %v4319 = vshll.u32 %v4152, 16
      %v4321 = vrot.slane %v4319, 1
      %v4322 = vsel %vm1475, %v4317, %v4321
      %v4324 = vshrl.u32 %v4105, 16
      %v4326 = vshll.u32 %v4105, 16
      %v4328 = vrot.slane %v4326, 1
      %v4329 = vor.u32 %v4324, %v4328
      %v4331 = vshll.u32 %v4153, 16
      %v4333 = vrot.slane %v4331, 1
      %v4334 = vsel %vm1475, %v4329, %v4333
      %v4336 = vshrl.u32 %v4106, 16
      %v4338 = vshll.u32 %v4106, 16
      %v4340 = vrot.slane %v4338, 1
      %v4341 = vor.u32 %v4336, %v4340
      %v4343 = vshll.u32 %v4154, 16
      %v4345 = vrot.slane %v4343, 1
      %v4346 = vsel %vm1475, %v4341, %v4345
      %4347 = vrot.lane.b32.xlu0 %v4166, 8
      %v4348 = vpop.permute.xlu0 %4347
      %4349 = vrot.lane.b32.xlu0 %v4178, 8
      %v4350 = vpop.permute.xlu0 %4349
      %4351 = vrot.lane.b32.xlu0 %v4190, 8
      %v4352 = vpop.permute.xlu0 %4351
      %4353 = vrot.lane.b32.xlu0 %v4202, 8
      %v4354 = vpop.permute.xlu0 %4353
      %4355 = vrot.lane.b32.xlu0 %v4214, 8
      %v4356 = vpop.permute.xlu0 %4355
      %4357 = vrot.lane.b32.xlu0 %v4226, 8
      %v4358 = vpop.permute.xlu0 %4357
      %4359 = vrot.lane.b32.xlu0 %v4238, 8
      %v4360 = vpop.permute.xlu0 %4359
      %4361 = vrot.lane.b32.xlu0 %v4250, 8
      %v4362 = vpop.permute.xlu0 %4361
      %4363 = vrot.lane.b32.xlu0 %v4262, 8
      %v4364 = vpop.permute.xlu0 %4363
      %4365 = vrot.lane.b32.xlu0 %v4274, 8
      %v4366 = vpop.permute.xlu0 %4365
      %4367 = vrot.lane.b32.xlu0 %v4286, 8
      %v4368 = vpop.permute.xlu0 %4367
      %4369 = vrot.lane.b32.xlu0 %v4298, 8
      %v4370 = vpop.permute.xlu0 %4369
      %4371 = vrot.lane.b32.xlu0 %v4310, 8
      %v4372 = vpop.permute.xlu0 %4371
      %4373 = vrot.lane.b32.xlu0 %v4322, 8
      %v4374 = vpop.permute.xlu0 %4373
      %4375 = vrot.lane.b32.xlu0 %v4334, 8
      %v4376 = vpop.permute.xlu0 %4375
      %4377 = vrot.lane.b32.xlu0 %v4346, 8
      %v4378 = vpop.permute.xlu0 %4377
      %v4395 = vunpack.c.l.b16 %v3882
      %v4396 = vunpack.c.l.b16 %v3883
      %v4397 = vunpack.c.l.b16 %v3884
      %v4398 = vunpack.c.l.b16 %v3885
      %v4399 = vunpack.c.l.b16 %v3886
      %v4400 = vunpack.c.l.b16 %v3887
      %v4401 = vunpack.c.l.b16 %v3888
      %v4402 = vunpack.c.l.b16 %v3889
      %v4403 = vunpack.c.l.b16 %v3890
      %v4404 = vunpack.c.l.b16 %v3891
      %v4405 = vunpack.c.l.b16 %v3892
      %v4406 = vunpack.c.l.b16 %v3893
      %v4407 = vunpack.c.l.b16 %v3894
      %v4408 = vunpack.c.l.b16 %v3895
      %v4409 = vunpack.c.l.b16 %v3896
      %v4410 = vunpack.c.l.b16 %v3897
      %v4411 = vpack.c.b16 %v4060, %v4395
      %v4412 = vpack.c.b16 %v4062, %v4396
      %v4413 = vpack.c.b16 %v4064, %v4397
      %v4414 = vpack.c.b16 %v4066, %v4398
      %v4415 = vpack.c.b16 %v4068, %v4399
      %v4416 = vpack.c.b16 %v4070, %v4400
      %v4417 = vpack.c.b16 %v4072, %v4401
      %v4418 = vpack.c.b16 %v4074, %v4402
      %v4419 = vpack.c.b16 %v4076, %v4403
      %v4420 = vpack.c.b16 %v4078, %v4404
      %v4421 = vpack.c.b16 %v4080, %v4405
      %v4422 = vpack.c.b16 %v4082, %v4406
      %v4423 = vpack.c.b16 %v4084, %v4407
      %v4424 = vpack.c.b16 %v4086, %v4408
      %v4425 = vpack.c.b16 %v4088, %v4409
      %v4426 = vpack.c.b16 %v4090, %v4410
      %v4427 = vrot.slane %v4411, 1
      %v4428 = vrot.slane %v4139, 1
      %v4429 = vsel %vm1748, %v4427, %v4428
      %v4430 = vrot.slane %v4412, 1
      %v4431 = vrot.slane %v4140, 1
      %v4432 = vsel %vm1748, %v4430, %v4431
      %v4433 = vrot.slane %v4413, 1
      %v4434 = vrot.slane %v4141, 1
      %v4435 = vsel %vm1748, %v4433, %v4434
      %v4436 = vrot.slane %v4414, 1
      %v4437 = vrot.slane %v4142, 1
      %v4438 = vsel %vm1748, %v4436, %v4437
      %v4439 = vrot.slane %v4415, 1
      %v4440 = vrot.slane %v4143, 1
      %v4441 = vsel %vm1748, %v4439, %v4440
      %v4442 = vrot.slane %v4416, 1
      %v4443 = vrot.slane %v4144, 1
      %v4444 = vsel %vm1748, %v4442, %v4443
      %v4445 = vrot.slane %v4417, 1
      %v4446 = vrot.slane %v4145, 1
      %v4447 = vsel %vm1748, %v4445, %v4446
      %v4448 = vrot.slane %v4418, 1
      %v4449 = vrot.slane %v4146, 1
      %v4450 = vsel %vm1748, %v4448, %v4449
      %v4451 = vrot.slane %v4419, 1
      %v4452 = vrot.slane %v4147, 1
      %v4453 = vsel %vm1748, %v4451, %v4452
      %v4454 = vrot.slane %v4420, 1
      %v4455 = vrot.slane %v4148, 1
      %v4456 = vsel %vm1748, %v4454, %v4455
      %v4457 = vrot.slane %v4421, 1
      %v4458 = vrot.slane %v4149, 1
      %v4459 = vsel %vm1748, %v4457, %v4458
      %v4460 = vrot.slane %v4422, 1
      %v4461 = vrot.slane %v4150, 1
      %v4462 = vsel %vm1748, %v4460, %v4461
      %v4463 = vrot.slane %v4423, 1
      %v4464 = vrot.slane %v4151, 1
      %v4465 = vsel %vm1748, %v4463, %v4464
      %v4466 = vrot.slane %v4424, 1
      %v4467 = vrot.slane %v4152, 1
      %v4468 = vsel %vm1748, %v4466, %v4467
      %v4469 = vrot.slane %v4425, 1
      %v4470 = vrot.slane %v4153, 1
      %v4471 = vsel %vm1748, %v4469, %v4470
      %v4472 = vrot.slane %v4426, 1
      %v4473 = vrot.slane %v4154, 1
      %v4474 = vsel %vm1748, %v4472, %v4473
      %4475 = vrot.lane.b32.xlu0 %v4429, 16
      %v4476 = vpop.permute.xlu0 %4475
      %4477 = vrot.lane.b32.xlu0 %v4432, 16
      %v4478 = vpop.permute.xlu0 %4477
      %4479 = vrot.lane.b32.xlu0 %v4435, 16
      %v4480 = vpop.permute.xlu0 %4479
      %4481 = vrot.lane.b32.xlu0 %v4438, 16
      %v4482 = vpop.permute.xlu0 %4481
      %4483 = vrot.lane.b32.xlu0 %v4441, 16
      %v4484 = vpop.permute.xlu0 %4483
      %4485 = vrot.lane.b32.xlu0 %v4444, 16
      %v4486 = vpop.permute.xlu0 %4485
      %4487 = vrot.lane.b32.xlu0 %v4447, 16
      %v4488 = vpop.permute.xlu0 %4487
      %4489 = vrot.lane.b32.xlu0 %v4450, 16
      %v4490 = vpop.permute.xlu0 %4489
      %4491 = vrot.lane.b32.xlu0 %v4453, 16
      %v4492 = vpop.permute.xlu0 %4491
      %4493 = vrot.lane.b32.xlu0 %v4456, 16
      %v4494 = vpop.permute.xlu0 %4493
      %4495 = vrot.lane.b32.xlu0 %v4459, 16
      %v4496 = vpop.permute.xlu0 %4495
      %4497 = vrot.lane.b32.xlu0 %v4462, 16
      %v4498 = vpop.permute.xlu0 %4497
      %4499 = vrot.lane.b32.xlu0 %v4465, 16
      %v4500 = vpop.permute.xlu0 %4499
      %4501 = vrot.lane.b32.xlu0 %v4468, 16
      %v4502 = vpop.permute.xlu0 %4501
      %4503 = vrot.lane.b32.xlu0 %v4471, 16
      %v4504 = vpop.permute.xlu0 %4503
      %4505 = vrot.lane.b32.xlu0 %v4474, 16
      %v4506 = vpop.permute.xlu0 %4505
      %v4539 = vunpack.c.l.b16 %v3898
      %v4540 = vunpack.c.l.b16 %v3899
      %v4541 = vunpack.c.l.b16 %v3900
      %v4542 = vunpack.c.l.b16 %v3901
      %v4543 = vunpack.c.l.b16 %v3902
      %v4544 = vunpack.c.l.b16 %v3903
      %v4545 = vunpack.c.l.b16 %v3904
      %v4546 = vunpack.c.l.b16 %v3905
      %v4547 = vunpack.c.l.b16 %v3906
      %v4548 = vunpack.c.l.b16 %v3907
      %v4549 = vunpack.c.l.b16 %v3908
      %v4550 = vunpack.c.l.b16 %v3909
      %v4551 = vunpack.c.l.b16 %v3910
      %v4552 = vunpack.c.l.b16 %v3911
      %v4553 = vunpack.c.l.b16 %v3912
      %v4554 = vunpack.c.l.b16 %v3913
      %v4555 = vunpack.c.l.b16 %v3914
      %v4556 = vunpack.c.l.b16 %v3915
      %v4557 = vunpack.c.l.b16 %v3916
      %v4558 = vunpack.c.l.b16 %v3917
      %v4559 = vunpack.c.l.b16 %v3918
      %v4560 = vunpack.c.l.b16 %v3919
      %v4561 = vunpack.c.l.b16 %v3920
      %v4562 = vunpack.c.l.b16 %v3921
      %v4563 = vunpack.c.l.b16 %v3922
      %v4564 = vunpack.c.l.b16 %v3923
      %v4565 = vunpack.c.l.b16 %v3924
      %v4566 = vunpack.c.l.b16 %v3925
      %v4567 = vunpack.c.l.b16 %v3926
      %v4568 = vunpack.c.l.b16 %v3927
      %v4569 = vunpack.c.l.b16 %v3928
      %v4570 = vunpack.c.l.b16 %v3929
      %v4571 = vpack.c.b16 %v4540, %v4539
      %v4572 = vpack.c.b16 %v4542, %v4541
      %v4573 = vpack.c.b16 %v4544, %v4543
      %v4574 = vpack.c.b16 %v4546, %v4545
      %v4575 = vpack.c.b16 %v4548, %v4547
      %v4576 = vpack.c.b16 %v4550, %v4549
      %v4577 = vpack.c.b16 %v4552, %v4551
      %v4578 = vpack.c.b16 %v4554, %v4553
      %v4579 = vpack.c.b16 %v4556, %v4555
      %v4580 = vpack.c.b16 %v4558, %v4557
      %v4581 = vpack.c.b16 %v4560, %v4559
      %v4582 = vpack.c.b16 %v4562, %v4561
      %v4583 = vpack.c.b16 %v4564, %v4563
      %v4584 = vpack.c.b16 %v4566, %v4565
      %v4585 = vpack.c.b16 %v4568, %v4567
      %v4586 = vpack.c.b16 %v4570, %v4569
      %4587 = vrot.lane.b32.xlu0 %v4571, 24
      %v4588 = vpop.permute.xlu0 %4587
      %4589 = vrot.lane.b32.xlu0 %v4572, 24
      %v4590 = vpop.permute.xlu0 %4589
      %4591 = vrot.lane.b32.xlu0 %v4573, 24
      %v4592 = vpop.permute.xlu0 %4591
      %4593 = vrot.lane.b32.xlu0 %v4574, 24
      %v4594 = vpop.permute.xlu0 %4593
      %4595 = vrot.lane.b32.xlu0 %v4575, 24
      %v4596 = vpop.permute.xlu0 %4595
      %4597 = vrot.lane.b32.xlu0 %v4576, 24
      %v4598 = vpop.permute.xlu0 %4597
      %4599 = vrot.lane.b32.xlu0 %v4577, 24
      %v4600 = vpop.permute.xlu0 %4599
      %4601 = vrot.lane.b32.xlu0 %v4578, 24
      %v4602 = vpop.permute.xlu0 %4601
      %4603 = vrot.lane.b32.xlu0 %v4579, 24
      %v4604 = vpop.permute.xlu0 %4603
      %4605 = vrot.lane.b32.xlu0 %v4580, 24
      %v4606 = vpop.permute.xlu0 %4605
      %4607 = vrot.lane.b32.xlu0 %v4581, 24
      %v4608 = vpop.permute.xlu0 %4607
      %4609 = vrot.lane.b32.xlu0 %v4582, 24
      %v4610 = vpop.permute.xlu0 %4609
      %4611 = vrot.lane.b32.xlu0 %v4583, 24
      %v4612 = vpop.permute.xlu0 %4611
      %4613 = vrot.lane.b32.xlu0 %v4584, 24
      %v4614 = vpop.permute.xlu0 %4613
      %4615 = vrot.lane.b32.xlu0 %v4585, 24
      %v4616 = vpop.permute.xlu0 %4615
      %4617 = vrot.lane.b32.xlu0 %v4586, 24
      %v4618 = vpop.permute.xlu0 %4617
      %v4635 = vunpack.c.l.b16 %v3930
      %v4636 = vunpack.c.l.b16 %v3931
      %v4637 = vunpack.c.l.b16 %v3932
      %v4638 = vunpack.c.l.b16 %v3933
      %v4639 = vunpack.c.l.b16 %v3934
      %v4640 = vunpack.c.l.b16 %v3935
      %v4641 = vunpack.c.l.b16 %v3936
      %v4642 = vunpack.c.l.b16 %v3937
      %v4643 = vunpack.c.l.b16 %v3938
      %v4644 = vunpack.c.l.b16 %v3939
      %v4645 = vunpack.c.l.b16 %v3940
      %v4646 = vunpack.c.l.b16 %v3941
      %v4647 = vunpack.c.l.b16 %v3942
      %v4648 = vunpack.c.l.b16 %v3943
      %v4649 = vunpack.c.l.b16 %v3944
      %v4650 = vunpack.c.l.b16 %v3945
      %v4651 = vpack.c.b16 %v4635, %v4635
      %v4652 = vpack.c.b16 %v4636, %v4636
      %v4653 = vpack.c.b16 %v4637, %v4637
      %v4654 = vpack.c.b16 %v4638, %v4638
      %v4655 = vpack.c.b16 %v4639, %v4639
      %v4656 = vpack.c.b16 %v4640, %v4640
      %v4657 = vpack.c.b16 %v4641, %v4641
      %v4658 = vpack.c.b16 %v4642, %v4642
      %v4659 = vpack.c.b16 %v4643, %v4643
      %v4660 = vpack.c.b16 %v4644, %v4644
      %v4661 = vpack.c.b16 %v4645, %v4645
      %v4662 = vpack.c.b16 %v4646, %v4646
      %v4663 = vpack.c.b16 %v4647, %v4647
      %v4664 = vpack.c.b16 %v4648, %v4648
      %v4665 = vpack.c.b16 %v4649, %v4649
      %v4666 = vpack.c.b16 %v4650, %v4650
      %v4668 = vshrl.u32 %v4571, 16
      %v4670 = vshll.u32 %v4571, 16
      %v4672 = vrot.slane %v4670, 1
      %v4673 = vor.u32 %v4668, %v4672
      %v4675 = vshll.u32 %v4651, 16
      %v4677 = vrot.slane %v4675, 1
      %v4678 = vsel %vm1475, %v4673, %v4677
      %v4680 = vshrl.u32 %v4572, 16
      %v4682 = vshll.u32 %v4572, 16
      %v4684 = vrot.slane %v4682, 1
      %v4685 = vor.u32 %v4680, %v4684
      %v4687 = vshll.u32 %v4652, 16
      %v4689 = vrot.slane %v4687, 1
      %v4690 = vsel %vm1475, %v4685, %v4689
      %v4692 = vshrl.u32 %v4573, 16
      %v4694 = vshll.u32 %v4573, 16
      %v4696 = vrot.slane %v4694, 1
      %v4697 = vor.u32 %v4692, %v4696
      %v4699 = vshll.u32 %v4653, 16
      %v4701 = vrot.slane %v4699, 1
      %v4702 = vsel %vm1475, %v4697, %v4701
      %v4704 = vshrl.u32 %v4574, 16
      %v4706 = vshll.u32 %v4574, 16
      %v4708 = vrot.slane %v4706, 1
      %v4709 = vor.u32 %v4704, %v4708
      %v4711 = vshll.u32 %v4654, 16
      %v4713 = vrot.slane %v4711, 1
      %v4714 = vsel %vm1475, %v4709, %v4713
      %v4716 = vshrl.u32 %v4575, 16
      %v4718 = vshll.u32 %v4575, 16
      %v4720 = vrot.slane %v4718, 1
      %v4721 = vor.u32 %v4716, %v4720
      %v4723 = vshll.u32 %v4655, 16
      %v4725 = vrot.slane %v4723, 1
      %v4726 = vsel %vm1475, %v4721, %v4725
      %v4728 = vshrl.u32 %v4576, 16
      %v4730 = vshll.u32 %v4576, 16
      %v4732 = vrot.slane %v4730, 1
      %v4733 = vor.u32 %v4728, %v4732
      %v4735 = vshll.u32 %v4656, 16
      %v4737 = vrot.slane %v4735, 1
      %v4738 = vsel %vm1475, %v4733, %v4737
      %v4740 = vshrl.u32 %v4577, 16
      %v4742 = vshll.u32 %v4577, 16
      %v4744 = vrot.slane %v4742, 1
      %v4745 = vor.u32 %v4740, %v4744
      %v4747 = vshll.u32 %v4657, 16
      %v4749 = vrot.slane %v4747, 1
      %v4750 = vsel %vm1475, %v4745, %v4749
      %v4752 = vshrl.u32 %v4578, 16
      %v4754 = vshll.u32 %v4578, 16
      %v4756 = vrot.slane %v4754, 1
      %v4757 = vor.u32 %v4752, %v4756
      %v4759 = vshll.u32 %v4658, 16
      %v4761 = vrot.slane %v4759, 1
      %v4762 = vsel %vm1475, %v4757, %v4761
      %v4764 = vshrl.u32 %v4579, 16
      %v4766 = vshll.u32 %v4579, 16
      %v4768 = vrot.slane %v4766, 1
      %v4769 = vor.u32 %v4764, %v4768
      %v4771 = vshll.u32 %v4659, 16
      %v4773 = vrot.slane %v4771, 1
      %v4774 = vsel %vm1475, %v4769, %v4773
      %v4776 = vshrl.u32 %v4580, 16
      %v4778 = vshll.u32 %v4580, 16
      %v4780 = vrot.slane %v4778, 1
      %v4781 = vor.u32 %v4776, %v4780
      %v4783 = vshll.u32 %v4660, 16
      %v4785 = vrot.slane %v4783, 1
      %v4786 = vsel %vm1475, %v4781, %v4785
      %v4788 = vshrl.u32 %v4581, 16
      %v4790 = vshll.u32 %v4581, 16
      %v4792 = vrot.slane %v4790, 1
      %v4793 = vor.u32 %v4788, %v4792
      %v4795 = vshll.u32 %v4661, 16
      %v4797 = vrot.slane %v4795, 1
      %v4798 = vsel %vm1475, %v4793, %v4797
      %v4800 = vshrl.u32 %v4582, 16
      %v4802 = vshll.u32 %v4582, 16
      %v4804 = vrot.slane %v4802, 1
      %v4805 = vor.u32 %v4800, %v4804
      %v4807 = vshll.u32 %v4662, 16
      %v4809 = vrot.slane %v4807, 1
      %v4810 = vsel %vm1475, %v4805, %v4809
      %v4812 = vshrl.u32 %v4583, 16
      %v4814 = vshll.u32 %v4583, 16
      %v4816 = vrot.slane %v4814, 1
      %v4817 = vor.u32 %v4812, %v4816
      %v4819 = vshll.u32 %v4663, 16
      %v4821 = vrot.slane %v4819, 1
      %v4822 = vsel %vm1475, %v4817, %v4821
      %v4824 = vshrl.u32 %v4584, 16
      %v4826 = vshll.u32 %v4584, 16
      %v4828 = vrot.slane %v4826, 1
      %v4829 = vor.u32 %v4824, %v4828
      %v4831 = vshll.u32 %v4664, 16
      %v4833 = vrot.slane %v4831, 1
      %v4834 = vsel %vm1475, %v4829, %v4833
      %v4836 = vshrl.u32 %v4585, 16
      %v4838 = vshll.u32 %v4585, 16
      %v4840 = vrot.slane %v4838, 1
      %v4841 = vor.u32 %v4836, %v4840
      %v4843 = vshll.u32 %v4665, 16
      %v4845 = vrot.slane %v4843, 1
      %v4846 = vsel %vm1475, %v4841, %v4845
      %v4848 = vshrl.u32 %v4586, 16
      %v4850 = vshll.u32 %v4586, 16
      %v4852 = vrot.slane %v4850, 1
      %v4853 = vor.u32 %v4848, %v4852
      %v4855 = vshll.u32 %v4666, 16
      %v4857 = vrot.slane %v4855, 1
      %v4858 = vsel %vm1475, %v4853, %v4857
      %4859 = vrot.lane.b32.xlu0 %v4678, 32
      %v4860 = vpop.permute.xlu0 %4859
      %4861 = vrot.lane.b32.xlu0 %v4690, 32
      %v4862 = vpop.permute.xlu0 %4861
      %4863 = vrot.lane.b32.xlu0 %v4702, 32
      %v4864 = vpop.permute.xlu0 %4863
      %4865 = vrot.lane.b32.xlu0 %v4714, 32
      %v4866 = vpop.permute.xlu0 %4865
      %4867 = vrot.lane.b32.xlu0 %v4726, 32
      %v4868 = vpop.permute.xlu0 %4867
      %4869 = vrot.lane.b32.xlu0 %v4738, 32
      %v4870 = vpop.permute.xlu0 %4869
      %4871 = vrot.lane.b32.xlu0 %v4750, 32
      %v4872 = vpop.permute.xlu0 %4871
      %4873 = vrot.lane.b32.xlu0 %v4762, 32
      %v4874 = vpop.permute.xlu0 %4873
      %4875 = vrot.lane.b32.xlu0 %v4774, 32
      %v4876 = vpop.permute.xlu0 %4875
      %4877 = vrot.lane.b32.xlu0 %v4786, 32
      %v4878 = vpop.permute.xlu0 %4877
      %4879 = vrot.lane.b32.xlu0 %v4798, 32
      %v4880 = vpop.permute.xlu0 %4879
      %4881 = vrot.lane.b32.xlu0 %v4810, 32
      %v4882 = vpop.permute.xlu0 %4881
      %4883 = vrot.lane.b32.xlu0 %v4822, 32
      %v4884 = vpop.permute.xlu0 %4883
      %4885 = vrot.lane.b32.xlu0 %v4834, 32
      %v4886 = vpop.permute.xlu0 %4885
      %4887 = vrot.lane.b32.xlu0 %v4846, 32
      %v4888 = vpop.permute.xlu0 %4887
      %4889 = vrot.lane.b32.xlu0 %v4858, 32
      %v4890 = vpop.permute.xlu0 %4889
      %v4907 = vunpack.c.l.b16 %v3946
      %v4908 = vunpack.c.l.b16 %v3947
      %v4909 = vunpack.c.l.b16 %v3948
      %v4910 = vunpack.c.l.b16 %v3949
      %v4911 = vunpack.c.l.b16 %v3950
      %v4912 = vunpack.c.l.b16 %v3951
      %v4913 = vunpack.c.l.b16 %v3952
      %v4914 = vunpack.c.l.b16 %v3953
      %v4915 = vunpack.c.l.b16 %v3954
      %v4916 = vunpack.c.l.b16 %v3955
      %v4917 = vunpack.c.l.b16 %v3956
      %v4918 = vunpack.c.l.b16 %v3957
      %v4919 = vunpack.c.l.b16 %v3958
      %v4920 = vunpack.c.l.b16 %v3959
      %v4921 = vunpack.c.l.b16 %v3960
      %v4922 = vunpack.c.l.b16 %v3961
      %v4923 = vpack.c.b16 %v4540, %v4907
      %v4924 = vpack.c.b16 %v4542, %v4908
      %v4925 = vpack.c.b16 %v4544, %v4909
      %v4926 = vpack.c.b16 %v4546, %v4910
      %v4927 = vpack.c.b16 %v4548, %v4911
      %v4928 = vpack.c.b16 %v4550, %v4912
      %v4929 = vpack.c.b16 %v4552, %v4913
      %v4930 = vpack.c.b16 %v4554, %v4914
      %v4931 = vpack.c.b16 %v4556, %v4915
      %v4932 = vpack.c.b16 %v4558, %v4916
      %v4933 = vpack.c.b16 %v4560, %v4917
      %v4934 = vpack.c.b16 %v4562, %v4918
      %v4935 = vpack.c.b16 %v4564, %v4919
      %v4936 = vpack.c.b16 %v4566, %v4920
      %v4937 = vpack.c.b16 %v4568, %v4921
      %v4938 = vpack.c.b16 %v4570, %v4922
      %v4939 = vrot.slane %v4923, 1
      %v4940 = vrot.slane %v4651, 1
      %v4941 = vsel %vm1748, %v4939, %v4940
      %v4942 = vrot.slane %v4924, 1
      %v4943 = vrot.slane %v4652, 1
      %v4944 = vsel %vm1748, %v4942, %v4943
      %v4945 = vrot.slane %v4925, 1
      %v4946 = vrot.slane %v4653, 1
      %v4947 = vsel %vm1748, %v4945, %v4946
      %v4948 = vrot.slane %v4926, 1
      %v4949 = vrot.slane %v4654, 1
      %v4950 = vsel %vm1748, %v4948, %v4949
      %v4951 = vrot.slane %v4927, 1
      %v4952 = vrot.slane %v4655, 1
      %v4953 = vsel %vm1748, %v4951, %v4952
      %v4954 = vrot.slane %v4928, 1
      %v4955 = vrot.slane %v4656, 1
      %v4956 = vsel %vm1748, %v4954, %v4955
      %v4957 = vrot.slane %v4929, 1
      %v4958 = vrot.slane %v4657, 1
      %v4959 = vsel %vm1748, %v4957, %v4958
      %v4960 = vrot.slane %v4930, 1
      %v4961 = vrot.slane %v4658, 1
      %v4962 = vsel %vm1748, %v4960, %v4961
      %v4963 = vrot.slane %v4931, 1
      %v4964 = vrot.slane %v4659, 1
      %v4965 = vsel %vm1748, %v4963, %v4964
      %v4966 = vrot.slane %v4932, 1
      %v4967 = vrot.slane %v4660, 1
      %v4968 = vsel %vm1748, %v4966, %v4967
      %v4969 = vrot.slane %v4933, 1
      %v4970 = vrot.slane %v4661, 1
      %v4971 = vsel %vm1748, %v4969, %v4970
      %v4972 = vrot.slane %v4934, 1
      %v4973 = vrot.slane %v4662, 1
      %v4974 = vsel %vm1748, %v4972, %v4973
      %v4975 = vrot.slane %v4935, 1
      %v4976 = vrot.slane %v4663, 1
      %v4977 = vsel %vm1748, %v4975, %v4976
      %v4978 = vrot.slane %v4936, 1
      %v4979 = vrot.slane %v4664, 1
      %v4980 = vsel %vm1748, %v4978, %v4979
      %v4981 = vrot.slane %v4937, 1
      %v4982 = vrot.slane %v4665, 1
      %v4983 = vsel %vm1748, %v4981, %v4982
      %v4984 = vrot.slane %v4938, 1
      %v4985 = vrot.slane %v4666, 1
      %v4986 = vsel %vm1748, %v4984, %v4985
      %4987 = vrot.lane.b32.xlu0 %v4941, 40
      %v4988 = vpop.permute.xlu0 %4987
      %4989 = vrot.lane.b32.xlu0 %v4944, 40
      %v4990 = vpop.permute.xlu0 %4989
      %4991 = vrot.lane.b32.xlu0 %v4947, 40
      %v4992 = vpop.permute.xlu0 %4991
      %4993 = vrot.lane.b32.xlu0 %v4950, 40
      %v4994 = vpop.permute.xlu0 %4993
      %4995 = vrot.lane.b32.xlu0 %v4953, 40
      %v4996 = vpop.permute.xlu0 %4995
      %4997 = vrot.lane.b32.xlu0 %v4956, 40
      %v4998 = vpop.permute.xlu0 %4997
      %4999 = vrot.lane.b32.xlu0 %v4959, 40
      %v5000 = vpop.permute.xlu0 %4999
      %5001 = vrot.lane.b32.xlu0 %v4962, 40
      %v5002 = vpop.permute.xlu0 %5001
      %5003 = vrot.lane.b32.xlu0 %v4965, 40
      %v5004 = vpop.permute.xlu0 %5003
      %5005 = vrot.lane.b32.xlu0 %v4968, 40
      %v5006 = vpop.permute.xlu0 %5005
      %5007 = vrot.lane.b32.xlu0 %v4971, 40
      %v5008 = vpop.permute.xlu0 %5007
      %5009 = vrot.lane.b32.xlu0 %v4974, 40
      %v5010 = vpop.permute.xlu0 %5009
      %5011 = vrot.lane.b32.xlu0 %v4977, 40
      %v5012 = vpop.permute.xlu0 %5011
      %5013 = vrot.lane.b32.xlu0 %v4980, 40
      %v5014 = vpop.permute.xlu0 %5013
      %5015 = vrot.lane.b32.xlu0 %v4983, 40
      %v5016 = vpop.permute.xlu0 %5015
      %5017 = vrot.lane.b32.xlu0 %v4986, 40
      %v5018 = vpop.permute.xlu0 %5017
      %v5051 = vunpack.c.l.b16 %v3963
      %v5052 = vunpack.c.l.b16 %v3964
      %v5053 = vunpack.c.l.b16 %v3965
      %v5054 = vunpack.c.l.b16 %v3966
      %v5055 = vunpack.c.l.b16 %v3967
      %v5056 = vunpack.c.l.b16 %v3968
      %v5057 = vunpack.c.l.b16 %v3969
      %v5058 = vunpack.c.l.b16 %v3970
      %v5059 = vunpack.c.l.b16 %v3971
      %v5060 = vunpack.c.l.b16 %v3972
      %v5061 = vunpack.c.l.b16 %v3973
      %v5062 = vunpack.c.l.b16 %v3974
      %v5063 = vunpack.c.l.b16 %v3975
      %v5064 = vunpack.c.l.b16 %v3976
      %v5065 = vunpack.c.l.b16 %v3977
      %v5066 = vunpack.c.l.b16 %v3978
      %v5067 = vunpack.c.l.b16 %v3979
      %v5068 = vunpack.c.l.b16 %v3980
      %v5069 = vunpack.c.l.b16 %v3981
      %v5070 = vunpack.c.l.b16 %v3982
      %v5071 = vunpack.c.l.b16 %v3983
      %v5072 = vunpack.c.l.b16 %v3984
      %v5073 = vunpack.c.l.b16 %v3985
      %v5074 = vunpack.c.l.b16 %v3986
      %v5075 = vunpack.c.l.b16 %v3987
      %v5076 = vunpack.c.l.b16 %v3988
      %v5077 = vunpack.c.l.b16 %v3989
      %v5078 = vunpack.c.l.b16 %v3990
      %v5079 = vunpack.c.l.b16 %v3991
      %v5080 = vunpack.c.l.b16 %v3992
      %v5081 = vunpack.c.l.b16 %v3993
      %v5082 = vunpack.c.l.b16 %v3994
      %v5083 = vpack.c.b16 %v5052, %v5051
      %v5084 = vpack.c.b16 %v5054, %v5053
      %v5085 = vpack.c.b16 %v5056, %v5055
      %v5086 = vpack.c.b16 %v5058, %v5057
      %v5087 = vpack.c.b16 %v5060, %v5059
      %v5088 = vpack.c.b16 %v5062, %v5061
      %v5089 = vpack.c.b16 %v5064, %v5063
      %v5090 = vpack.c.b16 %v5066, %v5065
      %v5091 = vpack.c.b16 %v5068, %v5067
      %v5092 = vpack.c.b16 %v5070, %v5069
      %v5093 = vpack.c.b16 %v5072, %v5071
      %v5094 = vpack.c.b16 %v5074, %v5073
      %v5095 = vpack.c.b16 %v5076, %v5075
      %v5096 = vpack.c.b16 %v5078, %v5077
      %v5097 = vpack.c.b16 %v5080, %v5079
      %v5098 = vpack.c.b16 %v5082, %v5081
      %5099 = vrot.lane.b32.xlu0 %v5083, 48
      %v5100 = vpop.permute.xlu0 %5099
      %5101 = vrot.lane.b32.xlu0 %v5084, 48
      %v5102 = vpop.permute.xlu0 %5101
      %5103 = vrot.lane.b32.xlu0 %v5085, 48
      %v5104 = vpop.permute.xlu0 %5103
      %5105 = vrot.lane.b32.xlu0 %v5086, 48
      %v5106 = vpop.permute.xlu0 %5105
      %5107 = vrot.lane.b32.xlu0 %v5087, 48
      %v5108 = vpop.permute.xlu0 %5107
      %5109 = vrot.lane.b32.xlu0 %v5088, 48
      %v5110 = vpop.permute.xlu0 %5109
      %5111 = vrot.lane.b32.xlu0 %v5089, 48
      %v5112 = vpop.permute.xlu0 %5111
      %5113 = vrot.lane.b32.xlu0 %v5090, 48
      %v5114 = vpop.permute.xlu0 %5113
      %5115 = vrot.lane.b32.xlu0 %v5091, 48
      %v5116 = vpop.permute.xlu0 %5115
      %5117 = vrot.lane.b32.xlu0 %v5092, 48
      %v5118 = vpop.permute.xlu0 %5117
      %5119 = vrot.lane.b32.xlu0 %v5093, 48
      %v5120 = vpop.permute.xlu0 %5119
      %5121 = vrot.lane.b32.xlu0 %v5094, 48
      %v5122 = vpop.permute.xlu0 %5121
      %5123 = vrot.lane.b32.xlu0 %v5095, 48
      %v5124 = vpop.permute.xlu0 %5123
      %5125 = vrot.lane.b32.xlu0 %v5096, 48
      %v5126 = vpop.permute.xlu0 %5125
      %5127 = vrot.lane.b32.xlu0 %v5097, 48
      %v5128 = vpop.permute.xlu0 %5127
      %5129 = vrot.lane.b32.xlu0 %v5098, 48
      %v5130 = vpop.permute.xlu0 %5129
      %v5147 = vunpack.c.l.b16 %v3995
      %v5148 = vunpack.c.l.b16 %v3996
      %v5149 = vunpack.c.l.b16 %v3997
      %v5150 = vunpack.c.l.b16 %v3998
      %v5151 = vunpack.c.l.b16 %v3999
      %v5152 = vunpack.c.l.b16 %v4000
      %v5153 = vunpack.c.l.b16 %v4001
      %v5154 = vunpack.c.l.b16 %v4002
      %v5155 = vunpack.c.l.b16 %v4003
      %v5156 = vunpack.c.l.b16 %v4004
      %v5157 = vunpack.c.l.b16 %v4005
      %v5158 = vunpack.c.l.b16 %v4006
      %v5159 = vunpack.c.l.b16 %v4007
      %v5160 = vunpack.c.l.b16 %v4008
      %v5161 = vunpack.c.l.b16 %v4009
      %v5162 = vunpack.c.l.b16 %v4010
      %v5163 = vpack.c.b16 %v5147, %v5147
      %v5164 = vpack.c.b16 %v5148, %v5148
      %v5165 = vpack.c.b16 %v5149, %v5149
      %v5166 = vpack.c.b16 %v5150, %v5150
      %v5167 = vpack.c.b16 %v5151, %v5151
      %v5168 = vpack.c.b16 %v5152, %v5152
      %v5169 = vpack.c.b16 %v5153, %v5153
      %v5170 = vpack.c.b16 %v5154, %v5154
      %v5171 = vpack.c.b16 %v5155, %v5155
      %v5172 = vpack.c.b16 %v5156, %v5156
      %v5173 = vpack.c.b16 %v5157, %v5157
      %v5174 = vpack.c.b16 %v5158, %v5158
      %v5175 = vpack.c.b16 %v5159, %v5159
      %v5176 = vpack.c.b16 %v5160, %v5160
      %v5177 = vpack.c.b16 %v5161, %v5161
      %v5178 = vpack.c.b16 %v5162, %v5162
      %v5180 = vshrl.u32 %v5083, 16
      %v5182 = vshll.u32 %v5083, 16
      %v5184 = vrot.slane %v5182, 1
      %v5185 = vor.u32 %v5180, %v5184
      %v5187 = vshll.u32 %v5163, 16
      %v5189 = vrot.slane %v5187, 1
      %v5190 = vsel %vm1475, %v5185, %v5189
      %v5192 = vshrl.u32 %v5084, 16
      %v5194 = vshll.u32 %v5084, 16
      %v5196 = vrot.slane %v5194, 1
      %v5197 = vor.u32 %v5192, %v5196
      %v5199 = vshll.u32 %v5164, 16
      %v5201 = vrot.slane %v5199, 1
      %v5202 = vsel %vm1475, %v5197, %v5201
      %v5204 = vshrl.u32 %v5085, 16
      %v5206 = vshll.u32 %v5085, 16
      %v5208 = vrot.slane %v5206, 1
      %v5209 = vor.u32 %v5204, %v5208
      %v5211 = vshll.u32 %v5165, 16
      %v5213 = vrot.slane %v5211, 1
      %v5214 = vsel %vm1475, %v5209, %v5213
      %v5216 = vshrl.u32 %v5086, 16
      %v5218 = vshll.u32 %v5086, 16
      %v5220 = vrot.slane %v5218, 1
      %v5221 = vor.u32 %v5216, %v5220
      %v5223 = vshll.u32 %v5166, 16
      %v5225 = vrot.slane %v5223, 1
      %v5226 = vsel %vm1475, %v5221, %v5225
      %v5228 = vshrl.u32 %v5087, 16
      %v5230 = vshll.u32 %v5087, 16
      %v5232 = vrot.slane %v5230, 1
      %v5233 = vor.u32 %v5228, %v5232
      %v5235 = vshll.u32 %v5167, 16
      %v5237 = vrot.slane %v5235, 1
      %v5238 = vsel %vm1475, %v5233, %v5237
      %v5240 = vshrl.u32 %v5088, 16
      %v5242 = vshll.u32 %v5088, 16
      %v5244 = vrot.slane %v5242, 1
      %v5245 = vor.u32 %v5240, %v5244
      %v5247 = vshll.u32 %v5168, 16
      %v5249 = vrot.slane %v5247, 1
      %v5250 = vsel %vm1475, %v5245, %v5249
      %v5252 = vshrl.u32 %v5089, 16
      %v5254 = vshll.u32 %v5089, 16
      %v5256 = vrot.slane %v5254, 1
      %v5257 = vor.u32 %v5252, %v5256
      %v5259 = vshll.u32 %v5169, 16
      %v5261 = vrot.slane %v5259, 1
      %v5262 = vsel %vm1475, %v5257, %v5261
      %v5264 = vshrl.u32 %v5090, 16
      %v5266 = vshll.u32 %v5090, 16
      %v5268 = vrot.slane %v5266, 1
      %v5269 = vor.u32 %v5264, %v5268
      %v5271 = vshll.u32 %v5170, 16
      %v5273 = vrot.slane %v5271, 1
      %v5274 = vsel %vm1475, %v5269, %v5273
      %v5276 = vshrl.u32 %v5091, 16
      %v5278 = vshll.u32 %v5091, 16
      %v5280 = vrot.slane %v5278, 1
      %v5281 = vor.u32 %v5276, %v5280
      %v5283 = vshll.u32 %v5171, 16
      %v5285 = vrot.slane %v5283, 1
      %v5286 = vsel %vm1475, %v5281, %v5285
      %v5288 = vshrl.u32 %v5092, 16
      %v5290 = vshll.u32 %v5092, 16
      %v5292 = vrot.slane %v5290, 1
      %v5293 = vor.u32 %v5288, %v5292
      %v5295 = vshll.u32 %v5172, 16
      %v5297 = vrot.slane %v5295, 1
      %v5298 = vsel %vm1475, %v5293, %v5297
      %v5300 = vshrl.u32 %v5093, 16
      %v5302 = vshll.u32 %v5093, 16
      %v5304 = vrot.slane %v5302, 1
      %v5305 = vor.u32 %v5300, %v5304
      %v5307 = vshll.u32 %v5173, 16
      %v5309 = vrot.slane %v5307, 1
      %v5310 = vsel %vm1475, %v5305, %v5309
      %v5312 = vshrl.u32 %v5094, 16
      %v5314 = vshll.u32 %v5094, 16
      %v5316 = vrot.slane %v5314, 1
      %v5317 = vor.u32 %v5312, %v5316
      %v5319 = vshll.u32 %v5174, 16
      %v5321 = vrot.slane %v5319, 1
      %v5322 = vsel %vm1475, %v5317, %v5321
      %v5324 = vshrl.u32 %v5095, 16
      %v5326 = vshll.u32 %v5095, 16
      %v5328 = vrot.slane %v5326, 1
      %v5329 = vor.u32 %v5324, %v5328
      %v5331 = vshll.u32 %v5175, 16
      %v5333 = vrot.slane %v5331, 1
      %v5334 = vsel %vm1475, %v5329, %v5333
      %v5336 = vshrl.u32 %v5096, 16
      %v5338 = vshll.u32 %v5096, 16
      %v5340 = vrot.slane %v5338, 1
      %v5341 = vor.u32 %v5336, %v5340
      %v5343 = vshll.u32 %v5176, 16
      %v5345 = vrot.slane %v5343, 1
      %v5346 = vsel %vm1475, %v5341, %v5345
      %v5348 = vshrl.u32 %v5097, 16
      %v5350 = vshll.u32 %v5097, 16
      %v5352 = vrot.slane %v5350, 1
      %v5353 = vor.u32 %v5348, %v5352
      %v5355 = vshll.u32 %v5177, 16
      %v5357 = vrot.slane %v5355, 1
      %v5358 = vsel %vm1475, %v5353, %v5357
      %v5360 = vshrl.u32 %v5098, 16
      %v5362 = vshll.u32 %v5098, 16
      %v5364 = vrot.slane %v5362, 1
      %v5365 = vor.u32 %v5360, %v5364
      %v5367 = vshll.u32 %v5178, 16
      %v5369 = vrot.slane %v5367, 1
      %v5370 = vsel %vm1475, %v5365, %v5369
      %5371 = vrot.lane.b32.xlu0 %v5190, 56
      %v5372 = vpop.permute.xlu0 %5371
      %5373 = vrot.lane.b32.xlu0 %v5202, 56
      %v5374 = vpop.permute.xlu0 %5373
      %5375 = vrot.lane.b32.xlu0 %v5214, 56
      %v5376 = vpop.permute.xlu0 %5375
      %5377 = vrot.lane.b32.xlu0 %v5226, 56
      %v5378 = vpop.permute.xlu0 %5377
      %5379 = vrot.lane.b32.xlu0 %v5238, 56
      %v5380 = vpop.permute.xlu0 %5379
      %5381 = vrot.lane.b32.xlu0 %v5250, 56
      %v5382 = vpop.permute.xlu0 %5381
      %5383 = vrot.lane.b32.xlu0 %v5262, 56
      %v5384 = vpop.permute.xlu0 %5383
      %5385 = vrot.lane.b32.xlu0 %v5274, 56
      %v5386 = vpop.permute.xlu0 %5385
      %5387 = vrot.lane.b32.xlu0 %v5286, 56
      %v5388 = vpop.permute.xlu0 %5387
      %5389 = vrot.lane.b32.xlu0 %v5298, 56
      %v5390 = vpop.permute.xlu0 %5389
      %5391 = vrot.lane.b32.xlu0 %v5310, 56
      %v5392 = vpop.permute.xlu0 %5391
      %5393 = vrot.lane.b32.xlu0 %v5322, 56
      %v5394 = vpop.permute.xlu0 %5393
      %5395 = vrot.lane.b32.xlu0 %v5334, 56
      %v5396 = vpop.permute.xlu0 %5395
      %5397 = vrot.lane.b32.xlu0 %v5346, 56
      %v5398 = vpop.permute.xlu0 %5397
      %5399 = vrot.lane.b32.xlu0 %v5358, 56
      %v5400 = vpop.permute.xlu0 %5399
      %5401 = vrot.lane.b32.xlu0 %v5370, 56
      %v5402 = vpop.permute.xlu0 %5401
      %v5419 = vunpack.c.l.b16 %v4011
      %v5420 = vunpack.c.l.b16 %v4012
      %v5421 = vunpack.c.l.b16 %v4013
      %v5422 = vunpack.c.l.b16 %v4014
      %v5423 = vunpack.c.l.b16 %v4015
      %v5424 = vunpack.c.l.b16 %v4016
      %v5425 = vunpack.c.l.b16 %v4017
      %v5426 = vunpack.c.l.b16 %v4018
      %v5427 = vunpack.c.l.b16 %v4019
      %v5428 = vunpack.c.l.b16 %v4020
      %v5429 = vunpack.c.l.b16 %v4021
      %v5430 = vunpack.c.l.b16 %v4022
      %v5431 = vunpack.c.l.b16 %v4023
      %v5432 = vunpack.c.l.b16 %v4024
      %v5433 = vunpack.c.l.b16 %v4025
      %v5434 = vunpack.c.l.b16 %v4026
      %v5435 = vpack.c.b16 %v5052, %v5419
      %v5436 = vpack.c.b16 %v5054, %v5420
      %v5437 = vpack.c.b16 %v5056, %v5421
      %v5438 = vpack.c.b16 %v5058, %v5422
      %v5439 = vpack.c.b16 %v5060, %v5423
      %v5440 = vpack.c.b16 %v5062, %v5424
      %v5441 = vpack.c.b16 %v5064, %v5425
      %v5442 = vpack.c.b16 %v5066, %v5426
      %v5443 = vpack.c.b16 %v5068, %v5427
      %v5444 = vpack.c.b16 %v5070, %v5428
      %v5445 = vpack.c.b16 %v5072, %v5429
      %v5446 = vpack.c.b16 %v5074, %v5430
      %v5447 = vpack.c.b16 %v5076, %v5431
      %v5448 = vpack.c.b16 %v5078, %v5432
      %v5449 = vpack.c.b16 %v5080, %v5433
      %v5450 = vpack.c.b16 %v5082, %v5434
      %v5451 = vrot.slane %v5435, 1
      %v5452 = vrot.slane %v5163, 1
      %v5453 = vsel %vm1748, %v5451, %v5452
      %v5454 = vrot.slane %v5436, 1
      %v5455 = vrot.slane %v5164, 1
      %v5456 = vsel %vm1748, %v5454, %v5455
      %v5457 = vrot.slane %v5437, 1
      %v5458 = vrot.slane %v5165, 1
      %v5459 = vsel %vm1748, %v5457, %v5458
      %v5460 = vrot.slane %v5438, 1
      %v5461 = vrot.slane %v5166, 1
      %v5462 = vsel %vm1748, %v5460, %v5461
      %v5463 = vrot.slane %v5439, 1
      %v5464 = vrot.slane %v5167, 1
      %v5465 = vsel %vm1748, %v5463, %v5464
      %v5466 = vrot.slane %v5440, 1
      %v5467 = vrot.slane %v5168, 1
      %v5468 = vsel %vm1748, %v5466, %v5467
      %v5469 = vrot.slane %v5441, 1
      %v5470 = vrot.slane %v5169, 1
      %v5471 = vsel %vm1748, %v5469, %v5470
      %v5472 = vrot.slane %v5442, 1
      %v5473 = vrot.slane %v5170, 1
      %v5474 = vsel %vm1748, %v5472, %v5473
      %v5475 = vrot.slane %v5443, 1
      %v5476 = vrot.slane %v5171, 1
      %v5477 = vsel %vm1748, %v5475, %v5476
      %v5478 = vrot.slane %v5444, 1
      %v5479 = vrot.slane %v5172, 1
      %v5480 = vsel %vm1748, %v5478, %v5479
      %v5481 = vrot.slane %v5445, 1
      %v5482 = vrot.slane %v5173, 1
      %v5483 = vsel %vm1748, %v5481, %v5482
      %v5484 = vrot.slane %v5446, 1
      %v5485 = vrot.slane %v5174, 1
      %v5486 = vsel %vm1748, %v5484, %v5485
      %v5487 = vrot.slane %v5447, 1
      %v5488 = vrot.slane %v5175, 1
      %v5489 = vsel %vm1748, %v5487, %v5488
      %v5490 = vrot.slane %v5448, 1
      %v5491 = vrot.slane %v5176, 1
      %v5492 = vsel %vm1748, %v5490, %v5491
      %v5493 = vrot.slane %v5449, 1
      %v5494 = vrot.slane %v5177, 1
      %v5495 = vsel %vm1748, %v5493, %v5494
      %v5496 = vrot.slane %v5450, 1
      %v5497 = vrot.slane %v5178, 1
      %v5498 = vsel %vm1748, %v5496, %v5497
      %5499 = vrot.lane.b32.xlu0 %v5453, 64
      %v5500 = vpop.permute.xlu0 %5499
      %5501 = vrot.lane.b32.xlu0 %v5456, 64
      %v5502 = vpop.permute.xlu0 %5501
      %5503 = vrot.lane.b32.xlu0 %v5459, 64
      %v5504 = vpop.permute.xlu0 %5503
      %5505 = vrot.lane.b32.xlu0 %v5462, 64
      %v5506 = vpop.permute.xlu0 %5505
      %5507 = vrot.lane.b32.xlu0 %v5465, 64
      %v5508 = vpop.permute.xlu0 %5507
      %5509 = vrot.lane.b32.xlu0 %v5468, 64
      %v5510 = vpop.permute.xlu0 %5509
      %5511 = vrot.lane.b32.xlu0 %v5471, 64
      %v5512 = vpop.permute.xlu0 %5511
      %5513 = vrot.lane.b32.xlu0 %v5474, 64
      %v5514 = vpop.permute.xlu0 %5513
      %5515 = vrot.lane.b32.xlu0 %v5477, 64
      %v5516 = vpop.permute.xlu0 %5515
      %5517 = vrot.lane.b32.xlu0 %v5480, 64
      %v5518 = vpop.permute.xlu0 %5517
      %5519 = vrot.lane.b32.xlu0 %v5483, 64
      %v5520 = vpop.permute.xlu0 %5519
      %5521 = vrot.lane.b32.xlu0 %v5486, 64
      %v5522 = vpop.permute.xlu0 %5521
      %5523 = vrot.lane.b32.xlu0 %v5489, 64
      %v5524 = vpop.permute.xlu0 %5523
      %5525 = vrot.lane.b32.xlu0 %v5492, 64
      %v5526 = vpop.permute.xlu0 %5525
      %5527 = vrot.lane.b32.xlu0 %v5495, 64
      %v5528 = vpop.permute.xlu0 %5527
      %5529 = vrot.lane.b32.xlu0 %v5498, 64
      %v5530 = vpop.permute.xlu0 %5529
      %v5532 = vsel %vm2886, %v4091, %v4348
      %v5534 = vsel %vm2886, %v4092, %v4350
      %v5536 = vsel %vm2886, %v4093, %v4352
      %v5538 = vsel %vm2886, %v4094, %v4354
      %v5540 = vsel %vm2886, %v4095, %v4356
      %v5542 = vsel %vm2886, %v4096, %v4358
      %v5544 = vsel %vm2886, %v4097, %v4360
      %v5546 = vsel %vm2886, %v4098, %v4362
      %v5548 = vsel %vm2886, %v4099, %v4364
      %v5550 = vsel %vm2886, %v4100, %v4366
      %v5552 = vsel %vm2886, %v4101, %v4368
      %v5554 = vsel %vm2886, %v4102, %v4370
      %v5556 = vsel %vm2886, %v4103, %v4372
      %v5558 = vsel %vm2886, %v4104, %v4374
      %v5560 = vsel %vm2886, %v4105, %v4376
      %v5562 = vsel %vm2886, %v4106, %v4378
      %v5564 = vsel %vm2952, %v5532, %v4476
      %v5566 = vsel %vm2952, %v5534, %v4478
      %v5568 = vsel %vm2952, %v5536, %v4480
      %v5570 = vsel %vm2952, %v5538, %v4482
      %v5572 = vsel %vm2952, %v5540, %v4484
      %v5574 = vsel %vm2952, %v5542, %v4486
      %v5576 = vsel %vm2952, %v5544, %v4488
      %v5578 = vsel %vm2952, %v5546, %v4490
      %v5580 = vsel %vm2952, %v5548, %v4492
      %v5582 = vsel %vm2952, %v5550, %v4494
      %v5584 = vsel %vm2952, %v5552, %v4496
      %v5586 = vsel %vm2952, %v5554, %v4498
      %v5588 = vsel %vm2952, %v5556, %v4500
      %v5590 = vsel %vm2952, %v5558, %v4502
      %v5592 = vsel %vm2952, %v5560, %v4504
      %v5594 = vsel %vm2952, %v5562, %v4506
      %v5596 = vsel %vm3018, %v5564, %v4588
      %v5598 = vsel %vm3018, %v5566, %v4590
      %v5600 = vsel %vm3018, %v5568, %v4592
      %v5602 = vsel %vm3018, %v5570, %v4594
      %v5604 = vsel %vm3018, %v5572, %v4596
      %v5606 = vsel %vm3018, %v5574, %v4598
      %v5608 = vsel %vm3018, %v5576, %v4600
      %v5610 = vsel %vm3018, %v5578, %v4602
      %v5612 = vsel %vm3018, %v5580, %v4604
      %v5614 = vsel %vm3018, %v5582, %v4606
      %v5616 = vsel %vm3018, %v5584, %v4608
      %v5618 = vsel %vm3018, %v5586, %v4610
      %v5620 = vsel %vm3018, %v5588, %v4612
      %v5622 = vsel %vm3018, %v5590, %v4614
      %v5624 = vsel %vm3018, %v5592, %v4616
      %v5626 = vsel %vm3018, %v5594, %v4618
      %v5628 = vsel %vm3084, %v5596, %v4860
      %v5630 = vsel %vm3084, %v5598, %v4862
      %v5632 = vsel %vm3084, %v5600, %v4864
      %v5634 = vsel %vm3084, %v5602, %v4866
      %v5636 = vsel %vm3084, %v5604, %v4868
      %v5638 = vsel %vm3084, %v5606, %v4870
      %v5640 = vsel %vm3084, %v5608, %v4872
      %v5642 = vsel %vm3084, %v5610, %v4874
      %v5644 = vsel %vm3084, %v5612, %v4876
      %v5646 = vsel %vm3084, %v5614, %v4878
      %v5648 = vsel %vm3084, %v5616, %v4880
      %v5650 = vsel %vm3084, %v5618, %v4882
      %v5652 = vsel %vm3084, %v5620, %v4884
      %v5654 = vsel %vm3084, %v5622, %v4886
      %v5656 = vsel %vm3084, %v5624, %v4888
      %v5658 = vsel %vm3084, %v5626, %v4890
      %vm5659 = vcmask 326656
      %v5661 = vsel %vm5659, %v5628, %v4988
      %v5663 = vsel %vm5659, %v5630, %v4990
      %v5665 = vsel %vm5659, %v5632, %v4992
      %v5667 = vsel %vm5659, %v5634, %v4994
      %v5669 = vsel %vm5659, %v5636, %v4996
      %v5671 = vsel %vm5659, %v5638, %v4998
      %v5673 = vsel %vm5659, %v5640, %v5000
      %v5675 = vsel %vm5659, %v5642, %v5002
      %v5677 = vsel %vm5659, %v5644, %v5004
      %v5679 = vsel %vm5659, %v5646, %v5006
      %v5681 = vsel %vm5659, %v5648, %v5008
      %v5683 = vsel %vm5659, %v5650, %v5010
      %v5685 = vsel %vm5659, %v5652, %v5012
      %v5687 = vsel %vm5659, %v5654, %v5014
      %v5689 = vsel %vm5659, %v5656, %v5016
      %v5691 = vsel %vm5659, %v5658, %v5018
      %vm5692 = vcmask 392192
      %v5694 = vsel %vm5692, %v5661, %v5100
      %v5696 = vsel %vm5692, %v5663, %v5102
      %v5698 = vsel %vm5692, %v5665, %v5104
      %v5700 = vsel %vm5692, %v5667, %v5106
      %v5702 = vsel %vm5692, %v5669, %v5108
      %v5704 = vsel %vm5692, %v5671, %v5110
      %v5706 = vsel %vm5692, %v5673, %v5112
      %v5708 = vsel %vm5692, %v5675, %v5114
      %v5710 = vsel %vm5692, %v5677, %v5116
      %v5712 = vsel %vm5692, %v5679, %v5118
      %v5714 = vsel %vm5692, %v5681, %v5120
      %v5716 = vsel %vm5692, %v5683, %v5122
      %v5718 = vsel %vm5692, %v5685, %v5124
      %v5720 = vsel %vm5692, %v5687, %v5126
      %v5722 = vsel %vm5692, %v5689, %v5128
      %v5724 = vsel %vm5692, %v5691, %v5130
      %vm5725 = vcmask 457728
      %v5727 = vsel %vm5725, %v5694, %v5372
      %v5729 = vsel %vm5725, %v5696, %v5374
      %v5731 = vsel %vm5725, %v5698, %v5376
      %v5733 = vsel %vm5725, %v5700, %v5378
      %v5735 = vsel %vm5725, %v5702, %v5380
      %v5737 = vsel %vm5725, %v5704, %v5382
      %v5739 = vsel %vm5725, %v5706, %v5384
      %v5741 = vsel %vm5725, %v5708, %v5386
      %v5743 = vsel %vm5725, %v5710, %v5388
      %v5745 = vsel %vm5725, %v5712, %v5390
      %v5747 = vsel %vm5725, %v5714, %v5392
      %v5749 = vsel %vm5725, %v5716, %v5394
      %v5751 = vsel %vm5725, %v5718, %v5396
      %v5753 = vsel %vm5725, %v5720, %v5398
      %v5755 = vsel %vm5725, %v5722, %v5400
      %v5757 = vsel %vm5725, %v5724, %v5402
      %vm5758 = vcmask 523264
      %v5760 = vsel %vm5758, %v5727, %v5500
      %v5762 = vsel %vm5758, %v5729, %v5502
      %v5764 = vsel %vm5758, %v5731, %v5504
      %v5766 = vsel %vm5758, %v5733, %v5506
      %v5768 = vsel %vm5758, %v5735, %v5508
      %v5770 = vsel %vm5758, %v5737, %v5510
      %v5772 = vsel %vm5758, %v5739, %v5512
      %v5774 = vsel %vm5758, %v5741, %v5514
      %v5776 = vsel %vm5758, %v5743, %v5516
      %v5778 = vsel %vm5758, %v5745, %v5518
      %v5780 = vsel %vm5758, %v5747, %v5520
      %v5782 = vsel %vm5758, %v5749, %v5522
      %v5784 = vsel %vm5758, %v5751, %v5524
      %v5786 = vsel %vm5758, %v5753, %v5526
      %v5788 = vsel %vm5758, %v5755, %v5528
      %v5790 = vsel %vm5758, %v5757, %v5530
      %v5791 = vld [vmem:[%s6] sm:$0xf]
      %v5792 = vld [vmem:[%s6 + $0x4] sm:$0xf]
      %v5793 = vld [vmem:[%s6 + $0x8] sm:$0xf]
      %v5794 = vld [vmem:[%s6 + $0xc] sm:$0xf]
      %v5795 = vld [vmem:[%s6 + $0x10] sm:$0xf]
      %v5796 = vld [vmem:[%s6 + $0x14] sm:$0xf]
      %v5797 = vld [vmem:[%s6 + $0x18] sm:$0xf]
      %v5798 = vld [vmem:[%s6 + $0x1c] sm:$0xf]
      %v5799 = vld [vmem:[%s6 + $0x20] sm:$0xf]
      %v5800 = vpack.c.bf16 %v550, %v549
      %v5801 = vpack.c.bf16 %v552, %v551
      %v5802 = vpack.c.bf16 %v554, %v553
      %v5803 = vpack.c.bf16 %v556, %v555
      %v5804 = vpack.c.bf16 %v558, %v557
      %v5805 = vpack.c.bf16 %v560, %v559
      %v5806 = vpack.c.bf16 %v562, %v561
      %v5807 = vpack.c.bf16 %v564, %v563
      %v5808 = vpack.c.bf16 %v566, %v565
      %v5809 = vpack.c.bf16 %v568, %v567
      %v5810 = vpack.c.bf16 %v570, %v569
      %v5811 = vpack.c.bf16 %v572, %v571
      %v5812 = vpack.c.bf16 %v574, %v573
      %v5813 = vpack.c.bf16 %v576, %v575
      %v5814 = vpack.c.bf16 %v578, %v577
      %v5815 = vpack.c.bf16 %v580, %v579
      %v5816 = vld [vmem:[%s7] sm:$0x3]
      %v5818 = vsel %vm2853, %v5800, 0
      %v5821 = vsel %vm2853, %v5801, 0
      %v5824 = vsel %vm2853, %v5802, 0
      %v5827 = vsel %vm2853, %v5803, 0
      %v5830 = vsel %vm2853, %v5804, 0
      %v5833 = vsel %vm2853, %v5805, 0
      %v5836 = vsel %vm2853, %v5806, 0
      %v5839 = vsel %vm2853, %v5807, 0
      %v5842 = vsel %vm2853, %v5808, 0
      %v5845 = vsel %vm2853, %v5809, 0
      %v5848 = vsel %vm2853, %v5810, 0
      %v5851 = vsel %vm2853, %v5811, 0
      %v5854 = vsel %vm2853, %v5812, 0
      %v5857 = vsel %vm2853, %v5813, 0
      %v5860 = vsel %vm2853, %v5814, 0
      %v5863 = vsel %vm2853, %v5815, 0
      %v5866 = vsel %vm3170, %v5816, 0
      %5868 = vmatpush.bf16.msra.mxu0 0
      %5869 = vmatpush.bf16.msra.mxu0 0
      %5870 = vmatpush.bf16.msra.mxu0 0
      %5871 = vmatpush.bf16.msra.mxu0 0
      %5872 = vmatpush.bf16.msra.mxu0 0
      %5873 = vmatpush.bf16.msra.mxu0 0
      %5874 = vmatpush.bf16.msra.mxu0 0
      %5875 = vmatpush.bf16.msra.mxu0 %v5866
      %5876 = vmatmul.bf16.gmra.mxu0 %v5818
      %v5877 = vpop.f32.mrf.mxu0
      %v5878 = vadd.f32 0.0, %v5877
      %v5879 = vpop.f32.mrf.mxu0
      %v5880 = vadd.f32 0.0, %v5879
      %5881 = vmatmul.bf16.gmra.mxu0 %v5821
      %v5882 = vpop.f32.mrf.mxu0
      %v5883 = vadd.f32 0.0, %v5882
      %v5884 = vpop.f32.mrf.mxu0
      %v5885 = vadd.f32 0.0, %v5884
      %5886 = vmatmul.bf16.gmra.mxu0 %v5824
      %v5887 = vpop.f32.mrf.mxu0
      %v5888 = vadd.f32 0.0, %v5887
      %v5889 = vpop.f32.mrf.mxu0
      %v5890 = vadd.f32 0.0, %v5889
      %5891 = vmatmul.bf16.gmra.mxu0 %v5827
      %v5892 = vpop.f32.mrf.mxu0
      %v5893 = vadd.f32 0.0, %v5892
      %v5894 = vpop.f32.mrf.mxu0
      %v5895 = vadd.f32 0.0, %v5894
      %5896 = vmatmul.bf16.gmra.mxu0 %v5830
      %v5897 = vpop.f32.mrf.mxu0
      %v5898 = vadd.f32 0.0, %v5897
      %v5899 = vpop.f32.mrf.mxu0
      %v5900 = vadd.f32 0.0, %v5899
      %5901 = vmatmul.bf16.gmra.mxu0 %v5833
      %v5902 = vpop.f32.mrf.mxu0
      %v5903 = vadd.f32 0.0, %v5902
      %v5904 = vpop.f32.mrf.mxu0
      %v5905 = vadd.f32 0.0, %v5904
      %5906 = vmatmul.bf16.gmra.mxu0 %v5836
      %v5907 = vpop.f32.mrf.mxu0
      %v5908 = vadd.f32 0.0, %v5907
      %v5909 = vpop.f32.mrf.mxu0
      %v5910 = vadd.f32 0.0, %v5909
      %5911 = vmatmul.bf16.gmra.mxu0 %v5839
      %v5912 = vpop.f32.mrf.mxu0
      %v5913 = vadd.f32 0.0, %v5912
      %v5914 = vpop.f32.mrf.mxu0
      %v5915 = vadd.f32 0.0, %v5914
      %5916 = vmatmul.bf16.gmra.mxu0 %v5842
      %v5917 = vpop.f32.mrf.mxu0
      %v5918 = vadd.f32 0.0, %v5917
      %v5919 = vpop.f32.mrf.mxu0
      %v5920 = vadd.f32 0.0, %v5919
      %5921 = vmatmul.bf16.gmra.mxu0 %v5845
      %v5922 = vpop.f32.mrf.mxu0
      %v5923 = vadd.f32 0.0, %v5922
      %v5924 = vpop.f32.mrf.mxu0
      %v5925 = vadd.f32 0.0, %v5924
      %5926 = vmatmul.bf16.gmra.mxu0 %v5848
      %v5927 = vpop.f32.mrf.mxu0
      %v5928 = vadd.f32 0.0, %v5927
      %v5929 = vpop.f32.mrf.mxu0
      %v5930 = vadd.f32 0.0, %v5929
      %5931 = vmatmul.bf16.gmra.mxu0 %v5851
      %v5932 = vpop.f32.mrf.mxu0
      %v5933 = vadd.f32 0.0, %v5932
      %v5934 = vpop.f32.mrf.mxu0
      %v5935 = vadd.f32 0.0, %v5934
      %5936 = vmatmul.bf16.gmra.mxu0 %v5854
      %v5937 = vpop.f32.mrf.mxu0
      %v5938 = vadd.f32 0.0, %v5937
      %v5939 = vpop.f32.mrf.mxu0
      %v5940 = vadd.f32 0.0, %v5939
      %5941 = vmatmul.bf16.gmra.mxu0 %v5857
      %v5942 = vpop.f32.mrf.mxu0
      %v5943 = vadd.f32 0.0, %v5942
      %v5944 = vpop.f32.mrf.mxu0
      %v5945 = vadd.f32 0.0, %v5944
      %5946 = vmatmul.bf16.gmra.mxu0 %v5860
      %v5947 = vpop.f32.mrf.mxu0
      %v5948 = vadd.f32 0.0, %v5947
      %v5949 = vpop.f32.mrf.mxu0
      %v5950 = vadd.f32 0.0, %v5949
      %5951 = vmatmul.bf16.gmra.mxu0 %v5863
      %v5952 = vpop.f32.mrf.mxu0
      %v5953 = vadd.f32 0.0, %v5952
      %v5954 = vpop.f32.mrf.mxu0
      %v5955 = vadd.f32 0.0, %v5954
      %5956 = vdwg.mxu0
      %v5966 = vunpack.c.l.b16 %v5791
      %v5967 = vunpack.c.l.b16 %v5792
      %v5968 = vunpack.c.l.b16 %v5793
      %v5969 = vunpack.c.l.b16 %v5794
      %v5970 = vunpack.c.l.b16 %v5795
      %v5971 = vunpack.c.l.b16 %v5796
      %v5972 = vunpack.c.l.b16 %v5797
      %v5973 = vunpack.c.l.b16 %v5798
      %v5974 = vunpack.c.l.b16 %v5799
      %v5975 = vpack.c.b16 %v5967, %v5966
      %v5976 = vpack.c.b16 %v5969, %v5968
      %v5977 = vpack.c.b16 %v5971, %v5970
      %v5978 = vpack.c.b16 %v5973, %v5972
      %v5979 = vpack.c.b16 %v5974, %v5974
      %vm5984 = vcmask 588800
      %v5985 = vsel %vm5984, %v5760, 0
      %v5987 = vsel %vm5984, %v5762, 0
      %v5989 = vsel %vm5984, %v5764, 0
      %v5991 = vsel %vm5984, %v5766, 0
      %v5993 = vsel %vm5984, %v5768, 0
      %v5995 = vsel %vm5984, %v5770, 0
      %v5997 = vsel %vm5984, %v5772, 0
      %v5999 = vsel %vm5984, %v5774, 0
      %v6001 = vsel %vm5984, %v5776, 0
      %v6003 = vsel %vm5984, %v5778, 0
      %v6005 = vsel %vm5984, %v5780, 0
      %v6007 = vsel %vm5984, %v5782, 0
      %v6009 = vsel %vm5984, %v5784, 0
      %v6011 = vsel %vm5984, %v5786, 0
      %v6013 = vsel %vm5984, %v5788, 0
      %v6015 = vsel %vm5984, %v5790, 0
      %vm6017 = vcmask 1043456
      %v6019 = vsel %vm6017, %v5979, 0
      %6021 = vmatpush.bf16.msra.mxu0 0
      %6022 = vmatpush.bf16.msra.mxu0 0
      %6023 = vmatpush.bf16.msra.mxu0 0
      %6024 = vmatpush.bf16.msra.mxu0 %v6019
      %6025 = vmatpush.bf16.msra.mxu0 %v5978
      %6026 = vmatpush.bf16.msra.mxu0 %v5977
      %6027 = vmatpush.bf16.msra.mxu0 %v5976
      %6028 = vmatpush.bf16.msra.mxu0 %v5975
      %6029 = vmatmul.bf16.gmra.mxu0 %v5985
      %v6030 = vpop.f32.mrf.mxu0
      %v6031 = vadd.f32 %v5878, %v6030
      %v6032 = vpop.f32.mrf.mxu0
      %v6033 = vadd.f32 %v5880, %v6032
      %6034 = vmatmul.bf16.gmra.mxu0 %v5987
      %v6035 = vpop.f32.mrf.mxu0
      %v6036 = vadd.f32 %v5883, %v6035
      %v6037 = vpop.f32.mrf.mxu0
      %v6038 = vadd.f32 %v5885, %v6037
      %6039 = vmatmul.bf16.gmra.mxu0 %v5989
      %v6040 = vpop.f32.mrf.mxu0
      %v6041 = vadd.f32 %v5888, %v6040
      %v6042 = vpop.f32.mrf.mxu0
      %v6043 = vadd.f32 %v5890, %v6042
      %6044 = vmatmul.bf16.gmra.mxu0 %v5991
      %v6045 = vpop.f32.mrf.mxu0
      %v6046 = vadd.f32 %v5893, %v6045
      %v6047 = vpop.f32.mrf.mxu0
      %v6048 = vadd.f32 %v5895, %v6047
      %6049 = vmatmul.bf16.gmra.mxu0 %v5993
      %v6050 = vpop.f32.mrf.mxu0
      %v6051 = vadd.f32 %v5898, %v6050
      %v6052 = vpop.f32.mrf.mxu0
      %v6053 = vadd.f32 %v5900, %v6052
      %6054 = vmatmul.bf16.gmra.mxu0 %v5995
      %v6055 = vpop.f32.mrf.mxu0
      %v6056 = vadd.f32 %v5903, %v6055
      %v6057 = vpop.f32.mrf.mxu0
      %v6058 = vadd.f32 %v5905, %v6057
      %6059 = vmatmul.bf16.gmra.mxu0 %v5997
      %v6060 = vpop.f32.mrf.mxu0
      %v6061 = vadd.f32 %v5908, %v6060
      %v6062 = vpop.f32.mrf.mxu0
      %v6063 = vadd.f32 %v5910, %v6062
      %6064 = vmatmul.bf16.gmra.mxu0 %v5999
      %v6065 = vpop.f32.mrf.mxu0
      %v6066 = vadd.f32 %v5913, %v6065
      %v6067 = vpop.f32.mrf.mxu0
      %v6068 = vadd.f32 %v5915, %v6067
      %6069 = vmatmul.bf16.gmra.mxu0 %v6001
      %v6070 = vpop.f32.mrf.mxu0
      %v6071 = vadd.f32 %v5918, %v6070
      %v6072 = vpop.f32.mrf.mxu0
      %v6073 = vadd.f32 %v5920, %v6072
      %6074 = vmatmul.bf16.gmra.mxu0 %v6003
      %v6075 = vpop.f32.mrf.mxu0
      %v6076 = vadd.f32 %v5923, %v6075
      %v6077 = vpop.f32.mrf.mxu0
      %v6078 = vadd.f32 %v5925, %v6077
      %6079 = vmatmul.bf16.gmra.mxu0 %v6005
      %v6080 = vpop.f32.mrf.mxu0
      %v6081 = vadd.f32 %v5928, %v6080
      %v6082 = vpop.f32.mrf.mxu0
      %v6083 = vadd.f32 %v5930, %v6082
      %6084 = vmatmul.bf16.gmra.mxu0 %v6007
      %v6085 = vpop.f32.mrf.mxu0
      %v6086 = vadd.f32 %v5933, %v6085
      %v6087 = vpop.f32.mrf.mxu0
      %v6088 = vadd.f32 %v5935, %v6087
      %6089 = vmatmul.bf16.gmra.mxu0 %v6009
      %v6090 = vpop.f32.mrf.mxu0
      %v6091 = vadd.f32 %v5938, %v6090
      %v6092 = vpop.f32.mrf.mxu0
      %v6093 = vadd.f32 %v5940, %v6092
      %6094 = vmatmul.bf16.gmra.mxu0 %v6011
      %v6095 = vpop.f32.mrf.mxu0
      %v6096 = vadd.f32 %v5943, %v6095
      %v6097 = vpop.f32.mrf.mxu0
      %v6098 = vadd.f32 %v5945, %v6097
      %6099 = vmatmul.bf16.gmra.mxu0 %v6013
      %v6100 = vpop.f32.mrf.mxu0
      %v6101 = vadd.f32 %v5948, %v6100
      %v6102 = vpop.f32.mrf.mxu0
      %v6103 = vadd.f32 %v5950, %v6102
      %6104 = vmatmul.bf16.gmra.mxu0 %v6015
      %v6105 = vpop.f32.mrf.mxu0
      %v6106 = vadd.f32 %v5953, %v6105
      %v6107 = vpop.f32.mrf.mxu0
      %v6108 = vadd.f32 %v5955, %v6107
      %6109 = vdwg.mxu0
      %6110 = vst [vmem:[%s305] sm:$0xff] %v6031
      %6111 = vst [vmem:[%s305 + $0x8] sm:$0xff] %v6033
      %6112 = vst [vmem:[%s305 + $0x10] sm:$0xff] %v6036
      %6113 = vst [vmem:[%s305 + $0x18] sm:$0xff] %v6038
      %6114 = vst [vmem:[%s305 + $0x20] sm:$0xff] %v6041
      %6115 = vst [vmem:[%s305 + $0x28] sm:$0xff] %v6043
      %6116 = vst [vmem:[%s305 + $0x30] sm:$0xff] %v6046
      %6117 = vst [vmem:[%s305 + $0x38] sm:$0xff] %v6048
      %6118 = vst [vmem:[%s305 + $0x40] sm:$0xff] %v6051
      %6119 = vst [vmem:[%s305 + $0x48] sm:$0xff] %v6053
      %6120 = vst [vmem:[%s305 + $0x50] sm:$0xff] %v6056
      %6121 = vst [vmem:[%s305 + $0x58] sm:$0xff] %v6058
      %6122 = vst [vmem:[%s305 + $0x60] sm:$0xff] %v6061
      %6123 = vst [vmem:[%s305 + $0x68] sm:$0xff] %v6063
      %6124 = vst [vmem:[%s305 + $0x70] sm:$0xff] %v6066
      %6125 = vst [vmem:[%s305 + $0x78] sm:$0xff] %v6068
      %6126 = vst [vmem:[%s305 + $0x80] sm:$0xff] %v6071
      %6127 = vst [vmem:[%s305 + $0x88] sm:$0xff] %v6073
      %6128 = vst [vmem:[%s305 + $0x90] sm:$0xff] %v6076
      %6129 = vst [vmem:[%s305 + $0x98] sm:$0xff] %v6078
      %6130 = vst [vmem:[%s305 + $0xa0] sm:$0xff] %v6081
      %6131 = vst [vmem:[%s305 + $0xa8] sm:$0xff] %v6083
      %6132 = vst [vmem:[%s305 + $0xb0] sm:$0xff] %v6086
      %6133 = vst [vmem:[%s305 + $0xb8] sm:$0xff] %v6088
      %6134 = vst [vmem:[%s305 + $0xc0] sm:$0xff] %v6091
      %6135 = vst [vmem:[%s305 + $0xc8] sm:$0xff] %v6093
      %6136 = vst [vmem:[%s305 + $0xd0] sm:$0xff] %v6096
      %6137 = vst [vmem:[%s305 + $0xd8] sm:$0xff] %v6098
      %6138 = vst [vmem:[%s305 + $0xe0] sm:$0xff] %v6101
      %6139 = vst [vmem:[%s305 + $0xe8] sm:$0xff] %v6103
      %6140 = vst [vmem:[%s305 + $0xf0] sm:$0xff] %v6106
      %6141 = vst [vmem:[%s305 + $0xf8] sm:$0xff] %v6108
      %p6142 = scmp.lt.s32.totalorder %s19, 1
      %s6143 = scalar_select %p6142, %s19, 1
      %s6144 = smul.addr %s6143, 32
      %s6145 = smul.addr %s6144, 8
      %s6146 = scalar_lea.vmem %s8, %s6145
      // Predicated region
      $region53: #{basic_block_forward.1} parent=51 // pred_check
        %p6147 = pneg %p210
      $region54: #{basic_block_forward.1} parent=51 // pred_check_branch
        %6149 = sbr.rel (%p6147) target = $region56
      $region55: #{basic_block_forward.1} parent=51 // pred_region
        _
      $region56: #{basic_block_forward.1} parent=51 // pred_fallthru
        _
    $region52: #{basic_block_forward.1} parent=5 // pred_fallthru
      _
    %p6150 = scmp.le.s32.totalorder 2, %s14
    // Predicated region
    $region57: #{basic_block_forward.1} parent=5 // pred_check
      %p6151 = pneg %p6150
    $region58: #{basic_block_forward.1} parent=5 // pred_check_branch
      %6153 = sbr.rel (%p6151) target = $region60
    $region59: #{basic_block_forward.1} parent=5 // pred_region
      %s6154 = ssub.s32 %s14, 2
      // Predicated region
      $region61: #{basic_block_forward.1} parent=59 // pred_check
        %p6155 = pneg %p216
      $region62: #{basic_block_forward.1} parent=59 // pred_check_branch
        %6157 = sbr.rel (%p6155) target = $region64
      $region63: #{basic_block_forward.1} parent=59 // pred_region
        %p6158 = scmp.lt.s32.totalorder %s20, 1
        %s6159 = scalar_select %p6158, %s20, 1
        %s6160 = smul.addr %s6159, 32
        %s6161 = smul.addr %s6160, 8
        %s6162 = scalar_lea.vmem %s8, %s6161
      $region64: #{basic_block_forward.1} parent=59 // pred_fallthru
        _
    $region60: #{basic_block_forward.1} parent=5 // pred_fallthru
      _
  $region6: #{basic_block_forward.1} parent=0 // loop_footer
    %s18 = sadd.s32 1, %s14
  $region7: #{basic_block_forward.1} parent=0 // loop_footer_branch
    %13 = sbr.rel target = $region3
  $region8: #{basic_block_forward.1} parent=0 // loop_exit
    _

</llo_original>
